<compile_context>
chip_gen: v5e
topology: v5e:2x2
jax: 0.10.0
libtpu: 0.0.40
codegen_flags: <defaults>
</compile_context>

<pallas_src>
import numpy as np
import jax
import jax.numpy as jnp
from jax.experimental import pallas as pl
from jax.experimental.pallas import tpu as pltpu


# ----------------------------- Pallas kernels --------------------------------

def _conv3x3_acc(x_ref, w_ref, b_ref, H, W, Cout):
    """3x3 'same' conv from the padded input block.

    x_ref: (1, H+2, W+2, Cin) bf16  (zero-padded activation tile)
    w_ref: (9, Cin, Cout)     bf16  (tap-major, cross-correlation order)
    b_ref: (1, Cout)          f32
    returns: f32 (H*W, Cout)
    """
    Cin = x_ref.shape[3]
    acc = jnp.zeros((H * W, Cout), jnp.float32)
    for k in range(9):
        dy, dx = divmod(k, 3)
        tap = x_ref[0, dy:dy + H, dx:dx + W, :].reshape(H * W, Cin)
        acc = acc + jnp.dot(tap, w_ref[k], preferred_element_type=jnp.float32)
    return acc + b_ref[...]


def conv_pool_relu_kernel(x_ref, w_ref, b_ref, o_ref):
    """Fused: conv3x3 (padding=1) -> maxpool 2x2 (stride 2) -> ReLU."""
    H = x_ref.shape[1] - 2
    W = x_ref.shape[2] - 2
    Cout = o_ref.shape[3]
    y = _conv3x3_acc(x_ref, w_ref, b_ref, H, W, Cout)       # (H*W, Cout) f32

    H2, W2 = H // 2, W // 2
    yw = y.reshape(H, W2, 2, Cout)
    pw = jnp.maximum(yw[:, :, 0, :], yw[:, :, 1, :])        # max over W pairs -> (H, W2, Cout)
    ph = pw.reshape(H2, 2, W2, Cout)
    p = jnp.maximum(ph[:, 0, :, :], ph[:, 1, :, :])         # max over H pairs -> (H2, W2, Cout)
    o_ref[0] = jnp.maximum(p, 0.0).astype(o_ref.dtype)


def conv_up2_relu_kernel(x_ref, w_ref, b_ref, o_ref):
    """Fused: conv3x3 (padding=1) -> bilinear x2 (align_corners=False) -> ReLU.

    The upsample is the separable 4-tap blend:
      even rows: 0.25*prev + 0.75*cur   (edge-clamped)
      odd  rows: 0.75*cur  + 0.25*next  (edge-clamped)
    applied along H then W, which matches PyTorch F.interpolate(scale_factor=2,
    mode='bilinear', align_corners=False).
    """
    H = x_ref.shape[1] - 2
    W = x_ref.shape[2] - 2
    Cout = o_ref.shape[3]
    y = _conv3x3_acc(x_ref, w_ref, b_ref, H, W, Cout).reshape(H, W, Cout)

    # upsample along H
    prev = jnp.concatenate([y[:1], y[:-1]], axis=0)
    nxt = jnp.concatenate([y[1:], y[-1:]], axis=0)
    ev = 0.25 * prev + 0.75 * y
    od = 0.75 * y + 0.25 * nxt
    yh = jnp.stack([ev, od], axis=1).reshape(2 * H, W, Cout)

    # upsample along W
    prev = jnp.concatenate([yh[:, :1, :], yh[:, :-1, :]], axis=1)
    nxt = jnp.concatenate([yh[:, 1:, :], yh[:, -1:, :]], axis=1)
    ev = 0.25 * prev + 0.75 * yh
    od = 0.75 * yh + 0.25 * nxt
    out = jnp.stack([ev, od], axis=2).reshape(2 * H, 2 * W, Cout)

    o_ref[0] = jnp.maximum(out, 0.0).astype(o_ref.dtype)


_COMPILER_PARAMS = pltpu.CompilerParams(
    dimension_semantics=("parallel",),
    vmem_limit_bytes=48 * 1024 * 1024,   # fits v7x's 64 MiB/TC, above v5e/v6e scoped defaults
)


# ------------------------------ wrappers --------------------------------------

def _prep_inputs(x_nhwc, w, b):
    """Pad the activation once (HBM) and lay out weights tap-major for the kernel."""
    xp = jnp.pad(x_nhwc, ((0, 0), (1, 1), (1, 1), (0, 0))).astype(jnp.bfloat16)
    Cout, Cin = w.shape[0], w.shape[1]
    w_r = jnp.transpose(w, (2, 3, 1, 0)).reshape(9, Cin, Cout).astype(jnp.bfloat16)
    b_r = b.reshape(1, Cout).astype(jnp.float32)
    return xp, w_r, b_r


def conv3x3_pool_relu(x_nhwc, w, b, out_dtype=jnp.bfloat16):
    """relu(max_pool2d(Conv2d(k=3, s=1, p=1)(x), 2, 2)) in NHWC, one fused kernel."""
    N, H, W, Cin = x_nhwc.shape
    Cout = w.shape[0]
    H2, W2 = H // 2, W // 2
    xp, w_r, b_r = _prep_inputs(x_nhwc, w, b)
    return pl.pallas_call(
        conv_pool_relu_kernel,
        out_shape=jax.ShapeDtypeStruct((N, H2, W2, Cout), out_dtype),
        grid=(N,),
        in_specs=[pl.BlockSpec((1, H + 2, W + 2, Cin), lambda n: (n, 0, 0, 0)),
                  pl.BlockSpec((9, Cin, Cout), lambda n: (0, 0, 0)),
                  pl.BlockSpec((1, Cout), lambda n: (0, 0))],
        out_specs=pl.BlockSpec((1, H2, W2, Cout), lambda n: (n, 0, 0, 0)),
        compiler_params=_COMPILER_PARAMS,
    )(xp, w_r, b_r)


def conv3x3_up2_relu(x_nhwc, w, b, out_dtype=jnp.bfloat16):
    """relu(interpolate(Conv2d(k=3, s=1, p=1)(x), scale=2, bilinear)) in NHWC, fused."""
    N, H, W, Cin = x_nhwc.shape
    Cout = w.shape[0]
    xp, w_r, b_r = _prep_inputs(x_nhwc, w, b)
    return pl.pallas_call(
        conv_up2_relu_kernel,
        out_shape=jax.ShapeDtypeStruct((N, 2 * H, 2 * W, Cout), out_dtype),
        grid=(N,),
        in_specs=[pl.BlockSpec((1, H + 2, W + 2, Cin), lambda n: (n, 0, 0, 0)),
                  pl.BlockSpec((9, Cin, Cout), lambda n: (0, 0, 0)),
                  pl.BlockSpec((1, Cout), lambda n: (0, 0))],
        out_specs=pl.BlockSpec((1, 2 * H, 2 * W, Cout), lambda n: (n, 0, 0, 0)),
        compiler_params=_COMPILER_PARAMS,
    )(xp, w_r, b_r)


def autoencoder_forward(x_nchw, params):
    """Forward pass. Input/output NCHW like PyTorch; output shape (N, 2, H, W), f32."""
    x = jnp.transpose(x_nchw, (0, 2, 3, 1)).astype(jnp.float32)   # NCHW -> NHWC
    out = conv3x3_pool_relu(x, params["e1_w"], params["e1_b"])
    out = conv3x3_pool_relu(out, params["e2_w"], params["e2_b"])
    out = conv3x3_pool_relu(out, params["e3_w"], params["e3_b"])
    out = conv3x3_up2_relu(out, params["d3_w"], params["d3_b"])
    out = conv3x3_up2_relu(out, params["d4_w"], params["d4_b"])
    out = conv3x3_up2_relu(out, params["d5_w"], params["d5_b"], out_dtype=jnp.float32)
    return jnp.transpose(out, (0, 3, 1, 2))                        # NHWC -> NCHW


# ------------------------------ parameters ------------------------------------

def _init_conv(key, cin, cout):
    """Deterministic init mirroring nn.Conv2d default (uniform +/- 1/sqrt(fan_in))."""
    kw, kb = jax.random.split(key)
    bound = 1.0 / float(np.sqrt(cin * 9))
    w = jax.random.uniform(kw, (cout, cin, 3, 3), jnp.float32, -bound, bound)
    b = jax.random.uniform(kb, (cout,), jnp.float32, -bound, bound)
    return w, b


if __name__ == "__main__":
    key = jax.random.PRNGKey(0)
    keys = jax.random.split(key, 7)
    layer_specs = [("e1", 3, 64), ("e2", 64, 128), ("e3", 128, 256),
                   ("d3", 256, 128), ("d4", 128, 64), ("d5", 64, 2)]
    params = {}
    for k, (name, cin, cout) in zip(keys[:6], layer_specs):
        w, b = _init_conv(k, cin, cout)
        params[name + "_w"] = w
        params[name + "_b"] = b

    # small deterministic input consistent with the module (3 input channels,
    # spatial divisible by 8 so the three max-pools are exact)
    x = jax.random.normal(keys[6], (2, 3, 16, 16), jnp.float32)

    y = autoencoder_forward(x, params)
    jax.block_until_ready(y)
    assert y.shape == (2, 2, 16, 16), y.shape
    assert y.dtype == jnp.float32
    assert bool(jnp.all(y >= 0.0))  # final ReLU
    print("KERNEL_OK")
</pallas_src>

<mosaic_0001>
module attributes {stable_mosaic.version = 11 : i64} {
  func.func @conv_pool_relu_kernel(%arg0: i32, %arg1: memref<1x18x18x3xbf16, #tpu.memory_space<vmem>>, %arg2: memref<9x3x64xbf16, #tpu.memory_space<vmem>>, %arg3: memref<1x64xf32, #tpu.memory_space<vmem>>, %arg4: memref<1x8x8x64xbf16, #tpu.memory_space<vmem>>) attributes {dimension_semantics = [#tpu.dimension_semantics<parallel>], iteration_bounds = array<i64: 2>, scalar_prefetch = 0 : i64, scratch_operands = 0 : i64, tpu.core_type = #tpu.core_type<tc>, window_params = [{transform_indices = @transform_0, window_bounds = array<i64: 1, 18, 18, 3>}, {pipeline_mode = #tpu.pipeline_mode<synchronous>, transform_indices = @transform_1, window_bounds = array<i64: 9, 3, 64>}, {pipeline_mode = #tpu.pipeline_mode<synchronous>, transform_indices = @transform_2, window_bounds = array<i64: 1, 64>}, {transform_indices = @transform_3, window_bounds = array<i64: 1, 8, 8, 64>}]} {
    %cst = arith.constant 0.000000e+00 : f32
    %0 = vector.broadcast %cst : f32 to vector<256x64xf32>
    %c0 = arith.constant 0 : index
    %c0_0 = arith.constant 0 : index
    %c0_1 = arith.constant 0 : index
    %c0_2 = arith.constant 0 : index
    %1 = vector.load %arg1[%c0, %c0_0, %c0_1, %c0_2] : memref<1x18x18x3xbf16, #tpu.memory_space<vmem>>, vector<1x16x16x3xbf16>
    %2 = vector.shape_cast %1 : vector<1x16x16x3xbf16> to vector<16x16x3xbf16>
    %3 = vector.shape_cast %2 : vector<16x16x3xbf16> to vector<256x3xbf16>
    %c0_3 = arith.constant 0 : index
    %c0_4 = arith.constant 0 : index
    %c0_5 = arith.constant 0 : index
    %4 = vector.load %arg2[%c0_3, %c0_4, %c0_5] : memref<9x3x64xbf16, #tpu.memory_space<vmem>>, vector<1x3x64xbf16>
    %5 = vector.shape_cast %4 : vector<1x3x64xbf16> to vector<3x64xbf16>
    %cst_6 = arith.constant dense<0.000000e+00> : vector<256x64xf32>
    %6 = tpu.matmul %3, %5, %cst_6 {dimension_numbers = #tpu.dot_dimension_numbers<[1], [0], [0], [1], [0, 0, 1, 1], [], []>} : vector<256x3xbf16>, vector<3x64xbf16>, vector<256x64xf32> -> vector<256x64xf32>
    %7 = arith.addf %0, %6 : vector<256x64xf32>
    %c0_7 = arith.constant 0 : index
    %c0_8 = arith.constant 0 : index
    %c1 = arith.constant 1 : index
    %c0_9 = arith.constant 0 : index
    %8 = vector.load %arg1[%c0_7, %c0_8, %c1, %c0_9] : memref<1x18x18x3xbf16, #tpu.memory_space<vmem>>, vector<1x16x16x3xbf16>
    %9 = vector.shape_cast %8 : vector<1x16x16x3xbf16> to vector<16x16x3xbf16>
    %10 = vector.shape_cast %9 : vector<16x16x3xbf16> to vector<256x3xbf16>
    %c1_10 = arith.constant 1 : index
    %c0_11 = arith.constant 0 : index
    %c0_12 = arith.constant 0 : index
    %11 = vector.load %arg2[%c1_10, %c0_11, %c0_12] : memref<9x3x64xbf16, #tpu.memory_space<vmem>>, vector<1x3x64xbf16>
    %12 = vector.shape_cast %11 : vector<1x3x64xbf16> to vector<3x64xbf16>
    %cst_13 = arith.constant dense<0.000000e+00> : vector<256x64xf32>
    %13 = tpu.matmul %10, %12, %cst_13 {dimension_numbers = #tpu.dot_dimension_numbers<[1], [0], [0], [1], [0, 0, 1, 1], [], []>} : vector<256x3xbf16>, vector<3x64xbf16>, vector<256x64xf32> -> vector<256x64xf32>
    %14 = arith.addf %7, %13 : vector<256x64xf32>
    %c0_14 = arith.constant 0 : index
    %c0_15 = arith.constant 0 : index
    %c2 = arith.constant 2 : index
    %c0_16 = arith.constant 0 : index
    %15 = vector.load %arg1[%c0_14, %c0_15, %c2, %c0_16] : memref<1x18x18x3xbf16, #tpu.memory_space<vmem>>, vector<1x16x16x3xbf16>
    %16 = vector.shape_cast %15 : vector<1x16x16x3xbf16> to vector<16x16x3xbf16>
    %17 = vector.shape_cast %16 : vector<16x16x3xbf16> to vector<256x3xbf16>
    %c2_17 = arith.constant 2 : index
    %c0_18 = arith.constant 0 : index
    %c0_19 = arith.constant 0 : index
    %18 = vector.load %arg2[%c2_17, %c0_18, %c0_19] : memref<9x3x64xbf16, #tpu.memory_space<vmem>>, vector<1x3x64xbf16>
    %19 = vector.shape_cast %18 : vector<1x3x64xbf16> to vector<3x64xbf16>
    %cst_20 = arith.constant dense<0.000000e+00> : vector<256x64xf32>
    %20 = tpu.matmul %17, %19, %cst_20 {dimension_numbers = #tpu.dot_dimension_numbers<[1], [0], [0], [1], [0, 0, 1, 1], [], []>} : vector<256x3xbf16>, vector<3x64xbf16>, vector<256x64xf32> -> vector<256x64xf32>
    %21 = arith.addf %14, %20 : vector<256x64xf32>
    %c0_21 = arith.constant 0 : index
    %c1_22 = arith.constant 1 : index
    %c0_23 = arith.constant 0 : index
    %c0_24 = arith.constant 0 : index
    %22 = vector.load %arg1[%c0_21, %c1_22, %c0_23, %c0_24] : memref<1x18x18x3xbf16, #tpu.memory_space<vmem>>, vector<1x16x16x3xbf16>
    %23 = vector.shape_cast %22 : vector<1x16x16x3xbf16> to vector<16x16x3xbf16>
    %24 = vector.shape_cast %23 : vector<16x16x3xbf16> to vector<256x3xbf16>
    %c3 = arith.constant 3 : index
    %c0_25 = arith.constant 0 : index
    %c0_26 = arith.constant 0 : index
    %25 = vector.load %arg2[%c3, %c0_25, %c0_26] : memref<9x3x64xbf16, #tpu.memory_space<vmem>>, vector<1x3x64xbf16>
    %26 = vector.shape_cast %25 : vector<1x3x64xbf16> to vector<3x64xbf16>
    %cst_27 = arith.constant dense<0.000000e+00> : vector<256x64xf32>
    %27 = tpu.matmul %24, %26, %cst_27 {dimension_numbers = #tpu.dot_dimension_numbers<[1], [0], [0], [1], [0, 0, 1, 1], [], []>} : vector<256x3xbf16>, vector<3x64xbf16>, vector<256x64xf32> -> vector<256x64xf32>
    %28 = arith.addf %21, %27 : vector<256x64xf32>
    %c0_28 = arith.constant 0 : index
    %c1_29 = arith.constant 1 : index
    %c1_30 = arith.constant 1 : index
    %c0_31 = arith.constant 0 : index
    %29 = vector.load %arg1[%c0_28, %c1_29, %c1_30, %c0_31] : memref<1x18x18x3xbf16, #tpu.memory_space<vmem>>, vector<1x16x16x3xbf16>
    %30 = vector.shape_cast %29 : vector<1x16x16x3xbf16> to vector<16x16x3xbf16>
    %31 = vector.shape_cast %30 : vector<16x16x3xbf16> to vector<256x3xbf16>
    %c4 = arith.constant 4 : index
    %c0_32 = arith.constant 0 : index
    %c0_33 = arith.constant 0 : index
    %32 = vector.load %arg2[%c4, %c0_32, %c0_33] : memref<9x3x64xbf16, #tpu.memory_space<vmem>>, vector<1x3x64xbf16>
    %33 = vector.shape_cast %32 : vector<1x3x64xbf16> to vector<3x64xbf16>
    %cst_34 = arith.constant dense<0.000000e+00> : vector<256x64xf32>
    %34 = tpu.matmul %31, %33, %cst_34 {dimension_numbers = #tpu.dot_dimension_numbers<[1], [0], [0], [1], [0, 0, 1, 1], [], []>} : vector<256x3xbf16>, vector<3x64xbf16>, vector<256x64xf32> -> vector<256x64xf32>
    %35 = arith.addf %28, %34 : vector<256x64xf32>
    %c0_35 = arith.constant 0 : index
    %c1_36 = arith.constant 1 : index
    %c2_37 = arith.constant 2 : index
    %c0_38 = arith.constant 0 : index
    %36 = vector.load %arg1[%c0_35, %c1_36, %c2_37, %c0_38] : memref<1x18x18x3xbf16, #tpu.memory_space<vmem>>, vector<1x16x16x3xbf16>
    %37 = vector.shape_cast %36 : vector<1x16x16x3xbf16> to vector<16x16x3xbf16>
    %38 = vector.shape_cast %37 : vector<16x16x3xbf16> to vector<256x3xbf16>
    %c5 = arith.constant 5 : index
    %c0_39 = arith.constant 0 : index
    %c0_40 = arith.constant 0 : index
    %39 = vector.load %arg2[%c5, %c0_39, %c0_40] : memref<9x3x64xbf16, #tpu.memory_space<vmem>>, vector<1x3x64xbf16>
    %40 = vector.shape_cast %39 : vector<1x3x64xbf16> to vector<3x64xbf16>
    %cst_41 = arith.constant dense<0.000000e+00> : vector<256x64xf32>
    %41 = tpu.matmul %38, %40, %cst_41 {dimension_numbers = #tpu.dot_dimension_numbers<[1], [0], [0], [1], [0, 0, 1, 1], [], []>} : vector<256x3xbf16>, vector<3x64xbf16>, vector<256x64xf32> -> vector<256x64xf32>
    %42 = arith.addf %35, %41 : vector<256x64xf32>
    %c0_42 = arith.constant 0 : index
    %c2_43 = arith.constant 2 : index
    %c0_44 = arith.constant 0 : index
    %c0_45 = arith.constant 0 : index
    %43 = vector.load %arg1[%c0_42, %c2_43, %c0_44, %c0_45] : memref<1x18x18x3xbf16, #tpu.memory_space<vmem>>, vector<1x16x16x3xbf16>
    %44 = vector.shape_cast %43 : vector<1x16x16x3xbf16> to vector<16x16x3xbf16>
    %45 = vector.shape_cast %44 : vector<16x16x3xbf16> to vector<256x3xbf16>
    %c6 = arith.constant 6 : index
    %c0_46 = arith.constant 0 : index
    %c0_47 = arith.constant 0 : index
    %46 = vector.load %arg2[%c6, %c0_46, %c0_47] : memref<9x3x64xbf16, #tpu.memory_space<vmem>>, vector<1x3x64xbf16>
    %47 = vector.shape_cast %46 : vector<1x3x64xbf16> to vector<3x64xbf16>
    %cst_48 = arith.constant dense<0.000000e+00> : vector<256x64xf32>
    %48 = tpu.matmul %45, %47, %cst_48 {dimension_numbers = #tpu.dot_dimension_numbers<[1], [0], [0], [1], [0, 0, 1, 1], [], []>} : vector<256x3xbf16>, vector<3x64xbf16>, vector<256x64xf32> -> vector<256x64xf32>
    %49 = arith.addf %42, %48 : vector<256x64xf32>
    %c0_49 = arith.constant 0 : index
    %c2_50 = arith.constant 2 : index
    %c1_51 = arith.constant 1 : index
    %c0_52 = arith.constant 0 : index
    %50 = vector.load %arg1[%c0_49, %c2_50, %c1_51, %c0_52] : memref<1x18x18x3xbf16, #tpu.memory_space<vmem>>, vector<1x16x16x3xbf16>
    %51 = vector.shape_cast %50 : vector<1x16x16x3xbf16> to vector<16x16x3xbf16>
    %52 = vector.shape_cast %51 : vector<16x16x3xbf16> to vector<256x3xbf16>
    %c7 = arith.constant 7 : index
    %c0_53 = arith.constant 0 : index
    %c0_54 = arith.constant 0 : index
    %53 = vector.load %arg2[%c7, %c0_53, %c0_54] : memref<9x3x64xbf16, #tpu.memory_space<vmem>>, vector<1x3x64xbf16>
    %54 = vector.shape_cast %53 : vector<1x3x64xbf16> to vector<3x64xbf16>
    %cst_55 = arith.constant dense<0.000000e+00> : vector<256x64xf32>
    %55 = tpu.matmul %52, %54, %cst_55 {dimension_numbers = #tpu.dot_dimension_numbers<[1], [0], [0], [1], [0, 0, 1, 1], [], []>} : vector<256x3xbf16>, vector<3x64xbf16>, vector<256x64xf32> -> vector<256x64xf32>
    %56 = arith.addf %49, %55 : vector<256x64xf32>
    %c0_56 = arith.constant 0 : index
    %c2_57 = arith.constant 2 : index
    %c2_58 = arith.constant 2 : index
    %c0_59 = arith.constant 0 : index
    %57 = vector.load %arg1[%c0_56, %c2_57, %c2_58, %c0_59] : memref<1x18x18x3xbf16, #tpu.memory_space<vmem>>, vector<1x16x16x3xbf16>
    %58 = vector.shape_cast %57 : vector<1x16x16x3xbf16> to vector<16x16x3xbf16>
    %59 = vector.shape_cast %58 : vector<16x16x3xbf16> to vector<256x3xbf16>
    %c8 = arith.constant 8 : index
    %c0_60 = arith.constant 0 : index
    %c0_61 = arith.constant 0 : index
    %60 = vector.load %arg2[%c8, %c0_60, %c0_61] : memref<9x3x64xbf16, #tpu.memory_space<vmem>>, vector<1x3x64xbf16>
    %61 = vector.shape_cast %60 : vector<1x3x64xbf16> to vector<3x64xbf16>
    %cst_62 = arith.constant dense<0.000000e+00> : vector<256x64xf32>
    %62 = tpu.matmul %59, %61, %cst_62 {dimension_numbers = #tpu.dot_dimension_numbers<[1], [0], [0], [1], [0, 0, 1, 1], [], []>} : vector<256x3xbf16>, vector<3x64xbf16>, vector<256x64xf32> -> vector<256x64xf32>
    %63 = arith.addf %56, %62 : vector<256x64xf32>
    %c0_63 = arith.constant 0 : index
    %c0_64 = arith.constant 0 : index
    %64 = vector.load %arg3[%c0_63, %c0_64] : memref<1x64xf32, #tpu.memory_space<vmem>>, vector<1x64xf32>
    %65 = vector.broadcast %64 : vector<1x64xf32> to vector<256x64xf32>
    %66 = arith.addf %63, %65 : vector<256x64xf32>
    %67 = vector.shape_cast %66 : vector<256x64xf32> to vector<16x8x2x64xf32>
    %68 = vector.extract_strided_slice %67 {offsets = [0, 0, 0, 0], sizes = [16, 8, 1, 64], strides = [1, 1, 1, 1]} : vector<16x8x2x64xf32> to vector<16x8x1x64xf32>
    %69 = vector.shape_cast %68 : vector<16x8x1x64xf32> to vector<16x8x64xf32>
    %70 = vector.extract_strided_slice %67 {offsets = [0, 0, 1, 0], sizes = [16, 8, 1, 64], strides = [1, 1, 1, 1]} : vector<16x8x2x64xf32> to vector<16x8x1x64xf32>
    %71 = vector.shape_cast %70 : vector<16x8x1x64xf32> to vector<16x8x64xf32>
    %72 = arith.maximumf %69, %71 : vector<16x8x64xf32>
    %73 = vector.shape_cast %72 : vector<16x8x64xf32> to vector<8x2x8x64xf32>
    %74 = vector.extract_strided_slice %73 {offsets = [0, 0, 0, 0], sizes = [8, 1, 8, 64], strides = [1, 1, 1, 1]} : vector<8x2x8x64xf32> to vector<8x1x8x64xf32>
    %75 = vector.shape_cast %74 : vector<8x1x8x64xf32> to vector<8x8x64xf32>
    %76 = vector.extract_strided_slice %73 {offsets = [0, 1, 0, 0], sizes = [8, 1, 8, 64], strides = [1, 1, 1, 1]} : vector<8x2x8x64xf32> to vector<8x1x8x64xf32>
    %77 = vector.shape_cast %76 : vector<8x1x8x64xf32> to vector<8x8x64xf32>
    %78 = arith.maximumf %75, %77 : vector<8x8x64xf32>
    %cst_65 = arith.constant 0.000000e+00 : f32
    %79 = vector.broadcast %cst_65 : f32 to vector<8x8x64xf32>
    %80 = arith.maximumf %78, %79 : vector<8x8x64xf32>
    %81 = arith.truncf %80 : vector<8x8x64xf32> to vector<8x8x64xbf16>
    %c0_66 = arith.constant 0 : index
    %c0_67 = arith.constant 0 : index
    %c0_68 = arith.constant 0 : index
    %c0_69 = arith.constant 0 : index
    %82 = vector.load %arg4[%c0_66, %c0_67, %c0_68, %c0_69] : memref<1x8x8x64xbf16, #tpu.memory_space<vmem>>, vector<1x8x8x64xbf16>
    %83 = vector.shape_cast %82 : vector<1x8x8x64xbf16> to vector<8x8x64xbf16>
    %84 = vector.shape_cast %81 : vector<8x8x64xbf16> to vector<1x8x8x64xbf16>
    tpu.vector_store %arg4[%c0_66, %c0_67, %c0_68, %c0_69], %84 {strides = array<i32>} : memref<1x8x8x64xbf16, #tpu.memory_space<vmem>>, vector<1x8x8x64xbf16>,
    return
  }
  func.func @transform_0(%arg0: i32) -> (i32, i32, i32, i32) {
    %c0_i32 = arith.constant 0 : i32
    %c0_i32_0 = arith.constant 0 : i32
    %c0_i32_1 = arith.constant 0 : i32
    %c0_i32_2 = arith.constant 0 : i32
    return %arg0, %c0_i32, %c0_i32_0, %c0_i32_1 : i32, i32, i32, i32
  }
  func.func @transform_1(%arg0: i32) -> (i32, i32, i32) {
    %c0_i32 = arith.constant 0 : i32
    %c0_i32_0 = arith.constant 0 : i32
    %c0_i32_1 = arith.constant 0 : i32
    %c0_i32_2 = arith.constant 0 : i32
    return %c0_i32, %c0_i32_0, %c0_i32_1 : i32, i32, i32
  }
  func.func @transform_2(%arg0: i32) -> (i32, i32) {
    %c0_i32 = arith.constant 0 : i32
    %c0_i32_0 = arith.constant 0 : i32
    %c0_i32_1 = arith.constant 0 : i32
    return %c0_i32, %c0_i32_0 : i32, i32
  }
  func.func @transform_3(%arg0: i32) -> (i32, i32, i32, i32) {
    %c0_i32 = arith.constant 0 : i32
    %c0_i32_0 = arith.constant 0 : i32
    %c0_i32_1 = arith.constant 0 : i32
    %c0_i32_2 = arith.constant 0 : i32
    return %arg0, %c0_i32, %c0_i32_0, %c0_i32_1 : i32, i32, i32, i32
  }
}

</mosaic_0001>

<llo_original>
// kernel: tpu_custom_call.1
$region0: #{tpu_custom_call.1}
  #allocation0 [shape = 'u32[]', space=smem, size = 0x4, offset = 0x4, fixed_abs, tag = 'smem constant byte address 0x4 - core index']
  #allocation1 [shape = 'u32[72,128]{1,0:T(1,128)}', space=vmem, size = 0x9000, scoped, tag = 'internal scratch']
  %s0 = inlined_call_operand.vmem [shape: bf16[2,18,18,3], index: 0, kind: input, shape index: {}]
  %s1 = inlined_call_operand.vmem [shape: bf16[9,3,64], index: 1, kind: input, shape index: {}]
  %s2 = inlined_call_operand.vmem [shape: f32[1,64], index: 2, kind: input, shape index: {}]
  %s3 = inlined_call_operand.hbm [shape: bf16[2,8,8,64], index: 3, kind: output, shape index: {}]
  %s4 = sld [smem:[#allocation0]]
  $region45: #{tpu_custom_call.1} parent=0
    _
  %s6 = ssub.s32 1, %s4
  %s7 = scalar_select 0, %s6, %s4
  $region1: #{tpu_custom_call.1} parent=0
    #allocation2 [shape = 'u8[32768]{0}', space=vmem, size = 0x8000, scoped, tag = 'output window, operand 0']
    #allocation3 [shape = 's32[2]{0}', space=sflag, size = 0x8, scoped, tag = 'scoped memory for tpu_custom_call.1']
    %8 = vsyncpa [#allocation3], 0
    %s9 = scalar_lea.sflag [#allocation3], 1
    %10 = vsyncpa %s9, 0
    loop: start=0, step=1, limit=4
    $region2: #{tpu_custom_call.1} parent=1 // loop_pre_header
      _
    $region3: #{tpu_custom_call.1} parent=1 // loop_header
      %s12 = sphi 0, %s16
      %p13 = scmp.ge.s32.totalorder %s12, 4
      %s22 = sphi 0, %s24
      %s25 = sphi 0, %s22
      %s26 = sphi 0, %s25
      %s42 = sphi 0, %s26
      %s46 = sphi 0, %s46
      %s48 = sphi 0, %s46
      %s49 = sphi 0, %s48
      %s63 = sphi 0, %s49
      %s67 = sphi 0, %s67
      %s69 = sphi 0, %s67
      %s70 = sphi 0, %s69
      %s84 = sphi 0, %s70
      %s90 = sphi 0, %s92
      %s93 = sphi 0, %s90
      %s94 = sphi 0, %s93
      %s110 = sphi 0, %s94
    $region4: #{tpu_custom_call.1} parent=1 // loop_header_branch
      %15 = sbr.rel (%p13) target = $region8
    $region5: #{tpu_custom_call.1} parent=1 // loop_body
      %s17 = ssub.s32 %s12, 1
      %s18 = ssub.s32 %s12, 2
      %s19 = sadd.s32 %s12, 1
      %s20 = ssub.s32 %s12, %s19
      %p21 = scmp.eq.s32.totalorder %s20, 0
      %s23 = sadd.s32 %s22, 1
      %s24 = scalar_select %p21, %s22, %s23
      %p27 = pneg %p21
      %p28 = scmp.eq.s32.totalorder %s12, 1
      %p29 = por %p27, %p28
      %p30 = scmp.ne.s32.totalorder %s22, %s25
      %p31 = scmp.eq.s32.totalorder %s12, 0
      %p32 = por %p30, %p31
      %p33 = scmp.ne.s32.totalorder %s22, %s25
      %p34 = scmp.eq.s32.totalorder %s17, 1
      %p35 = por %p33, %p34
      %p36 = scmp.ne.s32.totalorder %s25, %s26
      %p37 = scmp.eq.s32.totalorder %s17, 0
      %p38 = por %p36, %p37
      %p39 = scmp.ne.s32.totalorder %s25, %s26
      %p40 = scmp.eq.s32.totalorder %s18, 1
      %p41 = por %p39, %p40
      %p43 = scmp.ne.s32.totalorder %s26, %s42
      %p44 = scmp.eq.s32.totalorder %s18, 0
      %p45 = por %p43, %p44
      %s47 = sadd.s32 %s46, 1
      %p50 = scmp.eq.s32.totalorder %s12, 1
      %p51 = scmp.ne.s32.totalorder %s46, %s48
      %p52 = scmp.eq.s32.totalorder %s12, 0
      %p53 = por %p51, %p52
      %p54 = scmp.ne.s32.totalorder %s46, %s48
      %p55 = scmp.eq.s32.totalorder %s17, 1
      %p56 = por %p54, %p55
      %p57 = scmp.ne.s32.totalorder %s48, %s49
      %p58 = scmp.eq.s32.totalorder %s17, 0
      %p59 = por %p57, %p58
      %p60 = scmp.ne.s32.totalorder %s48, %s49
      %p61 = scmp.eq.s32.totalorder %s18, 1
      %p62 = por %p60, %p61
      %p64 = scmp.ne.s32.totalorder %s49, %s63
      %p65 = scmp.eq.s32.totalorder %s18, 0
      %p66 = por %p64, %p65
      %s68 = sadd.s32 %s67, 1
      %p71 = scmp.eq.s32.totalorder %s12, 1
      %p72 = scmp.ne.s32.totalorder %s67, %s69
      %p73 = scmp.eq.s32.totalorder %s12, 0
      %p74 = por %p72, %p73
      %p75 = scmp.ne.s32.totalorder %s67, %s69
      %p76 = scmp.eq.s32.totalorder %s17, 1
      %p77 = por %p75, %p76
      %p78 = scmp.ne.s32.totalorder %s69, %s70
      %p79 = scmp.eq.s32.totalorder %s17, 0
      %p80 = por %p78, %p79
      %p81 = scmp.ne.s32.totalorder %s69, %s70
      %p82 = scmp.eq.s32.totalorder %s18, 1
      %p83 = por %p81, %p82
      %p85 = scmp.ne.s32.totalorder %s70, %s84
      %p86 = scmp.eq.s32.totalorder %s18, 0
      %p87 = por %p85, %p86
      %s88 = ssub.s32 %s12, %s19
      %p89 = scmp.eq.s32.totalorder %s88, 0
      %s91 = sadd.s32 %s90, 1
      %s92 = scalar_select %p89, %s90, %s91
      %p95 = pneg %p89
      %p96 = scmp.eq.s32.totalorder %s12, 1
      %p97 = por %p95, %p96
      %p98 = scmp.ne.s32.totalorder %s90, %s93
      %p99 = scmp.eq.s32.totalorder %s12, 0
      %p100 = por %p98, %p99
      %p101 = scmp.ne.s32.totalorder %s90, %s93
      %p102 = scmp.eq.s32.totalorder %s17, 1
      %p103 = por %p101, %p102
      %p104 = scmp.ne.s32.totalorder %s93, %s94
      %p105 = scmp.eq.s32.totalorder %s17, 0
      %p106 = por %p104, %p105
      %p107 = scmp.ne.s32.totalorder %s93, %s94
      %p108 = scmp.eq.s32.totalorder %s18, 1
      %p109 = por %p107, %p108
      %p111 = scmp.ne.s32.totalorder %s94, %s110
      %p112 = scmp.eq.s32.totalorder %s18, 0
      %p113 = por %p111, %p112
      %p114 = scmp.le.s32.totalorder 1, %s12
      %p115 = scmp.lt.s32.totalorder %s12, 3
      %p116 = pnand %p114, %p115
      %p117 = pneg %p116
      // Predicated region
      $region9: #{tpu_custom_call.1} parent=5 // pred_check
        _
      $region10: #{tpu_custom_call.1} parent=5 // pred_check_branch
        %119 = sbr.rel (%p116) target = $region12
      $region11: #{tpu_custom_call.1} parent=5 // pred_region
        %s120 = ssub.s32 %s12, 1
        // Predicated region
        $region13: #{tpu_custom_call.1} parent=11 // pred_check
          %p121 = pneg %p59
        $region14: #{tpu_custom_call.1} parent=11 // pred_check_branch
          %123 = sbr.rel (%p121) target = $region16
        $region15: #{tpu_custom_call.1} parent=11 // pred_region
          _
        $region16: #{tpu_custom_call.1} parent=11 // pred_fallthru
          _
        // Predicated region
        $region17: #{tpu_custom_call.1} parent=11 // pred_check
          %p124 = pneg %p80
        $region18: #{tpu_custom_call.1} parent=11 // pred_check_branch
          %126 = sbr.rel (%p124) target = $region20
        $region19: #{tpu_custom_call.1} parent=11 // pred_region
          _
        $region20: #{tpu_custom_call.1} parent=11 // pred_fallthru
          _
      $region12: #{tpu_custom_call.1} parent=5 // pred_fallthru
        _
      %p127 = scmp.lt.s32.totalorder %s12, 2
      // Predicated region
      $region21: #{tpu_custom_call.1} parent=5 // pred_check
        %p128 = pneg %p127
      $region22: #{tpu_custom_call.1} parent=5 // pred_check_branch
        %130 = sbr.rel (%p128) target = $region24
      $region23: #{tpu_custom_call.1} parent=5 // pred_region
        // Predicated region
        $region25: #{tpu_custom_call.1} parent=23 // pred_check
          %p131 = pneg %p32
        $region26: #{tpu_custom_call.1} parent=23 // pred_check_branch
          %133 = sbr.rel (%p131) target = $region28
        $region27: #{tpu_custom_call.1} parent=23 // pred_region
          %p134 = scmp.lt.s32.totalorder %s12, 1
          %s135 = scalar_select %p134, %s12, 1
          %s136 = smul.addr %s135, 54
          %s137 = smul.addr %s136, 4
          %s138 = scalar_lea.vmem %s0, %s137
        $region28: #{tpu_custom_call.1} parent=23 // pred_fallthru
          _
      $region24: #{tpu_custom_call.1} parent=5 // pred_fallthru
        _
      %p139 = scmp.le.s32.totalorder 1, %s12
      %p140 = scmp.lt.s32.totalorder %s12, 3
      %p141 = pnand %p139, %p140
      %p142 = pneg %p141
      // Predicated region
      $region29: #{tpu_custom_call.1} parent=5 // pred_check
        _
      $region30: #{tpu_custom_call.1} parent=5 // pred_check_branch
        %144 = sbr.rel (%p141) target = $region32
      $region31: #{tpu_custom_call.1} parent=5 // pred_region
        %s145 = ssub.s32 %s12, 1
        %p146 = scmp.lt.s32.totalorder %s17, 1
        %s147 = scalar_select %p146, %s17, 1
        %s148 = smul.addr %s147, 54
        %s149 = smul.addr %s148, 4
        %s150 = scalar_lea.vmem %s0, %s149
        %p151 = pneg %p38
        %p152 = pneg %p35
        %p153 = pneg %p59
        %p154 = pneg %p56
        %p155 = pneg %p80
        %p156 = pneg %p77
        %p157 = pneg %p106
        %p158 = pneg %p103
        %s159 = sand.u32 %s93, 1
        %s160 = scalar_lea.sflag [#allocation3], %s159
        %s161 = sand.u32 %s93, 1
        %s162 = smul.addr %s161, 32
        %s163 = scalar_lea.vmem [#allocation2], %s162
        %p164 = scmp.lt.s32.totalorder %s17, 1
        %s165 = scalar_select %p164, %s17, 1
        %s166 = smul.addr %s165, 54
        %s167 = smul.addr %s166, 4
        %s168 = scalar_lea.vmem %s0, %s167
        %v170 = vld [vmem:[%s168] sm:$0xf]
        %v171 = vld [vmem:[%s168 + $0x4] sm:$0xf]
        %v172 = vld [vmem:[%s168 + $0xc] sm:$0xf]
        %v173 = vld [vmem:[%s168 + $0x10] sm:$0xf]
        %v174 = vld [vmem:[%s168 + $0x18] sm:$0xf]
        %v175 = vld [vmem:[%s168 + $0x1c] sm:$0xf]
        %v176 = vld [vmem:[%s168 + $0x24] sm:$0xf]
        %v177 = vld [vmem:[%s168 + $0x28] sm:$0xf]
        %v178 = vld [vmem:[%s168 + $0x30] sm:$0xf]
        %v179 = vld [vmem:[%s168 + $0x34] sm:$0xf]
        %v180 = vld [vmem:[%s168 + $0x3c] sm:$0xf]
        %v181 = vld [vmem:[%s168 + $0x40] sm:$0xf]
        %v182 = vld [vmem:[%s168 + $0x48] sm:$0xf]
        %v183 = vld [vmem:[%s168 + $0x4c] sm:$0xf]
        %v184 = vld [vmem:[%s168 + $0x54] sm:$0xf]
        %v185 = vld [vmem:[%s168 + $0x58] sm:$0xf]
        %v186 = vld [vmem:[%s168 + $0x60] sm:$0xf]
        %v187 = vld [vmem:[%s168 + $0x64] sm:$0xf]
        %v188 = vld [vmem:[%s168 + $0x6c] sm:$0xf]
        %v189 = vld [vmem:[%s168 + $0x70] sm:$0xf]
        %v190 = vld [vmem:[%s168 + $0x78] sm:$0xf]
        %v191 = vld [vmem:[%s168 + $0x7c] sm:$0xf]
        %v192 = vld [vmem:[%s168 + $0x84] sm:$0xf]
        %v193 = vld [vmem:[%s168 + $0x88] sm:$0xf]
        %v194 = vld [vmem:[%s168 + $0x90] sm:$0xf]
        %v195 = vld [vmem:[%s168 + $0x94] sm:$0xf]
        %v196 = vld [vmem:[%s168 + $0x9c] sm:$0xf]
        %v197 = vld [vmem:[%s168 + $0xa0] sm:$0xf]
        %v198 = vld [vmem:[%s168 + $0xa8] sm:$0xf]
        %v199 = vld [vmem:[%s168 + $0xac] sm:$0xf]
        %v200 = vld [vmem:[%s168 + $0xb4] sm:$0xf]
        %v201 = vld [vmem:[%s168 + $0xb8] sm:$0xf]
        %v202 = vld [vmem:[%s1] sm:$0x3]
        %v203 = vld [vmem:[%s168 + $0x8] sm:$0x1]
        %v204 = vld [vmem:[%s168 + $0x14] sm:$0x1]
        %v205 = vld [vmem:[%s168 + $0x20] sm:$0x1]
        %v206 = vld [vmem:[%s168 + $0x2c] sm:$0x1]
        %v207 = vld [vmem:[%s168 + $0x38] sm:$0x1]
        %v208 = vld [vmem:[%s168 + $0x44] sm:$0x1]
        %v209 = vld [vmem:[%s168 + $0x50] sm:$0x1]
        %v210 = vld [vmem:[%s168 + $0x5c] sm:$0x1]
        %v211 = vld [vmem:[%s168 + $0x68] sm:$0x1]
        %v212 = vld [vmem:[%s168 + $0x74] sm:$0x1]
        %v213 = vld [vmem:[%s168 + $0x80] sm:$0x1]
        %v214 = vld [vmem:[%s168 + $0x8c] sm:$0x1]
        %v215 = vld [vmem:[%s168 + $0x98] sm:$0x1]
        %v216 = vld [vmem:[%s168 + $0xa4] sm:$0x1]
        %v217 = vld [vmem:[%s168 + $0xb0] sm:$0x1]
        %v218 = vld [vmem:[%s168 + $0xbc] sm:$0x1]
        %vm219 = vsmask.f32 3328
        %vm220 = vsmask.f32 7440
        %vm221 = vmor %vm219, %vm220
        %v223 = vshrl.u32 %v170, 16
        %v225 = vrot.slane %v223, 4
        %v226 = vshll.u32 %v170, 16
        %v228 = vrot.slane %v226, 5
        %v229 = vor.u32 %v225, %v228
        %v230 = vrot.slane %v229, 4
        %v232 = vshll.u32 %v171, 16
        %v234 = vrot.slane %v232, 5
        %v235 = vsel %vm221, %v230, %v234
        %v236 = vshrl.u32 %v171, 16
        %v238 = vrot.slane %v236, 4
        %v239 = vor.u32 %v238, %v234
        %v240 = vrot.slane %v239, 4
        %v242 = vshll.u32 %v203, 16
        %v244 = vrot.slane %v242, 5
        %v245 = vsel %vm221, %v240, %v244
        %v247 = vshrl.u32 %v172, 16
        %v249 = vrot.slane %v247, 4
        %v250 = vshll.u32 %v172, 16
        %v252 = vrot.slane %v250, 5
        %v253 = vor.u32 %v249, %v252
        %v254 = vrot.slane %v253, 4
        %v256 = vshll.u32 %v173, 16
        %v258 = vrot.slane %v256, 5
        %v259 = vsel %vm221, %v254, %v258
        %v260 = vshrl.u32 %v173, 16
        %v262 = vrot.slane %v260, 4
        %v263 = vor.u32 %v262, %v258
        %v264 = vrot.slane %v263, 4
        %v266 = vshll.u32 %v204, 16
        %v268 = vrot.slane %v266, 5
        %v269 = vsel %vm221, %v264, %v268
        %v271 = vshrl.u32 %v174, 16
        %v273 = vrot.slane %v271, 4
        %v274 = vshll.u32 %v174, 16
        %v276 = vrot.slane %v274, 5
        %v277 = vor.u32 %v273, %v276
        %v278 = vrot.slane %v277, 4
        %v280 = vshll.u32 %v175, 16
        %v282 = vrot.slane %v280, 5
        %v283 = vsel %vm221, %v278, %v282
        %v284 = vshrl.u32 %v175, 16
        %v286 = vrot.slane %v284, 4
        %v287 = vor.u32 %v286, %v282
        %v288 = vrot.slane %v287, 4
        %v290 = vshll.u32 %v205, 16
        %v292 = vrot.slane %v290, 5
        %v293 = vsel %vm221, %v288, %v292
        %v295 = vshrl.u32 %v176, 16
        %v297 = vrot.slane %v295, 4
        %v298 = vshll.u32 %v176, 16
        %v300 = vrot.slane %v298, 5
        %v301 = vor.u32 %v297, %v300
        %v302 = vrot.slane %v301, 4
        %v304 = vshll.u32 %v177, 16
        %v306 = vrot.slane %v304, 5
        %v307 = vsel %vm221, %v302, %v306
        %v308 = vshrl.u32 %v177, 16
        %v310 = vrot.slane %v308, 4
        %v311 = vor.u32 %v310, %v306
        %v312 = vrot.slane %v311, 4
        %v314 = vshll.u32 %v206, 16
        %v316 = vrot.slane %v314, 5
        %v317 = vsel %vm221, %v312, %v316
        %v319 = vshrl.u32 %v178, 16
        %v321 = vrot.slane %v319, 4
        %v322 = vshll.u32 %v178, 16
        %v324 = vrot.slane %v322, 5
        %v325 = vor.u32 %v321, %v324
        %v326 = vrot.slane %v325, 4
        %v328 = vshll.u32 %v179, 16
        %v330 = vrot.slane %v328, 5
        %v331 = vsel %vm221, %v326, %v330
        %v332 = vshrl.u32 %v179, 16
        %v334 = vrot.slane %v332, 4
        %v335 = vor.u32 %v334, %v330
        %v336 = vrot.slane %v335, 4
        %v338 = vshll.u32 %v207, 16
        %v340 = vrot.slane %v338, 5
        %v341 = vsel %vm221, %v336, %v340
        %v343 = vshrl.u32 %v180, 16
        %v345 = vrot.slane %v343, 4
        %v346 = vshll.u32 %v180, 16
        %v348 = vrot.slane %v346, 5
        %v349 = vor.u32 %v345, %v348
        %v350 = vrot.slane %v349, 4
        %v352 = vshll.u32 %v181, 16
        %v354 = vrot.slane %v352, 5
        %v355 = vsel %vm221, %v350, %v354
        %v356 = vshrl.u32 %v181, 16
        %v358 = vrot.slane %v356, 4
        %v359 = vor.u32 %v358, %v354
        %v360 = vrot.slane %v359, 4
        %v362 = vshll.u32 %v208, 16
        %v364 = vrot.slane %v362, 5
        %v365 = vsel %vm221, %v360, %v364
        %v367 = vshrl.u32 %v182, 16
        %v369 = vrot.slane %v367, 4
        %v370 = vshll.u32 %v182, 16
        %v372 = vrot.slane %v370, 5
        %v373 = vor.u32 %v369, %v372
        %v374 = vrot.slane %v373, 4
        %v376 = vshll.u32 %v183, 16
        %v378 = vrot.slane %v376, 5
        %v379 = vsel %vm221, %v374, %v378
        %v380 = vshrl.u32 %v183, 16
        %v382 = vrot.slane %v380, 4
        %v383 = vor.u32 %v382, %v378
        %v384 = vrot.slane %v383, 4
        %v386 = vshll.u32 %v209, 16
        %v388 = vrot.slane %v386, 5
        %v389 = vsel %vm221, %v384, %v388
        %v391 = vshrl.u32 %v184, 16
        %v393 = vrot.slane %v391, 4
        %v394 = vshll.u32 %v184, 16
        %v396 = vrot.slane %v394, 5
        %v397 = vor.u32 %v393, %v396
        %v398 = vrot.slane %v397, 4
        %v400 = vshll.u32 %v185, 16
        %v402 = vrot.slane %v400, 5
        %v403 = vsel %vm221, %v398, %v402
        %v404 = vshrl.u32 %v185, 16
        %v406 = vrot.slane %v404, 4
        %v407 = vor.u32 %v406, %v402
        %v408 = vrot.slane %v407, 4
        %v410 = vshll.u32 %v210, 16
        %v412 = vrot.slane %v410, 5
        %v413 = vsel %vm221, %v408, %v412
        %v415 = vshrl.u32 %v186, 16
        %v417 = vrot.slane %v415, 4
        %v418 = vshll.u32 %v186, 16
        %v420 = vrot.slane %v418, 5
        %v421 = vor.u32 %v417, %v420
        %v422 = vrot.slane %v421, 4
        %v424 = vshll.u32 %v187, 16
        %v426 = vrot.slane %v424, 5
        %v427 = vsel %vm221, %v422, %v426
        %v428 = vshrl.u32 %v187, 16
        %v430 = vrot.slane %v428, 4
        %v431 = vor.u32 %v430, %v426
        %v432 = vrot.slane %v431, 4
        %v434 = vshll.u32 %v211, 16
        %v436 = vrot.slane %v434, 5
        %v437 = vsel %vm221, %v432, %v436
        %v439 = vshrl.u32 %v188, 16
        %v441 = vrot.slane %v439, 4
        %v442 = vshll.u32 %v188, 16
        %v444 = vrot.slane %v442, 5
        %v445 = vor.u32 %v441, %v444
        %v446 = vrot.slane %v445, 4
        %v448 = vshll.u32 %v189, 16
        %v450 = vrot.slane %v448, 5
        %v451 = vsel %vm221, %v446, %v450
        %v452 = vshrl.u32 %v189, 16
        %v454 = vrot.slane %v452, 4
        %v455 = vor.u32 %v454, %v450
        %v456 = vrot.slane %v455, 4
        %v458 = vshll.u32 %v212, 16
        %v460 = vrot.slane %v458, 5
        %v461 = vsel %vm221, %v456, %v460
        %v463 = vshrl.u32 %v190, 16
        %v465 = vrot.slane %v463, 4
        %v466 = vshll.u32 %v190, 16
        %v468 = vrot.slane %v466, 5
        %v469 = vor.u32 %v465, %v468
        %v470 = vrot.slane %v469, 4
        %v472 = vshll.u32 %v191, 16
        %v474 = vrot.slane %v472, 5
        %v475 = vsel %vm221, %v470, %v474
        %v476 = vshrl.u32 %v191, 16
        %v478 = vrot.slane %v476, 4
        %v479 = vor.u32 %v478, %v474
        %v480 = vrot.slane %v479, 4
        %v482 = vshll.u32 %v213, 16
        %v484 = vrot.slane %v482, 5
        %v485 = vsel %vm221, %v480, %v484
        %v487 = vshrl.u32 %v192, 16
        %v489 = vrot.slane %v487, 4
        %v490 = vshll.u32 %v192, 16
        %v492 = vrot.slane %v490, 5
        %v493 = vor.u32 %v489, %v492
        %v494 = vrot.slane %v493, 4
        %v496 = vshll.u32 %v193, 16
        %v498 = vrot.slane %v496, 5
        %v499 = vsel %vm221, %v494, %v498
        %v500 = vshrl.u32 %v193, 16
        %v502 = vrot.slane %v500, 4
        %v503 = vor.u32 %v502, %v498
        %v504 = vrot.slane %v503, 4
        %v506 = vshll.u32 %v214, 16
        %v508 = vrot.slane %v506, 5
        %v509 = vsel %vm221, %v504, %v508
        %v511 = vshrl.u32 %v194, 16
        %v513 = vrot.slane %v511, 4
        %v514 = vshll.u32 %v194, 16
        %v516 = vrot.slane %v514, 5
        %v517 = vor.u32 %v513, %v516
        %v518 = vrot.slane %v517, 4
        %v520 = vshll.u32 %v195, 16
        %v522 = vrot.slane %v520, 5
        %v523 = vsel %vm221, %v518, %v522
        %v524 = vshrl.u32 %v195, 16
        %v526 = vrot.slane %v524, 4
        %v527 = vor.u32 %v526, %v522
        %v528 = vrot.slane %v527, 4
        %v530 = vshll.u32 %v215, 16
        %v532 = vrot.slane %v530, 5
        %v533 = vsel %vm221, %v528, %v532
        %v535 = vshrl.u32 %v196, 16
        %v537 = vrot.slane %v535, 4
        %v538 = vshll.u32 %v196, 16
        %v540 = vrot.slane %v538, 5
        %v541 = vor.u32 %v537, %v540
        %v542 = vrot.slane %v541, 4
        %v544 = vshll.u32 %v197, 16
        %v546 = vrot.slane %v544, 5
        %v547 = vsel %vm221, %v542, %v546
        %v548 = vshrl.u32 %v197, 16
        %v550 = vrot.slane %v548, 4
        %v551 = vor.u32 %v550, %v546
        %v552 = vrot.slane %v551, 4
        %v554 = vshll.u32 %v216, 16
        %v556 = vrot.slane %v554, 5
        %v557 = vsel %vm221, %v552, %v556
        %v559 = vshrl.u32 %v198, 16
        %v561 = vrot.slane %v559, 4
        %v562 = vshll.u32 %v198, 16
        %v564 = vrot.slane %v562, 5
        %v565 = vor.u32 %v561, %v564
        %v566 = vrot.slane %v565, 4
        %v568 = vshll.u32 %v199, 16
        %v570 = vrot.slane %v568, 5
        %v571 = vsel %vm221, %v566, %v570
        %v572 = vshrl.u32 %v199, 16
        %v574 = vrot.slane %v572, 4
        %v575 = vor.u32 %v574, %v570
        %v576 = vrot.slane %v575, 4
        %v578 = vshll.u32 %v217, 16
        %v580 = vrot.slane %v578, 5
        %v581 = vsel %vm221, %v576, %v580
        %v583 = vshrl.u32 %v200, 16
        %v585 = vrot.slane %v583, 4
        %v586 = vshll.u32 %v200, 16
        %v588 = vrot.slane %v586, 5
        %v589 = vor.u32 %v585, %v588
        %v590 = vrot.slane %v589, 4
        %v592 = vshll.u32 %v201, 16
        %v594 = vrot.slane %v592, 5
        %v595 = vsel %vm221, %v590, %v594
        %v596 = vshrl.u32 %v201, 16
        %v598 = vrot.slane %v596, 4
        %v599 = vor.u32 %v598, %v594
        %v600 = vrot.slane %v599, 4
        %v602 = vshll.u32 %v218, 16
        %v604 = vrot.slane %v602, 5
        %v605 = vsel %vm221, %v600, %v604
        %s606 = scalar_lea.vmem %s1, 2
        %v607 = vld [vmem:[%s606] sm:$0x3]
        %v608 = vunpack.c.l.b16 %v235
        %v609 = vunpack.c.l.b16 %v245
        %v610 = vunpack.c.l.b16 %v259
        %v611 = vunpack.c.l.b16 %v269
        %v612 = vunpack.c.l.b16 %v283
        %v613 = vunpack.c.l.b16 %v293
        %v614 = vunpack.c.l.b16 %v307
        %v615 = vunpack.c.l.b16 %v317
        %v616 = vunpack.c.l.b16 %v331
        %v617 = vunpack.c.l.b16 %v341
        %v618 = vunpack.c.l.b16 %v355
        %v619 = vunpack.c.l.b16 %v365
        %v620 = vunpack.c.l.b16 %v379
        %v621 = vunpack.c.l.b16 %v389
        %v622 = vunpack.c.l.b16 %v403
        %v623 = vunpack.c.l.b16 %v413
        %v624 = vunpack.c.l.b16 %v427
        %v625 = vunpack.c.l.b16 %v437
        %v626 = vunpack.c.l.b16 %v451
        %v627 = vunpack.c.l.b16 %v461
        %v628 = vunpack.c.l.b16 %v475
        %v629 = vunpack.c.l.b16 %v485
        %v630 = vunpack.c.l.b16 %v499
        %v631 = vunpack.c.l.b16 %v509
        %v632 = vunpack.c.l.b16 %v523
        %v633 = vunpack.c.l.b16 %v533
        %v634 = vunpack.c.l.b16 %v547
        %v635 = vunpack.c.l.b16 %v557
        %v636 = vunpack.c.l.b16 %v571
        %v637 = vunpack.c.l.b16 %v581
        %v638 = vunpack.c.l.b16 %v595
        %v639 = vunpack.c.l.b16 %v605
        %v640 = vpack.c.b16 %v609, %v608
        %v641 = vpack.c.b16 %v611, %v610
        %v642 = vpack.c.b16 %v613, %v612
        %v643 = vpack.c.b16 %v615, %v614
        %v644 = vpack.c.b16 %v617, %v616
        %v645 = vpack.c.b16 %v619, %v618
        %v646 = vpack.c.b16 %v621, %v620
        %v647 = vpack.c.b16 %v623, %v622
        %v648 = vpack.c.b16 %v625, %v624
        %v649 = vpack.c.b16 %v627, %v626
        %v650 = vpack.c.b16 %v629, %v628
        %v651 = vpack.c.b16 %v631, %v630
        %v652 = vpack.c.b16 %v633, %v632
        %v653 = vpack.c.b16 %v635, %v634
        %v654 = vpack.c.b16 %v637, %v636
        %v655 = vpack.c.b16 %v639, %v638
        %vm656 = vcmask 23552
        %v658 = vsel %vm656, %v640, 0
        %v661 = vsel %vm656, %v641, 0
        %v664 = vsel %vm656, %v642, 0
        %v667 = vsel %vm656, %v643, 0
        %v670 = vsel %vm656, %v644, 0
        %v673 = vsel %vm656, %v645, 0
        %v676 = vsel %vm656, %v646, 0
        %v679 = vsel %vm656, %v647, 0
        %v682 = vsel %vm656, %v648, 0
        %v685 = vsel %vm656, %v649, 0
        %v688 = vsel %vm656, %v650, 0
        %v691 = vsel %vm656, %v651, 0
        %v694 = vsel %vm656, %v652, 0
        %v697 = vsel %vm656, %v653, 0
        %v700 = vsel %vm656, %v654, 0
        %v703 = vsel %vm656, %v655, 0
        %vm705 = vcmask 1040384
        %vm706 = vcmask 1041408
        %v707 = vsel %vm705, 4294967295, 65535
        %v708 = vsel %vm706, %v707, 0
        %v710 = vand.u32 %v607, %v708
        %712 = vmatpush.bf16.msra.mxu0 0
        %713 = vmatpush.bf16.msra.mxu0 0
        %714 = vmatpush.bf16.msra.mxu0 0
        %715 = vmatpush.bf16.msra.mxu0 0
        %716 = vmatpush.bf16.msra.mxu0 0
        %717 = vmatpush.bf16.msra.mxu0 0
        %718 = vmatpush.bf16.msra.mxu0 0
        %719 = vmatpush.bf16.msra.mxu0 %v710
        %720 = vmatmul.bf16.gmra.mxu0 %v658
        %v721 = vpop.f32.mrf.mxu0
        %v722 = vadd.f32 0.0, %v721
        %v723 = vpop.f32.mrf.mxu0
        %v724 = vadd.f32 0.0, %v723
        %725 = vmatmul.bf16.gmra.mxu0 %v661
        %v726 = vpop.f32.mrf.mxu0
        %v727 = vadd.f32 0.0, %v726
        %v728 = vpop.f32.mrf.mxu0
        %v729 = vadd.f32 0.0, %v728
        %730 = vmatmul.bf16.gmra.mxu0 %v664
        %v731 = vpop.f32.mrf.mxu0
        %v732 = vadd.f32 0.0, %v731
        %v733 = vpop.f32.mrf.mxu0
        %v734 = vadd.f32 0.0, %v733
        %735 = vmatmul.bf16.gmra.mxu0 %v667
        %v736 = vpop.f32.mrf.mxu0
        %v737 = vadd.f32 0.0, %v736
        %v738 = vpop.f32.mrf.mxu0
        %v739 = vadd.f32 0.0, %v738
        %740 = vmatmul.bf16.gmra.mxu0 %v670
        %v741 = vpop.f32.mrf.mxu0
        %v742 = vadd.f32 0.0, %v741
        %v743 = vpop.f32.mrf.mxu0
        %v744 = vadd.f32 0.0, %v743
        %745 = vmatmul.bf16.gmra.mxu0 %v673
        %v746 = vpop.f32.mrf.mxu0
        %v747 = vadd.f32 0.0, %v746
        %v748 = vpop.f32.mrf.mxu0
        %v749 = vadd.f32 0.0, %v748
        %750 = vmatmul.bf16.gmra.mxu0 %v676
        %v751 = vpop.f32.mrf.mxu0
        %v752 = vadd.f32 0.0, %v751
        %v753 = vpop.f32.mrf.mxu0
        %v754 = vadd.f32 0.0, %v753
        %755 = vmatmul.bf16.gmra.mxu0 %v679
        %v756 = vpop.f32.mrf.mxu0
        %v757 = vadd.f32 0.0, %v756
        %v758 = vpop.f32.mrf.mxu0
        %v759 = vadd.f32 0.0, %v758
        %760 = vmatmul.bf16.gmra.mxu0 %v682
        %v761 = vpop.f32.mrf.mxu0
        %v762 = vadd.f32 0.0, %v761
        %v763 = vpop.f32.mrf.mxu0
        %v764 = vadd.f32 0.0, %v763
        %765 = vmatmul.bf16.gmra.mxu0 %v685
        %v766 = vpop.f32.mrf.mxu0
        %v767 = vadd.f32 0.0, %v766
        %v768 = vpop.f32.mrf.mxu0
        %v769 = vadd.f32 0.0, %v768
        %770 = vmatmul.bf16.gmra.mxu0 %v688
        %v771 = vpop.f32.mrf.mxu0
        %v772 = vadd.f32 0.0, %v771
        %v773 = vpop.f32.mrf.mxu0
        %v774 = vadd.f32 0.0, %v773
        %775 = vmatmul.bf16.gmra.mxu0 %v691
        %v776 = vpop.f32.mrf.mxu0
        %v777 = vadd.f32 0.0, %v776
        %v778 = vpop.f32.mrf.mxu0
        %v779 = vadd.f32 0.0, %v778
        %780 = vmatmul.bf16.gmra.mxu0 %v694
        %v781 = vpop.f32.mrf.mxu0
        %v782 = vadd.f32 0.0, %v781
        %v783 = vpop.f32.mrf.mxu0
        %v784 = vadd.f32 0.0, %v783
        %785 = vmatmul.bf16.gmra.mxu0 %v697
        %v786 = vpop.f32.mrf.mxu0
        %v787 = vadd.f32 0.0, %v786
        %v788 = vpop.f32.mrf.mxu0
        %v789 = vadd.f32 0.0, %v788
        %790 = vmatmul.bf16.gmra.mxu0 %v700
        %v791 = vpop.f32.mrf.mxu0
        %v792 = vadd.f32 0.0, %v791
        %v793 = vpop.f32.mrf.mxu0
        %v794 = vadd.f32 0.0, %v793
        %795 = vmatmul.bf16.gmra.mxu0 %v703
        %v796 = vpop.f32.mrf.mxu0
        %v797 = vadd.f32 0.0, %v796
        %v798 = vpop.f32.mrf.mxu0
        %v799 = vadd.f32 0.0, %v798
        %800 = vdwg.mxu0
        %v833 = vunpack.c.l.b16 %v170
        %v834 = vunpack.c.l.b16 %v171
        %v835 = vunpack.c.l.b16 %v172
        %v836 = vunpack.c.l.b16 %v173
        %v837 = vunpack.c.l.b16 %v174
        %v838 = vunpack.c.l.b16 %v175
        %v839 = vunpack.c.l.b16 %v176
        %v840 = vunpack.c.l.b16 %v177
        %v841 = vunpack.c.l.b16 %v178
        %v842 = vunpack.c.l.b16 %v179
        %v843 = vunpack.c.l.b16 %v180
        %v844 = vunpack.c.l.b16 %v181
        %v845 = vunpack.c.l.b16 %v182
        %v846 = vunpack.c.l.b16 %v183
        %v847 = vunpack.c.l.b16 %v184
        %v848 = vunpack.c.l.b16 %v185
        %v849 = vunpack.c.l.b16 %v186
        %v850 = vunpack.c.l.b16 %v187
        %v851 = vunpack.c.l.b16 %v188
        %v852 = vunpack.c.l.b16 %v189
        %v853 = vunpack.c.l.b16 %v190
        %v854 = vunpack.c.l.b16 %v191
        %v855 = vunpack.c.l.b16 %v192
        %v856 = vunpack.c.l.b16 %v193
        %v857 = vunpack.c.l.b16 %v194
        %v858 = vunpack.c.l.b16 %v195
        %v859 = vunpack.c.l.b16 %v196
        %v860 = vunpack.c.l.b16 %v197
        %v861 = vunpack.c.l.b16 %v198
        %v862 = vunpack.c.l.b16 %v199
        %v863 = vunpack.c.l.b16 %v200
        %v864 = vunpack.c.l.b16 %v201
        %v865 = vpack.c.b16 %v834, %v833
        %v866 = vpack.c.b16 %v836, %v835
        %v867 = vpack.c.b16 %v838, %v837
        %v868 = vpack.c.b16 %v840, %v839
        %v869 = vpack.c.b16 %v842, %v841
        %v870 = vpack.c.b16 %v844, %v843
        %v871 = vpack.c.b16 %v846, %v845
        %v872 = vpack.c.b16 %v848, %v847
        %v873 = vpack.c.b16 %v850, %v849
        %v874 = vpack.c.b16 %v852, %v851
        %v875 = vpack.c.b16 %v854, %v853
        %v876 = vpack.c.b16 %v856, %v855
        %v877 = vpack.c.b16 %v858, %v857
        %v878 = vpack.c.b16 %v860, %v859
        %v879 = vpack.c.b16 %v862, %v861
        %v880 = vpack.c.b16 %v864, %v863
        %v882 = vsel %vm656, %v865, 0
        %v885 = vsel %vm656, %v866, 0
        %v888 = vsel %vm656, %v867, 0
        %v891 = vsel %vm656, %v868, 0
        %v894 = vsel %vm656, %v869, 0
        %v897 = vsel %vm656, %v870, 0
        %v900 = vsel %vm656, %v871, 0
        %v903 = vsel %vm656, %v872, 0
        %v906 = vsel %vm656, %v873, 0
        %v909 = vsel %vm656, %v874, 0
        %v912 = vsel %vm656, %v875, 0
        %v915 = vsel %vm656, %v876, 0
        %v918 = vsel %vm656, %v877, 0
        %v921 = vsel %vm656, %v878, 0
        %v924 = vsel %vm656, %v879, 0
        %v927 = vsel %vm656, %v880, 0
        %v930 = vand.u32 %v202, %v708
        %932 = vmatpush.bf16.msra.mxu0 0
        %933 = vmatpush.bf16.msra.mxu0 0
        %934 = vmatpush.bf16.msra.mxu0 0
        %935 = vmatpush.bf16.msra.mxu0 0
        %936 = vmatpush.bf16.msra.mxu0 0
        %937 = vmatpush.bf16.msra.mxu0 0
        %938 = vmatpush.bf16.msra.mxu0 0
        %939 = vmatpush.bf16.msra.mxu0 %v930
        %940 = vmatmul.bf16.gmra.mxu0 %v882
        %v941 = vpop.f32.mrf.mxu0
        %v942 = vadd.f32 %v722, %v941
        %v943 = vpop.f32.mrf.mxu0
        %v944 = vadd.f32 %v724, %v943
        %945 = vmatmul.bf16.gmra.mxu0 %v885
        %v946 = vpop.f32.mrf.mxu0
        %v947 = vadd.f32 %v727, %v946
        %v948 = vpop.f32.mrf.mxu0
        %v949 = vadd.f32 %v729, %v948
        %950 = vmatmul.bf16.gmra.mxu0 %v888
        %v951 = vpop.f32.mrf.mxu0
        %v952 = vadd.f32 %v732, %v951
        %v953 = vpop.f32.mrf.mxu0
        %v954 = vadd.f32 %v734, %v953
        %955 = vmatmul.bf16.gmra.mxu0 %v891
        %v956 = vpop.f32.mrf.mxu0
        %v957 = vadd.f32 %v737, %v956
        %v958 = vpop.f32.mrf.mxu0
        %v959 = vadd.f32 %v739, %v958
        %960 = vmatmul.bf16.gmra.mxu0 %v894
        %v961 = vpop.f32.mrf.mxu0
        %v962 = vadd.f32 %v742, %v961
        %v963 = vpop.f32.mrf.mxu0
        %v964 = vadd.f32 %v744, %v963
        %965 = vmatmul.bf16.gmra.mxu0 %v897
        %v966 = vpop.f32.mrf.mxu0
        %v967 = vadd.f32 %v747, %v966
        %v968 = vpop.f32.mrf.mxu0
        %v969 = vadd.f32 %v749, %v968
        %970 = vmatmul.bf16.gmra.mxu0 %v900
        %v971 = vpop.f32.mrf.mxu0
        %v972 = vadd.f32 %v752, %v971
        %v973 = vpop.f32.mrf.mxu0
        %v974 = vadd.f32 %v754, %v973
        %975 = vmatmul.bf16.gmra.mxu0 %v903
        %v976 = vpop.f32.mrf.mxu0
        %v977 = vadd.f32 %v757, %v976
        %v978 = vpop.f32.mrf.mxu0
        %v979 = vadd.f32 %v759, %v978
        %980 = vmatmul.bf16.gmra.mxu0 %v906
        %v981 = vpop.f32.mrf.mxu0
        %v982 = vadd.f32 %v762, %v981
        %v983 = vpop.f32.mrf.mxu0
        %v984 = vadd.f32 %v764, %v983
        %985 = vmatmul.bf16.gmra.mxu0 %v909
        %v986 = vpop.f32.mrf.mxu0
        %v987 = vadd.f32 %v767, %v986
        %v988 = vpop.f32.mrf.mxu0
        %v989 = vadd.f32 %v769, %v988
        %990 = vmatmul.bf16.gmra.mxu0 %v912
        %v991 = vpop.f32.mrf.mxu0
        %v992 = vadd.f32 %v772, %v991
        %v993 = vpop.f32.mrf.mxu0
        %v994 = vadd.f32 %v774, %v993
        %995 = vmatmul.bf16.gmra.mxu0 %v915
        %v996 = vpop.f32.mrf.mxu0
        %v997 = vadd.f32 %v777, %v996
        %v998 = vpop.f32.mrf.mxu0
        %v999 = vadd.f32 %v779, %v998
        %1000 = vmatmul.bf16.gmra.mxu0 %v918
        %v1001 = vpop.f32.mrf.mxu0
        %v1002 = vadd.f32 %v782, %v1001
        %v1003 = vpop.f32.mrf.mxu0
        %v1004 = vadd.f32 %v784, %v1003
        %1005 = vmatmul.bf16.gmra.mxu0 %v921
        %v1006 = vpop.f32.mrf.mxu0
        %v1007 = vadd.f32 %v787, %v1006
        %v1008 = vpop.f32.mrf.mxu0
        %v1009 = vadd.f32 %v789, %v1008
        %1010 = vmatmul.bf16.gmra.mxu0 %v924
        %v1011 = vpop.f32.mrf.mxu0
        %v1012 = vadd.f32 %v792, %v1011
        %v1013 = vpop.f32.mrf.mxu0
        %v1014 = vadd.f32 %v794, %v1013
        %1015 = vmatmul.bf16.gmra.mxu0 %v927
        %v1016 = vpop.f32.mrf.mxu0
        %v1017 = vadd.f32 %v797, %v1016
        %v1018 = vpop.f32.mrf.mxu0
        %v1019 = vadd.f32 %v799, %v1018
        %1020 = vdwg.mxu0
        %v1021 = vld [vmem:[%s168] sm:$0xe]
        %v1022 = vld [vmem:[%s168 + $0xc] sm:$0xe]
        %v1023 = vld [vmem:[%s168 + $0x18] sm:$0xe]
        %v1024 = vld [vmem:[%s168 + $0x24] sm:$0xe]
        %v1025 = vld [vmem:[%s168 + $0x30] sm:$0xe]
        %v1026 = vld [vmem:[%s168 + $0x3c] sm:$0xe]
        %v1027 = vld [vmem:[%s168 + $0x48] sm:$0xe]
        %v1028 = vld [vmem:[%s168 + $0x54] sm:$0xe]
        %v1029 = vld [vmem:[%s168 + $0x60] sm:$0xe]
        %v1030 = vld [vmem:[%s168 + $0x6c] sm:$0xe]
        %v1031 = vld [vmem:[%s168 + $0x78] sm:$0xe]
        %v1032 = vld [vmem:[%s168 + $0x84] sm:$0xe]
        %v1033 = vld [vmem:[%s168 + $0x90] sm:$0xe]
        %v1034 = vld [vmem:[%s168 + $0x9c] sm:$0xe]
        %v1035 = vld [vmem:[%s168 + $0xa8] sm:$0xe]
        %v1036 = vld [vmem:[%s168 + $0xb4] sm:$0xe]
        %vm1069 = vcmask 1042432
        %vm1070 = vcmask 1046532
        %vm1071 = vmor %vm1069, %vm1070
        %v1072 = vrot.slane %v1021, 5
        %v1073 = vrot.slane %v1072, 4
        %v1074 = vrot.slane %v171, 5
        %v1075 = vsel %vm1071, %v1073, %v1074
        %v1076 = vrot.slane %v1074, 4
        %v1077 = vrot.slane %v203, 5
        %v1078 = vsel %vm1071, %v1076, %v1077
        %v1079 = vrot.slane %v1022, 5
        %v1080 = vrot.slane %v1079, 4
        %v1081 = vrot.slane %v173, 5
        %v1082 = vsel %vm1071, %v1080, %v1081
        %v1083 = vrot.slane %v1081, 4
        %v1084 = vrot.slane %v204, 5
        %v1085 = vsel %vm1071, %v1083, %v1084
        %v1086 = vrot.slane %v1023, 5
        %v1087 = vrot.slane %v1086, 4
        %v1088 = vrot.slane %v175, 5
        %v1089 = vsel %vm1071, %v1087, %v1088
        %v1090 = vrot.slane %v1088, 4
        %v1091 = vrot.slane %v205, 5
        %v1092 = vsel %vm1071, %v1090, %v1091
        %v1093 = vrot.slane %v1024, 5
        %v1094 = vrot.slane %v1093, 4
        %v1095 = vrot.slane %v177, 5
        %v1096 = vsel %vm1071, %v1094, %v1095
        %v1097 = vrot.slane %v1095, 4
        %v1098 = vrot.slane %v206, 5
        %v1099 = vsel %vm1071, %v1097, %v1098
        %v1100 = vrot.slane %v1025, 5
        %v1101 = vrot.slane %v1100, 4
        %v1102 = vrot.slane %v179, 5
        %v1103 = vsel %vm1071, %v1101, %v1102
        %v1104 = vrot.slane %v1102, 4
        %v1105 = vrot.slane %v207, 5
        %v1106 = vsel %vm1071, %v1104, %v1105
        %v1107 = vrot.slane %v1026, 5
        %v1108 = vrot.slane %v1107, 4
        %v1109 = vrot.slane %v181, 5
        %v1110 = vsel %vm1071, %v1108, %v1109
        %v1111 = vrot.slane %v1109, 4
        %v1112 = vrot.slane %v208, 5
        %v1113 = vsel %vm1071, %v1111, %v1112
        %v1114 = vrot.slane %v1027, 5
        %v1115 = vrot.slane %v1114, 4
        %v1116 = vrot.slane %v183, 5
        %v1117 = vsel %vm1071, %v1115, %v1116
        %v1118 = vrot.slane %v1116, 4
        %v1119 = vrot.slane %v209, 5
        %v1120 = vsel %vm1071, %v1118, %v1119
        %v1121 = vrot.slane %v1028, 5
        %v1122 = vrot.slane %v1121, 4
        %v1123 = vrot.slane %v185, 5
        %v1124 = vsel %vm1071, %v1122, %v1123
        %v1125 = vrot.slane %v1123, 4
        %v1126 = vrot.slane %v210, 5
        %v1127 = vsel %vm1071, %v1125, %v1126
        %v1128 = vrot.slane %v1029, 5
        %v1129 = vrot.slane %v1128, 4
        %v1130 = vrot.slane %v187, 5
        %v1131 = vsel %vm1071, %v1129, %v1130
        %v1132 = vrot.slane %v1130, 4
        %v1133 = vrot.slane %v211, 5
        %v1134 = vsel %vm1071, %v1132, %v1133
        %v1135 = vrot.slane %v1030, 5
        %v1136 = vrot.slane %v1135, 4
        %v1137 = vrot.slane %v189, 5
        %v1138 = vsel %vm1071, %v1136, %v1137
        %v1139 = vrot.slane %v1137, 4
        %v1140 = vrot.slane %v212, 5
        %v1141 = vsel %vm1071, %v1139, %v1140
        %v1142 = vrot.slane %v1031, 5
        %v1143 = vrot.slane %v1142, 4
        %v1144 = vrot.slane %v191, 5
        %v1145 = vsel %vm1071, %v1143, %v1144
        %v1146 = vrot.slane %v1144, 4
        %v1147 = vrot.slane %v213, 5
        %v1148 = vsel %vm1071, %v1146, %v1147
        %v1149 = vrot.slane %v1032, 5
        %v1150 = vrot.slane %v1149, 4
        %v1151 = vrot.slane %v193, 5
        %v1152 = vsel %vm1071, %v1150, %v1151
        %v1153 = vrot.slane %v1151, 4
        %v1154 = vrot.slane %v214, 5
        %v1155 = vsel %vm1071, %v1153, %v1154
        %v1156 = vrot.slane %v1033, 5
        %v1157 = vrot.slane %v1156, 4
        %v1158 = vrot.slane %v195, 5
        %v1159 = vsel %vm1071, %v1157, %v1158
        %v1160 = vrot.slane %v1158, 4
        %v1161 = vrot.slane %v215, 5
        %v1162 = vsel %vm1071, %v1160, %v1161
        %v1163 = vrot.slane %v1034, 5
        %v1164 = vrot.slane %v1163, 4
        %v1165 = vrot.slane %v197, 5
        %v1166 = vsel %vm1071, %v1164, %v1165
        %v1167 = vrot.slane %v1165, 4
        %v1168 = vrot.slane %v216, 5
        %v1169 = vsel %vm1071, %v1167, %v1168
        %v1170 = vrot.slane %v1035, 5
        %v1171 = vrot.slane %v1170, 4
        %v1172 = vrot.slane %v199, 5
        %v1173 = vsel %vm1071, %v1171, %v1172
        %v1174 = vrot.slane %v1172, 4
        %v1175 = vrot.slane %v217, 5
        %v1176 = vsel %vm1071, %v1174, %v1175
        %v1177 = vrot.slane %v1036, 5
        %v1178 = vrot.slane %v1177, 4
        %v1179 = vrot.slane %v201, 5
        %v1180 = vsel %vm1071, %v1178, %v1179
        %v1181 = vrot.slane %v1179, 4
        %v1182 = vrot.slane %v218, 5
        %v1183 = vsel %vm1071, %v1181, %v1182
        %s1184 = scalar_lea.vmem %s1, 4
        %v1185 = vld [vmem:[%s1184] sm:$0x3]
        %v1186 = vunpack.c.l.b16 %v1075
        %v1187 = vunpack.c.l.b16 %v1078
        %v1188 = vunpack.c.l.b16 %v1082
        %v1189 = vunpack.c.l.b16 %v1085
        %v1190 = vunpack.c.l.b16 %v1089
        %v1191 = vunpack.c.l.b16 %v1092
        %v1192 = vunpack.c.l.b16 %v1096
        %v1193 = vunpack.c.l.b16 %v1099
        %v1194 = vunpack.c.l.b16 %v1103
        %v1195 = vunpack.c.l.b16 %v1106
        %v1196 = vunpack.c.l.b16 %v1110
        %v1197 = vunpack.c.l.b16 %v1113
        %v1198 = vunpack.c.l.b16 %v1117
        %v1199 = vunpack.c.l.b16 %v1120
        %v1200 = vunpack.c.l.b16 %v1124
        %v1201 = vunpack.c.l.b16 %v1127
        %v1202 = vunpack.c.l.b16 %v1131
        %v1203 = vunpack.c.l.b16 %v1134
        %v1204 = vunpack.c.l.b16 %v1138
        %v1205 = vunpack.c.l.b16 %v1141
        %v1206 = vunpack.c.l.b16 %v1145
        %v1207 = vunpack.c.l.b16 %v1148
        %v1208 = vunpack.c.l.b16 %v1152
        %v1209 = vunpack.c.l.b16 %v1155
        %v1210 = vunpack.c.l.b16 %v1159
        %v1211 = vunpack.c.l.b16 %v1162
        %v1212 = vunpack.c.l.b16 %v1166
        %v1213 = vunpack.c.l.b16 %v1169
        %v1214 = vunpack.c.l.b16 %v1173
        %v1215 = vunpack.c.l.b16 %v1176
        %v1216 = vunpack.c.l.b16 %v1180
        %v1217 = vunpack.c.l.b16 %v1183
        %v1218 = vpack.c.b16 %v1187, %v1186
        %v1219 = vpack.c.b16 %v1189, %v1188
        %v1220 = vpack.c.b16 %v1191, %v1190
        %v1221 = vpack.c.b16 %v1193, %v1192
        %v1222 = vpack.c.b16 %v1195, %v1194
        %v1223 = vpack.c.b16 %v1197, %v1196
        %v1224 = vpack.c.b16 %v1199, %v1198
        %v1225 = vpack.c.b16 %v1201, %v1200
        %v1226 = vpack.c.b16 %v1203, %v1202
        %v1227 = vpack.c.b16 %v1205, %v1204
        %v1228 = vpack.c.b16 %v1207, %v1206
        %v1229 = vpack.c.b16 %v1209, %v1208
        %v1230 = vpack.c.b16 %v1211, %v1210
        %v1231 = vpack.c.b16 %v1213, %v1212
        %v1232 = vpack.c.b16 %v1215, %v1214
        %v1233 = vpack.c.b16 %v1217, %v1216
        %v1235 = vsel %vm656, %v1218, 0
        %v1238 = vsel %vm656, %v1219, 0
        %v1241 = vsel %vm656, %v1220, 0
        %v1244 = vsel %vm656, %v1221, 0
        %v1247 = vsel %vm656, %v1222, 0
        %v1250 = vsel %vm656, %v1223, 0
        %v1253 = vsel %vm656, %v1224, 0
        %v1256 = vsel %vm656, %v1225, 0
        %v1259 = vsel %vm656, %v1226, 0
        %v1262 = vsel %vm656, %v1227, 0
        %v1265 = vsel %vm656, %v1228, 0
        %v1268 = vsel %vm656, %v1229, 0
        %v1271 = vsel %vm656, %v1230, 0
        %v1274 = vsel %vm656, %v1231, 0
        %v1277 = vsel %vm656, %v1232, 0
        %v1280 = vsel %vm656, %v1233, 0
        %v1283 = vand.u32 %v1185, %v708
        %1285 = vmatpush.bf16.msra.mxu0 0
        %1286 = vmatpush.bf16.msra.mxu0 0
        %1287 = vmatpush.bf16.msra.mxu0 0
        %1288 = vmatpush.bf16.msra.mxu0 0
        %1289 = vmatpush.bf16.msra.mxu0 0
        %1290 = vmatpush.bf16.msra.mxu0 0
        %1291 = vmatpush.bf16.msra.mxu0 0
        %1292 = vmatpush.bf16.msra.mxu0 %v1283
        %1293 = vmatmul.bf16.gmra.mxu0 %v1235
        %v1294 = vpop.f32.mrf.mxu0
        %v1295 = vadd.f32 0.0, %v1294
        %v1296 = vpop.f32.mrf.mxu0
        %v1297 = vadd.f32 0.0, %v1296
        %1298 = vmatmul.bf16.gmra.mxu0 %v1238
        %v1299 = vpop.f32.mrf.mxu0
        %v1300 = vadd.f32 0.0, %v1299
        %v1301 = vpop.f32.mrf.mxu0
        %v1302 = vadd.f32 0.0, %v1301
        %1303 = vmatmul.bf16.gmra.mxu0 %v1241
        %v1304 = vpop.f32.mrf.mxu0
        %v1305 = vadd.f32 0.0, %v1304
        %v1306 = vpop.f32.mrf.mxu0
        %v1307 = vadd.f32 0.0, %v1306
        %1308 = vmatmul.bf16.gmra.mxu0 %v1244
        %v1309 = vpop.f32.mrf.mxu0
        %v1310 = vadd.f32 0.0, %v1309
        %v1311 = vpop.f32.mrf.mxu0
        %v1312 = vadd.f32 0.0, %v1311
        %1313 = vmatmul.bf16.gmra.mxu0 %v1247
        %v1314 = vpop.f32.mrf.mxu0
        %v1315 = vadd.f32 0.0, %v1314
        %v1316 = vpop.f32.mrf.mxu0
        %v1317 = vadd.f32 0.0, %v1316
        %1318 = vmatmul.bf16.gmra.mxu0 %v1250
        %v1319 = vpop.f32.mrf.mxu0
        %v1320 = vadd.f32 0.0, %v1319
        %v1321 = vpop.f32.mrf.mxu0
        %v1322 = vadd.f32 0.0, %v1321
        %1323 = vmatmul.bf16.gmra.mxu0 %v1253
        %v1324 = vpop.f32.mrf.mxu0
        %v1325 = vadd.f32 0.0, %v1324
        %v1326 = vpop.f32.mrf.mxu0
        %v1327 = vadd.f32 0.0, %v1326
        %1328 = vmatmul.bf16.gmra.mxu0 %v1256
        %v1329 = vpop.f32.mrf.mxu0
        %v1330 = vadd.f32 0.0, %v1329
        %v1331 = vpop.f32.mrf.mxu0
        %v1332 = vadd.f32 0.0, %v1331
        %1333 = vmatmul.bf16.gmra.mxu0 %v1259
        %v1334 = vpop.f32.mrf.mxu0
        %v1335 = vadd.f32 0.0, %v1334
        %v1336 = vpop.f32.mrf.mxu0
        %v1337 = vadd.f32 0.0, %v1336
        %1338 = vmatmul.bf16.gmra.mxu0 %v1262
        %v1339 = vpop.f32.mrf.mxu0
        %v1340 = vadd.f32 0.0, %v1339
        %v1341 = vpop.f32.mrf.mxu0
        %v1342 = vadd.f32 0.0, %v1341
        %1343 = vmatmul.bf16.gmra.mxu0 %v1265
        %v1344 = vpop.f32.mrf.mxu0
        %v1345 = vadd.f32 0.0, %v1344
        %v1346 = vpop.f32.mrf.mxu0
        %v1347 = vadd.f32 0.0, %v1346
        %1348 = vmatmul.bf16.gmra.mxu0 %v1268
        %v1349 = vpop.f32.mrf.mxu0
        %v1350 = vadd.f32 0.0, %v1349
        %v1351 = vpop.f32.mrf.mxu0
        %v1352 = vadd.f32 0.0, %v1351
        %1353 = vmatmul.bf16.gmra.mxu0 %v1271
        %v1354 = vpop.f32.mrf.mxu0
        %v1355 = vadd.f32 0.0, %v1354
        %v1356 = vpop.f32.mrf.mxu0
        %v1357 = vadd.f32 0.0, %v1356
        %1358 = vmatmul.bf16.gmra.mxu0 %v1274
        %v1359 = vpop.f32.mrf.mxu0
        %v1360 = vadd.f32 0.0, %v1359
        %v1361 = vpop.f32.mrf.mxu0
        %v1362 = vadd.f32 0.0, %v1361
        %1363 = vmatmul.bf16.gmra.mxu0 %v1277
        %v1364 = vpop.f32.mrf.mxu0
        %v1365 = vadd.f32 0.0, %v1364
        %v1366 = vpop.f32.mrf.mxu0
        %v1367 = vadd.f32 0.0, %v1366
        %1368 = vmatmul.bf16.gmra.mxu0 %v1280
        %v1369 = vpop.f32.mrf.mxu0
        %v1370 = vadd.f32 0.0, %v1369
        %v1371 = vpop.f32.mrf.mxu0
        %v1372 = vadd.f32 0.0, %v1371
        %1373 = vdwg.mxu0
        %v1374 = vadd.f32 %v942, %v1295
        %v1375 = vadd.f32 %v944, %v1297
        %v1376 = vadd.f32 %v947, %v1300
        %v1377 = vadd.f32 %v949, %v1302
        %v1378 = vadd.f32 %v952, %v1305
        %v1379 = vadd.f32 %v954, %v1307
        %v1380 = vadd.f32 %v957, %v1310
        %v1381 = vadd.f32 %v959, %v1312
        %v1382 = vadd.f32 %v962, %v1315
        %v1383 = vadd.f32 %v964, %v1317
        %v1384 = vadd.f32 %v967, %v1320
        %v1385 = vadd.f32 %v969, %v1322
        %v1386 = vadd.f32 %v972, %v1325
        %v1387 = vadd.f32 %v974, %v1327
        %v1388 = vadd.f32 %v977, %v1330
        %v1389 = vadd.f32 %v979, %v1332
        %v1390 = vadd.f32 %v982, %v1335
        %v1391 = vadd.f32 %v984, %v1337
        %v1392 = vadd.f32 %v987, %v1340
        %v1393 = vadd.f32 %v989, %v1342
        %v1394 = vadd.f32 %v992, %v1345
        %v1395 = vadd.f32 %v994, %v1347
        %v1396 = vadd.f32 %v997, %v1350
        %v1397 = vadd.f32 %v999, %v1352
        %v1398 = vadd.f32 %v1002, %v1355
        %v1399 = vadd.f32 %v1004, %v1357
        %v1400 = vadd.f32 %v1007, %v1360
        %v1401 = vadd.f32 %v1009, %v1362
        %v1402 = vadd.f32 %v1012, %v1365
        %v1403 = vadd.f32 %v1014, %v1367
        %v1404 = vadd.f32 %v1017, %v1370
        %v1405 = vadd.f32 %v1019, %v1372
        %s1406 = scalar_lea.vmem %s168, 12
        %v1407 = vld [vmem:[%s1406] sm:$0xf]
        %v1408 = vld [vmem:[%s1406 + $0x4] sm:$0xf]
        %v1409 = vld [vmem:[%s1406 + $0xc] sm:$0xf]
        %v1410 = vld [vmem:[%s1406 + $0x10] sm:$0xf]
        %v1411 = vld [vmem:[%s1406 + $0x18] sm:$0xf]
        %v1412 = vld [vmem:[%s1406 + $0x1c] sm:$0xf]
        %v1413 = vld [vmem:[%s1406 + $0x24] sm:$0xf]
        %v1414 = vld [vmem:[%s1406 + $0x28] sm:$0xf]
        %v1415 = vld [vmem:[%s1406 + $0x30] sm:$0xf]
        %v1416 = vld [vmem:[%s1406 + $0x34] sm:$0xf]
        %v1417 = vld [vmem:[%s1406 + $0x3c] sm:$0xf]
        %v1418 = vld [vmem:[%s1406 + $0x40] sm:$0xf]
        %v1419 = vld [vmem:[%s1406 + $0x48] sm:$0xf]
        %v1420 = vld [vmem:[%s1406 + $0x4c] sm:$0xf]
        %v1421 = vld [vmem:[%s1406 + $0x54] sm:$0xf]
        %v1422 = vld [vmem:[%s1406 + $0x58] sm:$0xf]
        %v1423 = vld [vmem:[%s1406 + $0x60] sm:$0xf]
        %v1424 = vld [vmem:[%s1406 + $0x64] sm:$0xf]
        %v1425 = vld [vmem:[%s1406 + $0x6c] sm:$0xf]
        %v1426 = vld [vmem:[%s1406 + $0x70] sm:$0xf]
        %v1427 = vld [vmem:[%s1406 + $0x78] sm:$0xf]
        %v1428 = vld [vmem:[%s1406 + $0x7c] sm:$0xf]
        %v1429 = vld [vmem:[%s1406 + $0x84] sm:$0xf]
        %v1430 = vld [vmem:[%s1406 + $0x88] sm:$0xf]
        %v1431 = vld [vmem:[%s1406 + $0x90] sm:$0xf]
        %v1432 = vld [vmem:[%s1406 + $0x94] sm:$0xf]
        %v1433 = vld [vmem:[%s1406 + $0x9c] sm:$0xf]
        %v1434 = vld [vmem:[%s1406 + $0xa0] sm:$0xf]
        %v1435 = vld [vmem:[%s1406 + $0xa8] sm:$0xf]
        %v1436 = vld [vmem:[%s1406 + $0xac] sm:$0xf]
        %v1437 = vld [vmem:[%s1406 + $0xb4] sm:$0xf]
        %v1438 = vld [vmem:[%s1406 + $0xb8] sm:$0xf]
        %s1439 = scalar_lea.vmem %s1, 6
        %v1440 = vld [vmem:[%s1439] sm:$0x3]
        %v1473 = vunpack.c.l.b16 %v1407
        %v1474 = vunpack.c.l.b16 %v1408
        %v1475 = vunpack.c.l.b16 %v1409
        %v1476 = vunpack.c.l.b16 %v1410
        %v1477 = vunpack.c.l.b16 %v1411
        %v1478 = vunpack.c.l.b16 %v1412
        %v1479 = vunpack.c.l.b16 %v1413
        %v1480 = vunpack.c.l.b16 %v1414
        %v1481 = vunpack.c.l.b16 %v1415
        %v1482 = vunpack.c.l.b16 %v1416
        %v1483 = vunpack.c.l.b16 %v1417
        %v1484 = vunpack.c.l.b16 %v1418
        %v1485 = vunpack.c.l.b16 %v1419
        %v1486 = vunpack.c.l.b16 %v1420
        %v1487 = vunpack.c.l.b16 %v1421
        %v1488 = vunpack.c.l.b16 %v1422
        %v1489 = vunpack.c.l.b16 %v1423
        %v1490 = vunpack.c.l.b16 %v1424
        %v1491 = vunpack.c.l.b16 %v1425
        %v1492 = vunpack.c.l.b16 %v1426
        %v1493 = vunpack.c.l.b16 %v1427
        %v1494 = vunpack.c.l.b16 %v1428
        %v1495 = vunpack.c.l.b16 %v1429
        %v1496 = vunpack.c.l.b16 %v1430
        %v1497 = vunpack.c.l.b16 %v1431
        %v1498 = vunpack.c.l.b16 %v1432
        %v1499 = vunpack.c.l.b16 %v1433
        %v1500 = vunpack.c.l.b16 %v1434
        %v1501 = vunpack.c.l.b16 %v1435
        %v1502 = vunpack.c.l.b16 %v1436
        %v1503 = vunpack.c.l.b16 %v1437
        %v1504 = vunpack.c.l.b16 %v1438
        %v1505 = vpack.c.b16 %v1474, %v1473
        %v1506 = vpack.c.b16 %v1476, %v1475
        %v1507 = vpack.c.b16 %v1478, %v1477
        %v1508 = vpack.c.b16 %v1480, %v1479
        %v1509 = vpack.c.b16 %v1482, %v1481
        %v1510 = vpack.c.b16 %v1484, %v1483
        %v1511 = vpack.c.b16 %v1486, %v1485
        %v1512 = vpack.c.b16 %v1488, %v1487
        %v1513 = vpack.c.b16 %v1490, %v1489
        %v1514 = vpack.c.b16 %v1492, %v1491
        %v1515 = vpack.c.b16 %v1494, %v1493
        %v1516 = vpack.c.b16 %v1496, %v1495
        %v1517 = vpack.c.b16 %v1498, %v1497
        %v1518 = vpack.c.b16 %v1500, %v1499
        %v1519 = vpack.c.b16 %v1502, %v1501
        %v1520 = vpack.c.b16 %v1504, %v1503
        %v1522 = vsel %vm656, %v1505, 0
        %v1525 = vsel %vm656, %v1506, 0
        %v1528 = vsel %vm656, %v1507, 0
        %v1531 = vsel %vm656, %v1508, 0
        %v1534 = vsel %vm656, %v1509, 0
        %v1537 = vsel %vm656, %v1510, 0
        %v1540 = vsel %vm656, %v1511, 0
        %v1543 = vsel %vm656, %v1512, 0
        %v1546 = vsel %vm656, %v1513, 0
        %v1549 = vsel %vm656, %v1514, 0
        %v1552 = vsel %vm656, %v1515, 0
        %v1555 = vsel %vm656, %v1516, 0
        %v1558 = vsel %vm656, %v1517, 0
        %v1561 = vsel %vm656, %v1518, 0
        %v1564 = vsel %vm656, %v1519, 0
        %v1567 = vsel %vm656, %v1520, 0
        %v1570 = vand.u32 %v1440, %v708
        %1572 = vmatpush.bf16.msra.mxu0 0
        %1573 = vmatpush.bf16.msra.mxu0 0
        %1574 = vmatpush.bf16.msra.mxu0 0
        %1575 = vmatpush.bf16.msra.mxu0 0
        %1576 = vmatpush.bf16.msra.mxu0 0
        %1577 = vmatpush.bf16.msra.mxu0 0
        %1578 = vmatpush.bf16.msra.mxu0 0
        %1579 = vmatpush.bf16.msra.mxu0 %v1570
        %1580 = vmatmul.bf16.gmra.mxu0 %v1522
        %v1581 = vpop.f32.mrf.mxu0
        %v1582 = vadd.f32 0.0, %v1581
        %v1583 = vpop.f32.mrf.mxu0
        %v1584 = vadd.f32 0.0, %v1583
        %1585 = vmatmul.bf16.gmra.mxu0 %v1525
        %v1586 = vpop.f32.mrf.mxu0
        %v1587 = vadd.f32 0.0, %v1586
        %v1588 = vpop.f32.mrf.mxu0
        %v1589 = vadd.f32 0.0, %v1588
        %1590 = vmatmul.bf16.gmra.mxu0 %v1528
        %v1591 = vpop.f32.mrf.mxu0
        %v1592 = vadd.f32 0.0, %v1591
        %v1593 = vpop.f32.mrf.mxu0
        %v1594 = vadd.f32 0.0, %v1593
        %1595 = vmatmul.bf16.gmra.mxu0 %v1531
        %v1596 = vpop.f32.mrf.mxu0
        %v1597 = vadd.f32 0.0, %v1596
        %v1598 = vpop.f32.mrf.mxu0
        %v1599 = vadd.f32 0.0, %v1598
        %1600 = vmatmul.bf16.gmra.mxu0 %v1534
        %v1601 = vpop.f32.mrf.mxu0
        %v1602 = vadd.f32 0.0, %v1601
        %v1603 = vpop.f32.mrf.mxu0
        %v1604 = vadd.f32 0.0, %v1603
        %1605 = vmatmul.bf16.gmra.mxu0 %v1537
        %v1606 = vpop.f32.mrf.mxu0
        %v1607 = vadd.f32 0.0, %v1606
        %v1608 = vpop.f32.mrf.mxu0
        %v1609 = vadd.f32 0.0, %v1608
        %1610 = vmatmul.bf16.gmra.mxu0 %v1540
        %v1611 = vpop.f32.mrf.mxu0
        %v1612 = vadd.f32 0.0, %v1611
        %v1613 = vpop.f32.mrf.mxu0
        %v1614 = vadd.f32 0.0, %v1613
        %1615 = vmatmul.bf16.gmra.mxu0 %v1543
        %v1616 = vpop.f32.mrf.mxu0
        %v1617 = vadd.f32 0.0, %v1616
        %v1618 = vpop.f32.mrf.mxu0
        %v1619 = vadd.f32 0.0, %v1618
        %1620 = vmatmul.bf16.gmra.mxu0 %v1546
        %v1621 = vpop.f32.mrf.mxu0
        %v1622 = vadd.f32 0.0, %v1621
        %v1623 = vpop.f32.mrf.mxu0
        %v1624 = vadd.f32 0.0, %v1623
        %1625 = vmatmul.bf16.gmra.mxu0 %v1549
        %v1626 = vpop.f32.mrf.mxu0
        %v1627 = vadd.f32 0.0, %v1626
        %v1628 = vpop.f32.mrf.mxu0
        %v1629 = vadd.f32 0.0, %v1628
        %1630 = vmatmul.bf16.gmra.mxu0 %v1552
        %v1631 = vpop.f32.mrf.mxu0
        %v1632 = vadd.f32 0.0, %v1631
        %v1633 = vpop.f32.mrf.mxu0
        %v1634 = vadd.f32 0.0, %v1633
        %1635 = vmatmul.bf16.gmra.mxu0 %v1555
        %v1636 = vpop.f32.mrf.mxu0
        %v1637 = vadd.f32 0.0, %v1636
        %v1638 = vpop.f32.mrf.mxu0
        %v1639 = vadd.f32 0.0, %v1638
        %1640 = vmatmul.bf16.gmra.mxu0 %v1558
        %v1641 = vpop.f32.mrf.mxu0
        %v1642 = vadd.f32 0.0, %v1641
        %v1643 = vpop.f32.mrf.mxu0
        %v1644 = vadd.f32 0.0, %v1643
        %1645 = vmatmul.bf16.gmra.mxu0 %v1561
        %v1646 = vpop.f32.mrf.mxu0
        %v1647 = vadd.f32 0.0, %v1646
        %v1648 = vpop.f32.mrf.mxu0
        %v1649 = vadd.f32 0.0, %v1648
        %1650 = vmatmul.bf16.gmra.mxu0 %v1564
        %v1651 = vpop.f32.mrf.mxu0
        %v1652 = vadd.f32 0.0, %v1651
        %v1653 = vpop.f32.mrf.mxu0
        %v1654 = vadd.f32 0.0, %v1653
        %1655 = vmatmul.bf16.gmra.mxu0 %v1567
        %v1656 = vpop.f32.mrf.mxu0
        %v1657 = vadd.f32 0.0, %v1656
        %v1658 = vpop.f32.mrf.mxu0
        %v1659 = vadd.f32 0.0, %v1658
        %1660 = vdwg.mxu0
        %v1661 = vadd.f32 %v1374, %v1582
        %v1662 = vadd.f32 %v1375, %v1584
        %v1663 = vadd.f32 %v1376, %v1587
        %v1664 = vadd.f32 %v1377, %v1589
        %v1665 = vadd.f32 %v1378, %v1592
        %v1666 = vadd.f32 %v1379, %v1594
        %v1667 = vadd.f32 %v1380, %v1597
        %v1668 = vadd.f32 %v1381, %v1599
        %v1669 = vadd.f32 %v1382, %v1602
        %v1670 = vadd.f32 %v1383, %v1604
        %v1671 = vadd.f32 %v1384, %v1607
        %v1672 = vadd.f32 %v1385, %v1609
        %v1673 = vadd.f32 %v1386, %v1612
        %v1674 = vadd.f32 %v1387, %v1614
        %v1675 = vadd.f32 %v1388, %v1617
        %v1676 = vadd.f32 %v1389, %v1619
        %v1677 = vadd.f32 %v1390, %v1622
        %v1678 = vadd.f32 %v1391, %v1624
        %v1679 = vadd.f32 %v1392, %v1627
        %v1680 = vadd.f32 %v1393, %v1629
        %v1681 = vadd.f32 %v1394, %v1632
        %v1682 = vadd.f32 %v1395, %v1634
        %v1683 = vadd.f32 %v1396, %v1637
        %v1684 = vadd.f32 %v1397, %v1639
        %v1685 = vadd.f32 %v1398, %v1642
        %v1686 = vadd.f32 %v1399, %v1644
        %v1687 = vadd.f32 %v1400, %v1647
        %v1688 = vadd.f32 %v1401, %v1649
        %v1689 = vadd.f32 %v1402, %v1652
        %v1690 = vadd.f32 %v1403, %v1654
        %v1691 = vadd.f32 %v1404, %v1657
        %v1692 = vadd.f32 %v1405, %v1659
        %v1693 = vld [vmem:[%s1406] sm:$0xf]
        %v1694 = vld [vmem:[%s1406 + $0x4] sm:$0xf]
        %v1695 = vld [vmem:[%s1406 + $0x8] sm:$0x1]
        %v1696 = vld [vmem:[%s1406 + $0xc] sm:$0xf]
        %v1697 = vld [vmem:[%s1406 + $0x10] sm:$0xf]
        %v1698 = vld [vmem:[%s1406 + $0x14] sm:$0x1]
        %v1699 = vld [vmem:[%s1406 + $0x18] sm:$0xf]
        %v1700 = vld [vmem:[%s1406 + $0x1c] sm:$0xf]
        %v1701 = vld [vmem:[%s1406 + $0x20] sm:$0x1]
        %v1702 = vld [vmem:[%s1406 + $0x24] sm:$0xf]
        %v1703 = vld [vmem:[%s1406 + $0x28] sm:$0xf]
        %v1704 = vld [vmem:[%s1406 + $0x2c] sm:$0x1]
        %v1705 = vld [vmem:[%s1406 + $0x30] sm:$0xf]
        %v1706 = vld [vmem:[%s1406 + $0x34] sm:$0xf]
        %v1707 = vld [vmem:[%s1406 + $0x38] sm:$0x1]
        %v1708 = vld [vmem:[%s1406 + $0x3c] sm:$0xf]
        %v1709 = vld [vmem:[%s1406 + $0x40] sm:$0xf]
        %v1710 = vld [vmem:[%s1406 + $0x44] sm:$0x1]
        %v1711 = vld [vmem:[%s1406 + $0x48] sm:$0xf]
        %v1712 = vld [vmem:[%s1406 + $0x4c] sm:$0xf]
        %v1713 = vld [vmem:[%s1406 + $0x50] sm:$0x1]
        %v1714 = vld [vmem:[%s1406 + $0x54] sm:$0xf]
        %v1715 = vld [vmem:[%s1406 + $0x58] sm:$0xf]
        %v1716 = vld [vmem:[%s1406 + $0x5c] sm:$0x1]
        %v1717 = vld [vmem:[%s1406 + $0x60] sm:$0xf]
        %v1718 = vld [vmem:[%s1406 + $0x64] sm:$0xf]
        %v1719 = vld [vmem:[%s1406 + $0x68] sm:$0x1]
        %v1720 = vld [vmem:[%s1406 + $0x6c] sm:$0xf]
        %v1721 = vld [vmem:[%s1406 + $0x70] sm:$0xf]
        %v1722 = vld [vmem:[%s1406 + $0x74] sm:$0x1]
        %v1723 = vld [vmem:[%s1406 + $0x78] sm:$0xf]
        %v1724 = vld [vmem:[%s1406 + $0x7c] sm:$0xf]
        %v1725 = vld [vmem:[%s1406 + $0x80] sm:$0x1]
        %v1726 = vld [vmem:[%s1406 + $0x84] sm:$0xf]
        %v1727 = vld [vmem:[%s1406 + $0x88] sm:$0xf]
        %v1728 = vld [vmem:[%s1406 + $0x8c] sm:$0x1]
        %v1729 = vld [vmem:[%s1406 + $0x90] sm:$0xf]
        %v1730 = vld [vmem:[%s1406 + $0x94] sm:$0xf]
        %v1731 = vld [vmem:[%s1406 + $0x98] sm:$0x1]
        %v1732 = vld [vmem:[%s1406 + $0x9c] sm:$0xf]
        %v1733 = vld [vmem:[%s1406 + $0xa0] sm:$0xf]
        %v1734 = vld [vmem:[%s1406 + $0xa4] sm:$0x1]
        %v1735 = vld [vmem:[%s1406 + $0xa8] sm:$0xf]
        %v1736 = vld [vmem:[%s1406 + $0xac] sm:$0xf]
        %v1737 = vld [vmem:[%s1406 + $0xb0] sm:$0x1]
        %v1738 = vld [vmem:[%s1406 + $0xb4] sm:$0xf]
        %v1739 = vld [vmem:[%s1406 + $0xb8] sm:$0xf]
        %v1740 = vld [vmem:[%s1406 + $0xbc] sm:$0x1]
        %v1742 = vshrl.u32 %v1693, 16
        %v1744 = vrot.slane %v1742, 4
        %v1745 = vshll.u32 %v1693, 16
        %v1747 = vrot.slane %v1745, 5
        %v1748 = vor.u32 %v1744, %v1747
        %v1749 = vrot.slane %v1748, 4
        %v1751 = vshll.u32 %v1694, 16
        %v1753 = vrot.slane %v1751, 5
        %v1754 = vsel %vm221, %v1749, %v1753
        %v1755 = vshrl.u32 %v1694, 16
        %v1757 = vrot.slane %v1755, 4
        %v1758 = vor.u32 %v1757, %v1753
        %v1759 = vrot.slane %v1758, 4
        %v1761 = vshll.u32 %v1695, 16
        %v1763 = vrot.slane %v1761, 5
        %v1764 = vsel %vm221, %v1759, %v1763
        %v1766 = vshrl.u32 %v1696, 16
        %v1768 = vrot.slane %v1766, 4
        %v1769 = vshll.u32 %v1696, 16
        %v1771 = vrot.slane %v1769, 5
        %v1772 = vor.u32 %v1768, %v1771
        %v1773 = vrot.slane %v1772, 4
        %v1775 = vshll.u32 %v1697, 16
        %v1777 = vrot.slane %v1775, 5
        %v1778 = vsel %vm221, %v1773, %v1777
        %v1779 = vshrl.u32 %v1697, 16
        %v1781 = vrot.slane %v1779, 4
        %v1782 = vor.u32 %v1781, %v1777
        %v1783 = vrot.slane %v1782, 4
        %v1785 = vshll.u32 %v1698, 16
        %v1787 = vrot.slane %v1785, 5
        %v1788 = vsel %vm221, %v1783, %v1787
        %v1790 = vshrl.u32 %v1699, 16
        %v1792 = vrot.slane %v1790, 4
        %v1793 = vshll.u32 %v1699, 16
        %v1795 = vrot.slane %v1793, 5
        %v1796 = vor.u32 %v1792, %v1795
        %v1797 = vrot.slane %v1796, 4
        %v1799 = vshll.u32 %v1700, 16
        %v1801 = vrot.slane %v1799, 5
        %v1802 = vsel %vm221, %v1797, %v1801
        %v1803 = vshrl.u32 %v1700, 16
        %v1805 = vrot.slane %v1803, 4
        %v1806 = vor.u32 %v1805, %v1801
        %v1807 = vrot.slane %v1806, 4
        %v1809 = vshll.u32 %v1701, 16
        %v1811 = vrot.slane %v1809, 5
        %v1812 = vsel %vm221, %v1807, %v1811
        %v1814 = vshrl.u32 %v1702, 16
        %v1816 = vrot.slane %v1814, 4
        %v1817 = vshll.u32 %v1702, 16
        %v1819 = vrot.slane %v1817, 5
        %v1820 = vor.u32 %v1816, %v1819
        %v1821 = vrot.slane %v1820, 4
        %v1823 = vshll.u32 %v1703, 16
        %v1825 = vrot.slane %v1823, 5
        %v1826 = vsel %vm221, %v1821, %v1825
        %v1827 = vshrl.u32 %v1703, 16
        %v1829 = vrot.slane %v1827, 4
        %v1830 = vor.u32 %v1829, %v1825
        %v1831 = vrot.slane %v1830, 4
        %v1833 = vshll.u32 %v1704, 16
        %v1835 = vrot.slane %v1833, 5
        %v1836 = vsel %vm221, %v1831, %v1835
        %v1838 = vshrl.u32 %v1705, 16
        %v1840 = vrot.slane %v1838, 4
        %v1841 = vshll.u32 %v1705, 16
        %v1843 = vrot.slane %v1841, 5
        %v1844 = vor.u32 %v1840, %v1843
        %v1845 = vrot.slane %v1844, 4
        %v1847 = vshll.u32 %v1706, 16
        %v1849 = vrot.slane %v1847, 5
        %v1850 = vsel %vm221, %v1845, %v1849
        %v1851 = vshrl.u32 %v1706, 16
        %v1853 = vrot.slane %v1851, 4
        %v1854 = vor.u32 %v1853, %v1849
        %v1855 = vrot.slane %v1854, 4
        %v1857 = vshll.u32 %v1707, 16
        %v1859 = vrot.slane %v1857, 5
        %v1860 = vsel %vm221, %v1855, %v1859
        %v1862 = vshrl.u32 %v1708, 16
        %v1864 = vrot.slane %v1862, 4
        %v1865 = vshll.u32 %v1708, 16
        %v1867 = vrot.slane %v1865, 5
        %v1868 = vor.u32 %v1864, %v1867
        %v1869 = vrot.slane %v1868, 4
        %v1871 = vshll.u32 %v1709, 16
        %v1873 = vrot.slane %v1871, 5
        %v1874 = vsel %vm221, %v1869, %v1873
        %v1875 = vshrl.u32 %v1709, 16
        %v1877 = vrot.slane %v1875, 4
        %v1878 = vor.u32 %v1877, %v1873
        %v1879 = vrot.slane %v1878, 4
        %v1881 = vshll.u32 %v1710, 16
        %v1883 = vrot.slane %v1881, 5
        %v1884 = vsel %vm221, %v1879, %v1883
        %v1886 = vshrl.u32 %v1711, 16
        %v1888 = vrot.slane %v1886, 4
        %v1889 = vshll.u32 %v1711, 16
        %v1891 = vrot.slane %v1889, 5
        %v1892 = vor.u32 %v1888, %v1891
        %v1893 = vrot.slane %v1892, 4
        %v1895 = vshll.u32 %v1712, 16
        %v1897 = vrot.slane %v1895, 5
        %v1898 = vsel %vm221, %v1893, %v1897
        %v1899 = vshrl.u32 %v1712, 16
        %v1901 = vrot.slane %v1899, 4
        %v1902 = vor.u32 %v1901, %v1897
        %v1903 = vrot.slane %v1902, 4
        %v1905 = vshll.u32 %v1713, 16
        %v1907 = vrot.slane %v1905, 5
        %v1908 = vsel %vm221, %v1903, %v1907
        %v1910 = vshrl.u32 %v1714, 16
        %v1912 = vrot.slane %v1910, 4
        %v1913 = vshll.u32 %v1714, 16
        %v1915 = vrot.slane %v1913, 5
        %v1916 = vor.u32 %v1912, %v1915
        %v1917 = vrot.slane %v1916, 4
        %v1919 = vshll.u32 %v1715, 16
        %v1921 = vrot.slane %v1919, 5
        %v1922 = vsel %vm221, %v1917, %v1921
        %v1923 = vshrl.u32 %v1715, 16
        %v1925 = vrot.slane %v1923, 4
        %v1926 = vor.u32 %v1925, %v1921
        %v1927 = vrot.slane %v1926, 4
        %v1929 = vshll.u32 %v1716, 16
        %v1931 = vrot.slane %v1929, 5
        %v1932 = vsel %vm221, %v1927, %v1931
        %v1934 = vshrl.u32 %v1717, 16
        %v1936 = vrot.slane %v1934, 4
        %v1937 = vshll.u32 %v1717, 16
        %v1939 = vrot.slane %v1937, 5
        %v1940 = vor.u32 %v1936, %v1939
        %v1941 = vrot.slane %v1940, 4
        %v1943 = vshll.u32 %v1718, 16
        %v1945 = vrot.slane %v1943, 5
        %v1946 = vsel %vm221, %v1941, %v1945
        %v1947 = vshrl.u32 %v1718, 16
        %v1949 = vrot.slane %v1947, 4
        %v1950 = vor.u32 %v1949, %v1945
        %v1951 = vrot.slane %v1950, 4
        %v1953 = vshll.u32 %v1719, 16
        %v1955 = vrot.slane %v1953, 5
        %v1956 = vsel %vm221, %v1951, %v1955
        %v1958 = vshrl.u32 %v1720, 16
        %v1960 = vrot.slane %v1958, 4
        %v1961 = vshll.u32 %v1720, 16
        %v1963 = vrot.slane %v1961, 5
        %v1964 = vor.u32 %v1960, %v1963
        %v1965 = vrot.slane %v1964, 4
        %v1967 = vshll.u32 %v1721, 16
        %v1969 = vrot.slane %v1967, 5
        %v1970 = vsel %vm221, %v1965, %v1969
        %v1971 = vshrl.u32 %v1721, 16
        %v1973 = vrot.slane %v1971, 4
        %v1974 = vor.u32 %v1973, %v1969
        %v1975 = vrot.slane %v1974, 4
        %v1977 = vshll.u32 %v1722, 16
        %v1979 = vrot.slane %v1977, 5
        %v1980 = vsel %vm221, %v1975, %v1979
        %v1982 = vshrl.u32 %v1723, 16
        %v1984 = vrot.slane %v1982, 4
        %v1985 = vshll.u32 %v1723, 16
        %v1987 = vrot.slane %v1985, 5
        %v1988 = vor.u32 %v1984, %v1987
        %v1989 = vrot.slane %v1988, 4
        %v1991 = vshll.u32 %v1724, 16
        %v1993 = vrot.slane %v1991, 5
        %v1994 = vsel %vm221, %v1989, %v1993
        %v1995 = vshrl.u32 %v1724, 16
        %v1997 = vrot.slane %v1995, 4
        %v1998 = vor.u32 %v1997, %v1993
        %v1999 = vrot.slane %v1998, 4
        %v2001 = vshll.u32 %v1725, 16
        %v2003 = vrot.slane %v2001, 5
        %v2004 = vsel %vm221, %v1999, %v2003
        %v2006 = vshrl.u32 %v1726, 16
        %v2008 = vrot.slane %v2006, 4
        %v2009 = vshll.u32 %v1726, 16
        %v2011 = vrot.slane %v2009, 5
        %v2012 = vor.u32 %v2008, %v2011
        %v2013 = vrot.slane %v2012, 4
        %v2015 = vshll.u32 %v1727, 16
        %v2017 = vrot.slane %v2015, 5
        %v2018 = vsel %vm221, %v2013, %v2017
        %v2019 = vshrl.u32 %v1727, 16
        %v2021 = vrot.slane %v2019, 4
        %v2022 = vor.u32 %v2021, %v2017
        %v2023 = vrot.slane %v2022, 4
        %v2025 = vshll.u32 %v1728, 16
        %v2027 = vrot.slane %v2025, 5
        %v2028 = vsel %vm221, %v2023, %v2027
        %v2030 = vshrl.u32 %v1729, 16
        %v2032 = vrot.slane %v2030, 4
        %v2033 = vshll.u32 %v1729, 16
        %v2035 = vrot.slane %v2033, 5
        %v2036 = vor.u32 %v2032, %v2035
        %v2037 = vrot.slane %v2036, 4
        %v2039 = vshll.u32 %v1730, 16
        %v2041 = vrot.slane %v2039, 5
        %v2042 = vsel %vm221, %v2037, %v2041
        %v2043 = vshrl.u32 %v1730, 16
        %v2045 = vrot.slane %v2043, 4
        %v2046 = vor.u32 %v2045, %v2041
        %v2047 = vrot.slane %v2046, 4
        %v2049 = vshll.u32 %v1731, 16
        %v2051 = vrot.slane %v2049, 5
        %v2052 = vsel %vm221, %v2047, %v2051
        %v2054 = vshrl.u32 %v1732, 16
        %v2056 = vrot.slane %v2054, 4
        %v2057 = vshll.u32 %v1732, 16
        %v2059 = vrot.slane %v2057, 5
        %v2060 = vor.u32 %v2056, %v2059
        %v2061 = vrot.slane %v2060, 4
        %v2063 = vshll.u32 %v1733, 16
        %v2065 = vrot.slane %v2063, 5
        %v2066 = vsel %vm221, %v2061, %v2065
        %v2067 = vshrl.u32 %v1733, 16
        %v2069 = vrot.slane %v2067, 4
        %v2070 = vor.u32 %v2069, %v2065
        %v2071 = vrot.slane %v2070, 4
        %v2073 = vshll.u32 %v1734, 16
        %v2075 = vrot.slane %v2073, 5
        %v2076 = vsel %vm221, %v2071, %v2075
        %v2078 = vshrl.u32 %v1735, 16
        %v2080 = vrot.slane %v2078, 4
        %v2081 = vshll.u32 %v1735, 16
        %v2083 = vrot.slane %v2081, 5
        %v2084 = vor.u32 %v2080, %v2083
        %v2085 = vrot.slane %v2084, 4
        %v2087 = vshll.u32 %v1736, 16
        %v2089 = vrot.slane %v2087, 5
        %v2090 = vsel %vm221, %v2085, %v2089
        %v2091 = vshrl.u32 %v1736, 16
        %v2093 = vrot.slane %v2091, 4
        %v2094 = vor.u32 %v2093, %v2089
        %v2095 = vrot.slane %v2094, 4
        %v2097 = vshll.u32 %v1737, 16
        %v2099 = vrot.slane %v2097, 5
        %v2100 = vsel %vm221, %v2095, %v2099
        %v2102 = vshrl.u32 %v1738, 16
        %v2104 = vrot.slane %v2102, 4
        %v2105 = vshll.u32 %v1738, 16
        %v2107 = vrot.slane %v2105, 5
        %v2108 = vor.u32 %v2104, %v2107
        %v2109 = vrot.slane %v2108, 4
        %v2111 = vshll.u32 %v1739, 16
        %v2113 = vrot.slane %v2111, 5
        %v2114 = vsel %vm221, %v2109, %v2113
        %v2115 = vshrl.u32 %v1739, 16
        %v2117 = vrot.slane %v2115, 4
        %v2118 = vor.u32 %v2117, %v2113
        %v2119 = vrot.slane %v2118, 4
        %v2121 = vshll.u32 %v1740, 16
        %v2123 = vrot.slane %v2121, 5
        %v2124 = vsel %vm221, %v2119, %v2123
        %s2125 = scalar_lea.vmem %s1, 8
        %v2126 = vld [vmem:[%s2125] sm:$0x3]
        %v2127 = vunpack.c.l.b16 %v1754
        %v2128 = vunpack.c.l.b16 %v1764
        %v2129 = vunpack.c.l.b16 %v1778
        %v2130 = vunpack.c.l.b16 %v1788
        %v2131 = vunpack.c.l.b16 %v1802
        %v2132 = vunpack.c.l.b16 %v1812
        %v2133 = vunpack.c.l.b16 %v1826
        %v2134 = vunpack.c.l.b16 %v1836
        %v2135 = vunpack.c.l.b16 %v1850
        %v2136 = vunpack.c.l.b16 %v1860
        %v2137 = vunpack.c.l.b16 %v1874
        %v2138 = vunpack.c.l.b16 %v1884
        %v2139 = vunpack.c.l.b16 %v1898
        %v2140 = vunpack.c.l.b16 %v1908
        %v2141 = vunpack.c.l.b16 %v1922
        %v2142 = vunpack.c.l.b16 %v1932
        %v2143 = vunpack.c.l.b16 %v1946
        %v2144 = vunpack.c.l.b16 %v1956
        %v2145 = vunpack.c.l.b16 %v1970
        %v2146 = vunpack.c.l.b16 %v1980
        %v2147 = vunpack.c.l.b16 %v1994
        %v2148 = vunpack.c.l.b16 %v2004
        %v2149 = vunpack.c.l.b16 %v2018
        %v2150 = vunpack.c.l.b16 %v2028
        %v2151 = vunpack.c.l.b16 %v2042
        %v2152 = vunpack.c.l.b16 %v2052
        %v2153 = vunpack.c.l.b16 %v2066
        %v2154 = vunpack.c.l.b16 %v2076
        %v2155 = vunpack.c.l.b16 %v2090
        %v2156 = vunpack.c.l.b16 %v2100
        %v2157 = vunpack.c.l.b16 %v2114
        %v2158 = vunpack.c.l.b16 %v2124
        %v2159 = vpack.c.b16 %v2128, %v2127
        %v2160 = vpack.c.b16 %v2130, %v2129
        %v2161 = vpack.c.b16 %v2132, %v2131
        %v2162 = vpack.c.b16 %v2134, %v2133
        %v2163 = vpack.c.b16 %v2136, %v2135
        %v2164 = vpack.c.b16 %v2138, %v2137
        %v2165 = vpack.c.b16 %v2140, %v2139
        %v2166 = vpack.c.b16 %v2142, %v2141
        %v2167 = vpack.c.b16 %v2144, %v2143
        %v2168 = vpack.c.b16 %v2146, %v2145
        %v2169 = vpack.c.b16 %v2148, %v2147
        %v2170 = vpack.c.b16 %v2150, %v2149
        %v2171 = vpack.c.b16 %v2152, %v2151
        %v2172 = vpack.c.b16 %v2154, %v2153
        %v2173 = vpack.c.b16 %v2156, %v2155
        %v2174 = vpack.c.b16 %v2158, %v2157
        %v2176 = vsel %vm656, %v2159, 0
        %v2179 = vsel %vm656, %v2160, 0
        %v2182 = vsel %vm656, %v2161, 0
        %v2185 = vsel %vm656, %v2162, 0
        %v2188 = vsel %vm656, %v2163, 0
        %v2191 = vsel %vm656, %v2164, 0
        %v2194 = vsel %vm656, %v2165, 0
        %v2197 = vsel %vm656, %v2166, 0
        %v2200 = vsel %vm656, %v2167, 0
        %v2203 = vsel %vm656, %v2168, 0
        %v2206 = vsel %vm656, %v2169, 0
        %v2209 = vsel %vm656, %v2170, 0
        %v2212 = vsel %vm656, %v2171, 0
        %v2215 = vsel %vm656, %v2172, 0
        %v2218 = vsel %vm656, %v2173, 0
        %v2221 = vsel %vm656, %v2174, 0
        %v2224 = vand.u32 %v2126, %v708
        %2226 = vmatpush.bf16.msra.mxu0 0
        %2227 = vmatpush.bf16.msra.mxu0 0
        %2228 = vmatpush.bf16.msra.mxu0 0
        %2229 = vmatpush.bf16.msra.mxu0 0
        %2230 = vmatpush.bf16.msra.mxu0 0
        %2231 = vmatpush.bf16.msra.mxu0 0
        %2232 = vmatpush.bf16.msra.mxu0 0
        %2233 = vmatpush.bf16.msra.mxu0 %v2224
        %2234 = vmatmul.bf16.gmra.mxu0 %v2176
        %v2235 = vpop.f32.mrf.mxu0
        %v2236 = vadd.f32 0.0, %v2235
        %v2237 = vpop.f32.mrf.mxu0
        %v2238 = vadd.f32 0.0, %v2237
        %2239 = vmatmul.bf16.gmra.mxu0 %v2179
        %v2240 = vpop.f32.mrf.mxu0
        %v2241 = vadd.f32 0.0, %v2240
        %v2242 = vpop.f32.mrf.mxu0
        %v2243 = vadd.f32 0.0, %v2242
        %2244 = vmatmul.bf16.gmra.mxu0 %v2182
        %v2245 = vpop.f32.mrf.mxu0
        %v2246 = vadd.f32 0.0, %v2245
        %v2247 = vpop.f32.mrf.mxu0
        %v2248 = vadd.f32 0.0, %v2247
        %2249 = vmatmul.bf16.gmra.mxu0 %v2185
        %v2250 = vpop.f32.mrf.mxu0
        %v2251 = vadd.f32 0.0, %v2250
        %v2252 = vpop.f32.mrf.mxu0
        %v2253 = vadd.f32 0.0, %v2252
        %2254 = vmatmul.bf16.gmra.mxu0 %v2188
        %v2255 = vpop.f32.mrf.mxu0
        %v2256 = vadd.f32 0.0, %v2255
        %v2257 = vpop.f32.mrf.mxu0
        %v2258 = vadd.f32 0.0, %v2257
        %2259 = vmatmul.bf16.gmra.mxu0 %v2191
        %v2260 = vpop.f32.mrf.mxu0
        %v2261 = vadd.f32 0.0, %v2260
        %v2262 = vpop.f32.mrf.mxu0
        %v2263 = vadd.f32 0.0, %v2262
        %2264 = vmatmul.bf16.gmra.mxu0 %v2194
        %v2265 = vpop.f32.mrf.mxu0
        %v2266 = vadd.f32 0.0, %v2265
        %v2267 = vpop.f32.mrf.mxu0
        %v2268 = vadd.f32 0.0, %v2267
        %2269 = vmatmul.bf16.gmra.mxu0 %v2197
        %v2270 = vpop.f32.mrf.mxu0
        %v2271 = vadd.f32 0.0, %v2270
        %v2272 = vpop.f32.mrf.mxu0
        %v2273 = vadd.f32 0.0, %v2272
        %2274 = vmatmul.bf16.gmra.mxu0 %v2200
        %v2275 = vpop.f32.mrf.mxu0
        %v2276 = vadd.f32 0.0, %v2275
        %v2277 = vpop.f32.mrf.mxu0
        %v2278 = vadd.f32 0.0, %v2277
        %2279 = vmatmul.bf16.gmra.mxu0 %v2203
        %v2280 = vpop.f32.mrf.mxu0
        %v2281 = vadd.f32 0.0, %v2280
        %v2282 = vpop.f32.mrf.mxu0
        %v2283 = vadd.f32 0.0, %v2282
        %2284 = vmatmul.bf16.gmra.mxu0 %v2206
        %v2285 = vpop.f32.mrf.mxu0
        %v2286 = vadd.f32 0.0, %v2285
        %v2287 = vpop.f32.mrf.mxu0
        %v2288 = vadd.f32 0.0, %v2287
        %2289 = vmatmul.bf16.gmra.mxu0 %v2209
        %v2290 = vpop.f32.mrf.mxu0
        %v2291 = vadd.f32 0.0, %v2290
        %v2292 = vpop.f32.mrf.mxu0
        %v2293 = vadd.f32 0.0, %v2292
        %2294 = vmatmul.bf16.gmra.mxu0 %v2212
        %v2295 = vpop.f32.mrf.mxu0
        %v2296 = vadd.f32 0.0, %v2295
        %v2297 = vpop.f32.mrf.mxu0
        %v2298 = vadd.f32 0.0, %v2297
        %2299 = vmatmul.bf16.gmra.mxu0 %v2215
        %v2300 = vpop.f32.mrf.mxu0
        %v2301 = vadd.f32 0.0, %v2300
        %v2302 = vpop.f32.mrf.mxu0
        %v2303 = vadd.f32 0.0, %v2302
        %2304 = vmatmul.bf16.gmra.mxu0 %v2218
        %v2305 = vpop.f32.mrf.mxu0
        %v2306 = vadd.f32 0.0, %v2305
        %v2307 = vpop.f32.mrf.mxu0
        %v2308 = vadd.f32 0.0, %v2307
        %2309 = vmatmul.bf16.gmra.mxu0 %v2221
        %v2310 = vpop.f32.mrf.mxu0
        %v2311 = vadd.f32 0.0, %v2310
        %v2312 = vpop.f32.mrf.mxu0
        %v2313 = vadd.f32 0.0, %v2312
        %2314 = vdwg.mxu0
        %v2315 = vadd.f32 %v1661, %v2236
        %v2316 = vadd.f32 %v1662, %v2238
        %v2317 = vadd.f32 %v1663, %v2241
        %v2318 = vadd.f32 %v1664, %v2243
        %v2319 = vadd.f32 %v1665, %v2246
        %v2320 = vadd.f32 %v1666, %v2248
        %v2321 = vadd.f32 %v1667, %v2251
        %v2322 = vadd.f32 %v1668, %v2253
        %v2323 = vadd.f32 %v1669, %v2256
        %v2324 = vadd.f32 %v1670, %v2258
        %v2325 = vadd.f32 %v1671, %v2261
        %v2326 = vadd.f32 %v1672, %v2263
        %v2327 = vadd.f32 %v1673, %v2266
        %v2328 = vadd.f32 %v1674, %v2268
        %v2329 = vadd.f32 %v1675, %v2271
        %v2330 = vadd.f32 %v1676, %v2273
        %v2331 = vadd.f32 %v1677, %v2276
        %v2332 = vadd.f32 %v1678, %v2278
        %v2333 = vadd.f32 %v1679, %v2281
        %v2334 = vadd.f32 %v1680, %v2283
        %v2335 = vadd.f32 %v1681, %v2286
        %v2336 = vadd.f32 %v1682, %v2288
        %v2337 = vadd.f32 %v1683, %v2291
        %v2338 = vadd.f32 %v1684, %v2293
        %v2339 = vadd.f32 %v1685, %v2296
        %v2340 = vadd.f32 %v1686, %v2298
        %v2341 = vadd.f32 %v1687, %v2301
        %v2342 = vadd.f32 %v1688, %v2303
        %v2343 = vadd.f32 %v1689, %v2306
        %v2344 = vadd.f32 %v1690, %v2308
        %v2345 = vadd.f32 %v1691, %v2311
        %v2346 = vadd.f32 %v1692, %v2313
        %v2347 = vld [vmem:[%s1406] sm:$0xe]
        %v2348 = vld [vmem:[%s1406 + $0xc] sm:$0xe]
        %v2349 = vld [vmem:[%s1406 + $0x18] sm:$0xe]
        %v2350 = vld [vmem:[%s1406 + $0x24] sm:$0xe]
        %v2351 = vld [vmem:[%s1406 + $0x30] sm:$0xe]
        %v2352 = vld [vmem:[%s1406 + $0x3c] sm:$0xe]
        %v2353 = vld [vmem:[%s1406 + $0x48] sm:$0xe]
        %v2354 = vld [vmem:[%s1406 + $0x54] sm:$0xe]
        %v2355 = vld [vmem:[%s1406 + $0x60] sm:$0xe]
        %v2356 = vld [vmem:[%s1406 + $0x6c] sm:$0xe]
        %v2357 = vld [vmem:[%s1406 + $0x78] sm:$0xe]
        %v2358 = vld [vmem:[%s1406 + $0x84] sm:$0xe]
        %v2359 = vld [vmem:[%s1406 + $0x90] sm:$0xe]
        %v2360 = vld [vmem:[%s1406 + $0x9c] sm:$0xe]
        %v2361 = vld [vmem:[%s1406 + $0xa8] sm:$0xe]
        %v2362 = vld [vmem:[%s1406 + $0xb4] sm:$0xe]
        %v2411 = vrot.slane %v2347, 5
        %v2412 = vrot.slane %v2411, 4
        %v2413 = vrot.slane %v1694, 5
        %v2414 = vsel %vm1071, %v2412, %v2413
        %v2415 = vrot.slane %v2413, 4
        %v2416 = vrot.slane %v1695, 5
        %v2417 = vsel %vm1071, %v2415, %v2416
        %v2418 = vrot.slane %v2348, 5
        %v2419 = vrot.slane %v2418, 4
        %v2420 = vrot.slane %v1697, 5
        %v2421 = vsel %vm1071, %v2419, %v2420
        %v2422 = vrot.slane %v2420, 4
        %v2423 = vrot.slane %v1698, 5
        %v2424 = vsel %vm1071, %v2422, %v2423
        %v2425 = vrot.slane %v2349, 5
        %v2426 = vrot.slane %v2425, 4
        %v2427 = vrot.slane %v1700, 5
        %v2428 = vsel %vm1071, %v2426, %v2427
        %v2429 = vrot.slane %v2427, 4
        %v2430 = vrot.slane %v1701, 5
        %v2431 = vsel %vm1071, %v2429, %v2430
        %v2432 = vrot.slane %v2350, 5
        %v2433 = vrot.slane %v2432, 4
        %v2434 = vrot.slane %v1703, 5
        %v2435 = vsel %vm1071, %v2433, %v2434
        %v2436 = vrot.slane %v2434, 4
        %v2437 = vrot.slane %v1704, 5
        %v2438 = vsel %vm1071, %v2436, %v2437
        %v2439 = vrot.slane %v2351, 5
        %v2440 = vrot.slane %v2439, 4
        %v2441 = vrot.slane %v1706, 5
        %v2442 = vsel %vm1071, %v2440, %v2441
        %v2443 = vrot.slane %v2441, 4
        %v2444 = vrot.slane %v1707, 5
        %v2445 = vsel %vm1071, %v2443, %v2444
        %v2446 = vrot.slane %v2352, 5
        %v2447 = vrot.slane %v2446, 4
        %v2448 = vrot.slane %v1709, 5
        %v2449 = vsel %vm1071, %v2447, %v2448
        %v2450 = vrot.slane %v2448, 4
        %v2451 = vrot.slane %v1710, 5
        %v2452 = vsel %vm1071, %v2450, %v2451
        %v2453 = vrot.slane %v2353, 5
        %v2454 = vrot.slane %v2453, 4
        %v2455 = vrot.slane %v1712, 5
        %v2456 = vsel %vm1071, %v2454, %v2455
        %v2457 = vrot.slane %v2455, 4
        %v2458 = vrot.slane %v1713, 5
        %v2459 = vsel %vm1071, %v2457, %v2458
        %v2460 = vrot.slane %v2354, 5
        %v2461 = vrot.slane %v2460, 4
        %v2462 = vrot.slane %v1715, 5
        %v2463 = vsel %vm1071, %v2461, %v2462
        %v2464 = vrot.slane %v2462, 4
        %v2465 = vrot.slane %v1716, 5
        %v2466 = vsel %vm1071, %v2464, %v2465
        %v2467 = vrot.slane %v2355, 5
        %v2468 = vrot.slane %v2467, 4
        %v2469 = vrot.slane %v1718, 5
        %v2470 = vsel %vm1071, %v2468, %v2469
        %v2471 = vrot.slane %v2469, 4
        %v2472 = vrot.slane %v1719, 5
        %v2473 = vsel %vm1071, %v2471, %v2472
        %v2474 = vrot.slane %v2356, 5
        %v2475 = vrot.slane %v2474, 4
        %v2476 = vrot.slane %v1721, 5
        %v2477 = vsel %vm1071, %v2475, %v2476
        %v2478 = vrot.slane %v2476, 4
        %v2479 = vrot.slane %v1722, 5
        %v2480 = vsel %vm1071, %v2478, %v2479
        %v2481 = vrot.slane %v2357, 5
        %v2482 = vrot.slane %v2481, 4
        %v2483 = vrot.slane %v1724, 5
        %v2484 = vsel %vm1071, %v2482, %v2483
        %v2485 = vrot.slane %v2483, 4
        %v2486 = vrot.slane %v1725, 5
        %v2487 = vsel %vm1071, %v2485, %v2486
        %v2488 = vrot.slane %v2358, 5
        %v2489 = vrot.slane %v2488, 4
        %v2490 = vrot.slane %v1727, 5
        %v2491 = vsel %vm1071, %v2489, %v2490
        %v2492 = vrot.slane %v2490, 4
        %v2493 = vrot.slane %v1728, 5
        %v2494 = vsel %vm1071, %v2492, %v2493
        %v2495 = vrot.slane %v2359, 5
        %v2496 = vrot.slane %v2495, 4
        %v2497 = vrot.slane %v1730, 5
        %v2498 = vsel %vm1071, %v2496, %v2497
        %v2499 = vrot.slane %v2497, 4
        %v2500 = vrot.slane %v1731, 5
        %v2501 = vsel %vm1071, %v2499, %v2500
        %v2502 = vrot.slane %v2360, 5
        %v2503 = vrot.slane %v2502, 4
        %v2504 = vrot.slane %v1733, 5
        %v2505 = vsel %vm1071, %v2503, %v2504
        %v2506 = vrot.slane %v2504, 4
        %v2507 = vrot.slane %v1734, 5
        %v2508 = vsel %vm1071, %v2506, %v2507
        %v2509 = vrot.slane %v2361, 5
        %v2510 = vrot.slane %v2509, 4
        %v2511 = vrot.slane %v1736, 5
        %v2512 = vsel %vm1071, %v2510, %v2511
        %v2513 = vrot.slane %v2511, 4
        %v2514 = vrot.slane %v1737, 5
        %v2515 = vsel %vm1071, %v2513, %v2514
        %v2516 = vrot.slane %v2362, 5
        %v2517 = vrot.slane %v2516, 4
        %v2518 = vrot.slane %v1739, 5
        %v2519 = vsel %vm1071, %v2517, %v2518
        %v2520 = vrot.slane %v2518, 4
        %v2521 = vrot.slane %v1740, 5
        %v2522 = vsel %vm1071, %v2520, %v2521
        %s2523 = scalar_lea.vmem %s1, 10
        %v2524 = vld [vmem:[%s2523] sm:$0x3]
        %v2525 = vunpack.c.l.b16 %v2414
        %v2526 = vunpack.c.l.b16 %v2417
        %v2527 = vunpack.c.l.b16 %v2421
        %v2528 = vunpack.c.l.b16 %v2424
        %v2529 = vunpack.c.l.b16 %v2428
        %v2530 = vunpack.c.l.b16 %v2431
        %v2531 = vunpack.c.l.b16 %v2435
        %v2532 = vunpack.c.l.b16 %v2438
        %v2533 = vunpack.c.l.b16 %v2442
        %v2534 = vunpack.c.l.b16 %v2445
        %v2535 = vunpack.c.l.b16 %v2449
        %v2536 = vunpack.c.l.b16 %v2452
        %v2537 = vunpack.c.l.b16 %v2456
        %v2538 = vunpack.c.l.b16 %v2459
        %v2539 = vunpack.c.l.b16 %v2463
        %v2540 = vunpack.c.l.b16 %v2466
        %v2541 = vunpack.c.l.b16 %v2470
        %v2542 = vunpack.c.l.b16 %v2473
        %v2543 = vunpack.c.l.b16 %v2477
        %v2544 = vunpack.c.l.b16 %v2480
        %v2545 = vunpack.c.l.b16 %v2484
        %v2546 = vunpack.c.l.b16 %v2487
        %v2547 = vunpack.c.l.b16 %v2491
        %v2548 = vunpack.c.l.b16 %v2494
        %v2549 = vunpack.c.l.b16 %v2498
        %v2550 = vunpack.c.l.b16 %v2501
        %v2551 = vunpack.c.l.b16 %v2505
        %v2552 = vunpack.c.l.b16 %v2508
        %v2553 = vunpack.c.l.b16 %v2512
        %v2554 = vunpack.c.l.b16 %v2515
        %v2555 = vunpack.c.l.b16 %v2519
        %v2556 = vunpack.c.l.b16 %v2522
        %v2557 = vpack.c.b16 %v2526, %v2525
        %v2558 = vpack.c.b16 %v2528, %v2527
        %v2559 = vpack.c.b16 %v2530, %v2529
        %v2560 = vpack.c.b16 %v2532, %v2531
        %v2561 = vpack.c.b16 %v2534, %v2533
        %v2562 = vpack.c.b16 %v2536, %v2535
        %v2563 = vpack.c.b16 %v2538, %v2537
        %v2564 = vpack.c.b16 %v2540, %v2539
        %v2565 = vpack.c.b16 %v2542, %v2541
        %v2566 = vpack.c.b16 %v2544, %v2543
        %v2567 = vpack.c.b16 %v2546, %v2545
        %v2568 = vpack.c.b16 %v2548, %v2547
        %v2569 = vpack.c.b16 %v2550, %v2549
        %v2570 = vpack.c.b16 %v2552, %v2551
        %v2571 = vpack.c.b16 %v2554, %v2553
        %v2572 = vpack.c.b16 %v2556, %v2555
        %v2574 = vsel %vm656, %v2557, 0
        %v2577 = vsel %vm656, %v2558, 0
        %v2580 = vsel %vm656, %v2559, 0
        %v2583 = vsel %vm656, %v2560, 0
        %v2586 = vsel %vm656, %v2561, 0
        %v2589 = vsel %vm656, %v2562, 0
        %v2592 = vsel %vm656, %v2563, 0
        %v2595 = vsel %vm656, %v2564, 0
        %v2598 = vsel %vm656, %v2565, 0
        %v2601 = vsel %vm656, %v2566, 0
        %v2604 = vsel %vm656, %v2567, 0
        %v2607 = vsel %vm656, %v2568, 0
        %v2610 = vsel %vm656, %v2569, 0
        %v2613 = vsel %vm656, %v2570, 0
        %v2616 = vsel %vm656, %v2571, 0
        %v2619 = vsel %vm656, %v2572, 0
        %v2622 = vand.u32 %v2524, %v708
        %2624 = vmatpush.bf16.msra.mxu0 0
        %2625 = vmatpush.bf16.msra.mxu0 0
        %2626 = vmatpush.bf16.msra.mxu0 0
        %2627 = vmatpush.bf16.msra.mxu0 0
        %2628 = vmatpush.bf16.msra.mxu0 0
        %2629 = vmatpush.bf16.msra.mxu0 0
        %2630 = vmatpush.bf16.msra.mxu0 0
        %2631 = vmatpush.bf16.msra.mxu0 %v2622
        %2632 = vmatmul.bf16.gmra.mxu0 %v2574
        %v2633 = vpop.f32.mrf.mxu0
        %v2634 = vadd.f32 0.0, %v2633
        %v2635 = vpop.f32.mrf.mxu0
        %v2636 = vadd.f32 0.0, %v2635
        %2637 = vmatmul.bf16.gmra.mxu0 %v2577
        %v2638 = vpop.f32.mrf.mxu0
        %v2639 = vadd.f32 0.0, %v2638
        %v2640 = vpop.f32.mrf.mxu0
        %v2641 = vadd.f32 0.0, %v2640
        %2642 = vmatmul.bf16.gmra.mxu0 %v2580
        %v2643 = vpop.f32.mrf.mxu0
        %v2644 = vadd.f32 0.0, %v2643
        %v2645 = vpop.f32.mrf.mxu0
        %v2646 = vadd.f32 0.0, %v2645
        %2647 = vmatmul.bf16.gmra.mxu0 %v2583
        %v2648 = vpop.f32.mrf.mxu0
        %v2649 = vadd.f32 0.0, %v2648
        %v2650 = vpop.f32.mrf.mxu0
        %v2651 = vadd.f32 0.0, %v2650
        %2652 = vmatmul.bf16.gmra.mxu0 %v2586
        %v2653 = vpop.f32.mrf.mxu0
        %v2654 = vadd.f32 0.0, %v2653
        %v2655 = vpop.f32.mrf.mxu0
        %v2656 = vadd.f32 0.0, %v2655
        %2657 = vmatmul.bf16.gmra.mxu0 %v2589
        %v2658 = vpop.f32.mrf.mxu0
        %v2659 = vadd.f32 0.0, %v2658
        %v2660 = vpop.f32.mrf.mxu0
        %v2661 = vadd.f32 0.0, %v2660
        %2662 = vmatmul.bf16.gmra.mxu0 %v2592
        %v2663 = vpop.f32.mrf.mxu0
        %v2664 = vadd.f32 0.0, %v2663
        %v2665 = vpop.f32.mrf.mxu0
        %v2666 = vadd.f32 0.0, %v2665
        %2667 = vmatmul.bf16.gmra.mxu0 %v2595
        %v2668 = vpop.f32.mrf.mxu0
        %v2669 = vadd.f32 0.0, %v2668
        %v2670 = vpop.f32.mrf.mxu0
        %v2671 = vadd.f32 0.0, %v2670
        %2672 = vmatmul.bf16.gmra.mxu0 %v2598
        %v2673 = vpop.f32.mrf.mxu0
        %v2674 = vadd.f32 0.0, %v2673
        %v2675 = vpop.f32.mrf.mxu0
        %v2676 = vadd.f32 0.0, %v2675
        %2677 = vmatmul.bf16.gmra.mxu0 %v2601
        %v2678 = vpop.f32.mrf.mxu0
        %v2679 = vadd.f32 0.0, %v2678
        %v2680 = vpop.f32.mrf.mxu0
        %v2681 = vadd.f32 0.0, %v2680
        %2682 = vmatmul.bf16.gmra.mxu0 %v2604
        %v2683 = vpop.f32.mrf.mxu0
        %v2684 = vadd.f32 0.0, %v2683
        %v2685 = vpop.f32.mrf.mxu0
        %v2686 = vadd.f32 0.0, %v2685
        %2687 = vmatmul.bf16.gmra.mxu0 %v2607
        %v2688 = vpop.f32.mrf.mxu0
        %v2689 = vadd.f32 0.0, %v2688
        %v2690 = vpop.f32.mrf.mxu0
        %v2691 = vadd.f32 0.0, %v2690
        %2692 = vmatmul.bf16.gmra.mxu0 %v2610
        %v2693 = vpop.f32.mrf.mxu0
        %v2694 = vadd.f32 0.0, %v2693
        %v2695 = vpop.f32.mrf.mxu0
        %v2696 = vadd.f32 0.0, %v2695
        %2697 = vmatmul.bf16.gmra.mxu0 %v2613
        %v2698 = vpop.f32.mrf.mxu0
        %v2699 = vadd.f32 0.0, %v2698
        %v2700 = vpop.f32.mrf.mxu0
        %v2701 = vadd.f32 0.0, %v2700
        %2702 = vmatmul.bf16.gmra.mxu0 %v2616
        %v2703 = vpop.f32.mrf.mxu0
        %v2704 = vadd.f32 0.0, %v2703
        %v2705 = vpop.f32.mrf.mxu0
        %v2706 = vadd.f32 0.0, %v2705
        %2707 = vmatmul.bf16.gmra.mxu0 %v2619
        %v2708 = vpop.f32.mrf.mxu0
        %v2709 = vadd.f32 0.0, %v2708
        %v2710 = vpop.f32.mrf.mxu0
        %v2711 = vadd.f32 0.0, %v2710
        %2712 = vdwg.mxu0
        %v2713 = vadd.f32 %v2315, %v2634
        %v2714 = vadd.f32 %v2316, %v2636
        %v2715 = vadd.f32 %v2317, %v2639
        %v2716 = vadd.f32 %v2318, %v2641
        %v2717 = vadd.f32 %v2319, %v2644
        %v2718 = vadd.f32 %v2320, %v2646
        %v2719 = vadd.f32 %v2321, %v2649
        %v2720 = vadd.f32 %v2322, %v2651
        %v2721 = vadd.f32 %v2323, %v2654
        %v2722 = vadd.f32 %v2324, %v2656
        %v2723 = vadd.f32 %v2325, %v2659
        %v2724 = vadd.f32 %v2326, %v2661
        %v2725 = vadd.f32 %v2327, %v2664
        %v2726 = vadd.f32 %v2328, %v2666
        %v2727 = vadd.f32 %v2329, %v2669
        %v2728 = vadd.f32 %v2330, %v2671
        %v2729 = vadd.f32 %v2331, %v2674
        %v2730 = vadd.f32 %v2332, %v2676
        %v2731 = vadd.f32 %v2333, %v2679
        %v2732 = vadd.f32 %v2334, %v2681
        %v2733 = vadd.f32 %v2335, %v2684
        %v2734 = vadd.f32 %v2336, %v2686
        %v2735 = vadd.f32 %v2337, %v2689
        %v2736 = vadd.f32 %v2338, %v2691
        %v2737 = vadd.f32 %v2339, %v2694
        %v2738 = vadd.f32 %v2340, %v2696
        %v2739 = vadd.f32 %v2341, %v2699
        %v2740 = vadd.f32 %v2342, %v2701
        %v2741 = vadd.f32 %v2343, %v2704
        %v2742 = vadd.f32 %v2344, %v2706
        %v2743 = vadd.f32 %v2345, %v2709
        %v2744 = vadd.f32 %v2346, %v2711
        %s2745 = scalar_lea.vmem %s168, 24
        %v2746 = vld [vmem:[%s2745] sm:$0xf]
        %v2747 = vld [vmem:[%s2745 + $0x4] sm:$0xf]
        %v2748 = vld [vmem:[%s2745 + $0xc] sm:$0xf]
        %v2749 = vld [vmem:[%s2745 + $0x10] sm:$0xf]
        %v2750 = vld [vmem:[%s2745 + $0x18] sm:$0xf]
        %v2751 = vld [vmem:[%s2745 + $0x1c] sm:$0xf]
        %v2752 = vld [vmem:[%s2745 + $0x24] sm:$0xf]
        %v2753 = vld [vmem:[%s2745 + $0x28] sm:$0xf]
        %v2754 = vld [vmem:[%s2745 + $0x30] sm:$0xf]
        %v2755 = vld [vmem:[%s2745 + $0x34] sm:$0xf]
        %v2756 = vld [vmem:[%s2745 + $0x3c] sm:$0xf]
        %v2757 = vld [vmem:[%s2745 + $0x40] sm:$0xf]
        %v2758 = vld [vmem:[%s2745 + $0x48] sm:$0xf]
        %v2759 = vld [vmem:[%s2745 + $0x4c] sm:$0xf]
        %v2760 = vld [vmem:[%s2745 + $0x54] sm:$0xf]
        %v2761 = vld [vmem:[%s2745 + $0x58] sm:$0xf]
        %v2762 = vld [vmem:[%s2745 + $0x60] sm:$0xf]
        %v2763 = vld [vmem:[%s2745 + $0x64] sm:$0xf]
        %v2764 = vld [vmem:[%s2745 + $0x6c] sm:$0xf]
        %v2765 = vld [vmem:[%s2745 + $0x70] sm:$0xf]
        %v2766 = vld [vmem:[%s2745 + $0x78] sm:$0xf]
        %v2767 = vld [vmem:[%s2745 + $0x7c] sm:$0xf]
        %v2768 = vld [vmem:[%s2745 + $0x84] sm:$0xf]
        %v2769 = vld [vmem:[%s2745 + $0x88] sm:$0xf]
        %v2770 = vld [vmem:[%s2745 + $0x90] sm:$0xf]
        %v2771 = vld [vmem:[%s2745 + $0x94] sm:$0xf]
        %v2772 = vld [vmem:[%s2745 + $0x9c] sm:$0xf]
        %v2773 = vld [vmem:[%s2745 + $0xa0] sm:$0xf]
        %v2774 = vld [vmem:[%s2745 + $0xa8] sm:$0xf]
        %v2775 = vld [vmem:[%s2745 + $0xac] sm:$0xf]
        %v2776 = vld [vmem:[%s2745 + $0xb4] sm:$0xf]
        %v2777 = vld [vmem:[%s2745 + $0xb8] sm:$0xf]
        %s2778 = scalar_lea.vmem %s1, 12
        %v2779 = vld [vmem:[%s2778] sm:$0x3]
        %v2812 = vunpack.c.l.b16 %v2746
        %v2813 = vunpack.c.l.b16 %v2747
        %v2814 = vunpack.c.l.b16 %v2748
        %v2815 = vunpack.c.l.b16 %v2749
        %v2816 = vunpack.c.l.b16 %v2750
        %v2817 = vunpack.c.l.b16 %v2751
        %v2818 = vunpack.c.l.b16 %v2752
        %v2819 = vunpack.c.l.b16 %v2753
        %v2820 = vunpack.c.l.b16 %v2754
        %v2821 = vunpack.c.l.b16 %v2755
        %v2822 = vunpack.c.l.b16 %v2756
        %v2823 = vunpack.c.l.b16 %v2757
        %v2824 = vunpack.c.l.b16 %v2758
        %v2825 = vunpack.c.l.b16 %v2759
        %v2826 = vunpack.c.l.b16 %v2760
        %v2827 = vunpack.c.l.b16 %v2761
        %v2828 = vunpack.c.l.b16 %v2762
        %v2829 = vunpack.c.l.b16 %v2763
        %v2830 = vunpack.c.l.b16 %v2764
        %v2831 = vunpack.c.l.b16 %v2765
        %v2832 = vunpack.c.l.b16 %v2766
        %v2833 = vunpack.c.l.b16 %v2767
        %v2834 = vunpack.c.l.b16 %v2768
        %v2835 = vunpack.c.l.b16 %v2769
        %v2836 = vunpack.c.l.b16 %v2770
        %v2837 = vunpack.c.l.b16 %v2771
        %v2838 = vunpack.c.l.b16 %v2772
        %v2839 = vunpack.c.l.b16 %v2773
        %v2840 = vunpack.c.l.b16 %v2774
        %v2841 = vunpack.c.l.b16 %v2775
        %v2842 = vunpack.c.l.b16 %v2776
        %v2843 = vunpack.c.l.b16 %v2777
        %v2844 = vpack.c.b16 %v2813, %v2812
        %v2845 = vpack.c.b16 %v2815, %v2814
        %v2846 = vpack.c.b16 %v2817, %v2816
        %v2847 = vpack.c.b16 %v2819, %v2818
        %v2848 = vpack.c.b16 %v2821, %v2820
        %v2849 = vpack.c.b16 %v2823, %v2822
        %v2850 = vpack.c.b16 %v2825, %v2824
        %v2851 = vpack.c.b16 %v2827, %v2826
        %v2852 = vpack.c.b16 %v2829, %v2828
        %v2853 = vpack.c.b16 %v2831, %v2830
        %v2854 = vpack.c.b16 %v2833, %v2832
        %v2855 = vpack.c.b16 %v2835, %v2834
        %v2856 = vpack.c.b16 %v2837, %v2836
        %v2857 = vpack.c.b16 %v2839, %v2838
        %v2858 = vpack.c.b16 %v2841, %v2840
        %v2859 = vpack.c.b16 %v2843, %v2842
        %v2861 = vsel %vm656, %v2844, 0
        %v2864 = vsel %vm656, %v2845, 0
        %v2867 = vsel %vm656, %v2846, 0
        %v2870 = vsel %vm656, %v2847, 0
        %v2873 = vsel %vm656, %v2848, 0
        %v2876 = vsel %vm656, %v2849, 0
        %v2879 = vsel %vm656, %v2850, 0
        %v2882 = vsel %vm656, %v2851, 0
        %v2885 = vsel %vm656, %v2852, 0
        %v2888 = vsel %vm656, %v2853, 0
        %v2891 = vsel %vm656, %v2854, 0
        %v2894 = vsel %vm656, %v2855, 0
        %v2897 = vsel %vm656, %v2856, 0
        %v2900 = vsel %vm656, %v2857, 0
        %v2903 = vsel %vm656, %v2858, 0
        %v2906 = vsel %vm656, %v2859, 0
        %v2909 = vand.u32 %v2779, %v708
        %2911 = vmatpush.bf16.msra.mxu0 0
        %2912 = vmatpush.bf16.msra.mxu0 0
        %2913 = vmatpush.bf16.msra.mxu0 0
        %2914 = vmatpush.bf16.msra.mxu0 0
        %2915 = vmatpush.bf16.msra.mxu0 0
        %2916 = vmatpush.bf16.msra.mxu0 0
        %2917 = vmatpush.bf16.msra.mxu0 0
        %2918 = vmatpush.bf16.msra.mxu0 %v2909
        %2919 = vmatmul.bf16.gmra.mxu0 %v2861
        %v2920 = vpop.f32.mrf.mxu0
        %v2921 = vadd.f32 0.0, %v2920
        %v2922 = vpop.f32.mrf.mxu0
        %v2923 = vadd.f32 0.0, %v2922
        %2924 = vmatmul.bf16.gmra.mxu0 %v2864
        %v2925 = vpop.f32.mrf.mxu0
        %v2926 = vadd.f32 0.0, %v2925
        %v2927 = vpop.f32.mrf.mxu0
        %v2928 = vadd.f32 0.0, %v2927
        %2929 = vmatmul.bf16.gmra.mxu0 %v2867
        %v2930 = vpop.f32.mrf.mxu0
        %v2931 = vadd.f32 0.0, %v2930
        %v2932 = vpop.f32.mrf.mxu0
        %v2933 = vadd.f32 0.0, %v2932
        %2934 = vmatmul.bf16.gmra.mxu0 %v2870
        %v2935 = vpop.f32.mrf.mxu0
        %v2936 = vadd.f32 0.0, %v2935
        %v2937 = vpop.f32.mrf.mxu0
        %v2938 = vadd.f32 0.0, %v2937
        %2939 = vmatmul.bf16.gmra.mxu0 %v2873
        %v2940 = vpop.f32.mrf.mxu0
        %v2941 = vadd.f32 0.0, %v2940
        %v2942 = vpop.f32.mrf.mxu0
        %v2943 = vadd.f32 0.0, %v2942
        %2944 = vmatmul.bf16.gmra.mxu0 %v2876
        %v2945 = vpop.f32.mrf.mxu0
        %v2946 = vadd.f32 0.0, %v2945
        %v2947 = vpop.f32.mrf.mxu0
        %v2948 = vadd.f32 0.0, %v2947
        %2949 = vmatmul.bf16.gmra.mxu0 %v2879
        %v2950 = vpop.f32.mrf.mxu0
        %v2951 = vadd.f32 0.0, %v2950
        %v2952 = vpop.f32.mrf.mxu0
        %v2953 = vadd.f32 0.0, %v2952
        %2954 = vmatmul.bf16.gmra.mxu0 %v2882
        %v2955 = vpop.f32.mrf.mxu0
        %v2956 = vadd.f32 0.0, %v2955
        %v2957 = vpop.f32.mrf.mxu0
        %v2958 = vadd.f32 0.0, %v2957
        %2959 = vmatmul.bf16.gmra.mxu0 %v2885
        %v2960 = vpop.f32.mrf.mxu0
        %v2961 = vadd.f32 0.0, %v2960
        %v2962 = vpop.f32.mrf.mxu0
        %v2963 = vadd.f32 0.0, %v2962
        %2964 = vmatmul.bf16.gmra.mxu0 %v2888
        %v2965 = vpop.f32.mrf.mxu0
        %v2966 = vadd.f32 0.0, %v2965
        %v2967 = vpop.f32.mrf.mxu0
        %v2968 = vadd.f32 0.0, %v2967
        %2969 = vmatmul.bf16.gmra.mxu0 %v2891
        %v2970 = vpop.f32.mrf.mxu0
        %v2971 = vadd.f32 0.0, %v2970
        %v2972 = vpop.f32.mrf.mxu0
        %v2973 = vadd.f32 0.0, %v2972
        %2974 = vmatmul.bf16.gmra.mxu0 %v2894
        %v2975 = vpop.f32.mrf.mxu0
        %v2976 = vadd.f32 0.0, %v2975
        %v2977 = vpop.f32.mrf.mxu0
        %v2978 = vadd.f32 0.0, %v2977
        %2979 = vmatmul.bf16.gmra.mxu0 %v2897
        %v2980 = vpop.f32.mrf.mxu0
        %v2981 = vadd.f32 0.0, %v2980
        %v2982 = vpop.f32.mrf.mxu0
        %v2983 = vadd.f32 0.0, %v2982
        %2984 = vmatmul.bf16.gmra.mxu0 %v2900
        %v2985 = vpop.f32.mrf.mxu0
        %v2986 = vadd.f32 0.0, %v2985
        %v2987 = vpop.f32.mrf.mxu0
        %v2988 = vadd.f32 0.0, %v2987
        %2989 = vmatmul.bf16.gmra.mxu0 %v2903
        %v2990 = vpop.f32.mrf.mxu0
        %v2991 = vadd.f32 0.0, %v2990
        %v2992 = vpop.f32.mrf.mxu0
        %v2993 = vadd.f32 0.0, %v2992
        %2994 = vmatmul.bf16.gmra.mxu0 %v2906
        %v2995 = vpop.f32.mrf.mxu0
        %v2996 = vadd.f32 0.0, %v2995
        %v2997 = vpop.f32.mrf.mxu0
        %v2998 = vadd.f32 0.0, %v2997
        %2999 = vdwg.mxu0
        %v3000 = vadd.f32 %v2713, %v2921
        %v3001 = vadd.f32 %v2714, %v2923
        %v3002 = vadd.f32 %v2715, %v2926
        %v3003 = vadd.f32 %v2716, %v2928
        %v3004 = vadd.f32 %v2717, %v2931
        %v3005 = vadd.f32 %v2718, %v2933
        %v3006 = vadd.f32 %v2719, %v2936
        %v3007 = vadd.f32 %v2720, %v2938
        %v3008 = vadd.f32 %v2721, %v2941
        %v3009 = vadd.f32 %v2722, %v2943
        %v3010 = vadd.f32 %v2723, %v2946
        %v3011 = vadd.f32 %v2724, %v2948
        %v3012 = vadd.f32 %v2725, %v2951
        %v3013 = vadd.f32 %v2726, %v2953
        %v3014 = vadd.f32 %v2727, %v2956
        %v3015 = vadd.f32 %v2728, %v2958
        %v3016 = vadd.f32 %v2729, %v2961
        %v3017 = vadd.f32 %v2730, %v2963
        %v3018 = vadd.f32 %v2731, %v2966
        %v3019 = vadd.f32 %v2732, %v2968
        %v3020 = vadd.f32 %v2733, %v2971
        %v3021 = vadd.f32 %v2734, %v2973
        %v3022 = vadd.f32 %v2735, %v2976
        %v3023 = vadd.f32 %v2736, %v2978
        %v3024 = vadd.f32 %v2737, %v2981
        %v3025 = vadd.f32 %v2738, %v2983
        %v3026 = vadd.f32 %v2739, %v2986
        %v3027 = vadd.f32 %v2740, %v2988
        %v3028 = vadd.f32 %v2741, %v2991
        %v3029 = vadd.f32 %v2742, %v2993
        %v3030 = vadd.f32 %v2743, %v2996
        %v3031 = vadd.f32 %v2744, %v2998
        %v3032 = vld [vmem:[%s2745] sm:$0xf]
        %v3033 = vld [vmem:[%s2745 + $0x4] sm:$0xf]
        %v3034 = vld [vmem:[%s2745 + $0x8] sm:$0x1]
        %v3035 = vld [vmem:[%s2745 + $0xc] sm:$0xf]
        %v3036 = vld [vmem:[%s2745 + $0x10] sm:$0xf]
        %v3037 = vld [vmem:[%s2745 + $0x14] sm:$0x1]
        %v3038 = vld [vmem:[%s2745 + $0x18] sm:$0xf]
        %v3039 = vld [vmem:[%s2745 + $0x1c] sm:$0xf]
        %v3040 = vld [vmem:[%s2745 + $0x20] sm:$0x1]
        %v3041 = vld [vmem:[%s2745 + $0x24] sm:$0xf]
        %v3042 = vld [vmem:[%s2745 + $0x28] sm:$0xf]
        %v3043 = vld [vmem:[%s2745 + $0x2c] sm:$0x1]
        %v3044 = vld [vmem:[%s2745 + $0x30] sm:$0xf]
        %v3045 = vld [vmem:[%s2745 + $0x34] sm:$0xf]
        %v3046 = vld [vmem:[%s2745 + $0x38] sm:$0x1]
        %v3047 = vld [vmem:[%s2745 + $0x3c] sm:$0xf]
        %v3048 = vld [vmem:[%s2745 + $0x40] sm:$0xf]
        %v3049 = vld [vmem:[%s2745 + $0x44] sm:$0x1]
        %v3050 = vld [vmem:[%s2745 + $0x48] sm:$0xf]
        %v3051 = vld [vmem:[%s2745 + $0x4c] sm:$0xf]
        %v3052 = vld [vmem:[%s2745 + $0x50] sm:$0x1]
        %v3053 = vld [vmem:[%s2745 + $0x54] sm:$0xf]
        %v3054 = vld [vmem:[%s2745 + $0x58] sm:$0xf]
        %v3055 = vld [vmem:[%s2745 + $0x5c] sm:$0x1]
        %v3056 = vld [vmem:[%s2745 + $0x60] sm:$0xf]
        %v3057 = vld [vmem:[%s2745 + $0x64] sm:$0xf]
        %v3058 = vld [vmem:[%s2745 + $0x68] sm:$0x1]
        %v3059 = vld [vmem:[%s2745 + $0x6c] sm:$0xf]
        %v3060 = vld [vmem:[%s2745 + $0x70] sm:$0xf]
        %v3061 = vld [vmem:[%s2745 + $0x74] sm:$0x1]
        %v3062 = vld [vmem:[%s2745 + $0x78] sm:$0xf]
        %v3063 = vld [vmem:[%s2745 + $0x7c] sm:$0xf]
        %v3064 = vld [vmem:[%s2745 + $0x80] sm:$0x1]
        %v3065 = vld [vmem:[%s2745 + $0x84] sm:$0xf]
        %v3066 = vld [vmem:[%s2745 + $0x88] sm:$0xf]
        %v3067 = vld [vmem:[%s2745 + $0x8c] sm:$0x1]
        %v3068 = vld [vmem:[%s2745 + $0x90] sm:$0xf]
        %v3069 = vld [vmem:[%s2745 + $0x94] sm:$0xf]
        %v3070 = vld [vmem:[%s2745 + $0x98] sm:$0x1]
        %v3071 = vld [vmem:[%s2745 + $0x9c] sm:$0xf]
        %v3072 = vld [vmem:[%s2745 + $0xa0] sm:$0xf]
        %v3073 = vld [vmem:[%s2745 + $0xa4] sm:$0x1]
        %v3074 = vld [vmem:[%s2745 + $0xa8] sm:$0xf]
        %v3075 = vld [vmem:[%s2745 + $0xac] sm:$0xf]
        %v3076 = vld [vmem:[%s2745 + $0xb0] sm:$0x1]
        %v3077 = vld [vmem:[%s2745 + $0xb4] sm:$0xf]
        %v3078 = vld [vmem:[%s2745 + $0xb8] sm:$0xf]
        %v3079 = vld [vmem:[%s2745 + $0xbc] sm:$0x1]
        %v3081 = vshrl.u32 %v3032, 16
        %v3083 = vrot.slane %v3081, 4
        %v3084 = vshll.u32 %v3032, 16
        %v3086 = vrot.slane %v3084, 5
        %v3087 = vor.u32 %v3083, %v3086
        %v3088 = vrot.slane %v3087, 4
        %v3090 = vshll.u32 %v3033, 16
        %v3092 = vrot.slane %v3090, 5
        %v3093 = vsel %vm221, %v3088, %v3092
        %v3094 = vshrl.u32 %v3033, 16
        %v3096 = vrot.slane %v3094, 4
        %v3097 = vor.u32 %v3096, %v3092
        %v3098 = vrot.slane %v3097, 4
        %v3100 = vshll.u32 %v3034, 16
        %v3102 = vrot.slane %v3100, 5
        %v3103 = vsel %vm221, %v3098, %v3102
        %v3105 = vshrl.u32 %v3035, 16
        %v3107 = vrot.slane %v3105, 4
        %v3108 = vshll.u32 %v3035, 16
        %v3110 = vrot.slane %v3108, 5
        %v3111 = vor.u32 %v3107, %v3110
        %v3112 = vrot.slane %v3111, 4
        %v3114 = vshll.u32 %v3036, 16
        %v3116 = vrot.slane %v3114, 5
        %v3117 = vsel %vm221, %v3112, %v3116
        %v3118 = vshrl.u32 %v3036, 16
        %v3120 = vrot.slane %v3118, 4
        %v3121 = vor.u32 %v3120, %v3116
        %v3122 = vrot.slane %v3121, 4
        %v3124 = vshll.u32 %v3037, 16
        %v3126 = vrot.slane %v3124, 5
        %v3127 = vsel %vm221, %v3122, %v3126
        %v3129 = vshrl.u32 %v3038, 16
        %v3131 = vrot.slane %v3129, 4
        %v3132 = vshll.u32 %v3038, 16
        %v3134 = vrot.slane %v3132, 5
        %v3135 = vor.u32 %v3131, %v3134
        %v3136 = vrot.slane %v3135, 4
        %v3138 = vshll.u32 %v3039, 16
        %v3140 = vrot.slane %v3138, 5
        %v3141 = vsel %vm221, %v3136, %v3140
        %v3142 = vshrl.u32 %v3039, 16
        %v3144 = vrot.slane %v3142, 4
        %v3145 = vor.u32 %v3144, %v3140
        %v3146 = vrot.slane %v3145, 4
        %v3148 = vshll.u32 %v3040, 16
        %v3150 = vrot.slane %v3148, 5
        %v3151 = vsel %vm221, %v3146, %v3150
        %v3153 = vshrl.u32 %v3041, 16
        %v3155 = vrot.slane %v3153, 4
        %v3156 = vshll.u32 %v3041, 16
        %v3158 = vrot.slane %v3156, 5
        %v3159 = vor.u32 %v3155, %v3158
        %v3160 = vrot.slane %v3159, 4
        %v3162 = vshll.u32 %v3042, 16
        %v3164 = vrot.slane %v3162, 5
        %v3165 = vsel %vm221, %v3160, %v3164
        %v3166 = vshrl.u32 %v3042, 16
        %v3168 = vrot.slane %v3166, 4
        %v3169 = vor.u32 %v3168, %v3164
        %v3170 = vrot.slane %v3169, 4
        %v3172 = vshll.u32 %v3043, 16
        %v3174 = vrot.slane %v3172, 5
        %v3175 = vsel %vm221, %v3170, %v3174
        %v3177 = vshrl.u32 %v3044, 16
        %v3179 = vrot.slane %v3177, 4
        %v3180 = vshll.u32 %v3044, 16
        %v3182 = vrot.slane %v3180, 5
        %v3183 = vor.u32 %v3179, %v3182
        %v3184 = vrot.slane %v3183, 4
        %v3186 = vshll.u32 %v3045, 16
        %v3188 = vrot.slane %v3186, 5
        %v3189 = vsel %vm221, %v3184, %v3188
        %v3190 = vshrl.u32 %v3045, 16
        %v3192 = vrot.slane %v3190, 4
        %v3193 = vor.u32 %v3192, %v3188
        %v3194 = vrot.slane %v3193, 4
        %v3196 = vshll.u32 %v3046, 16
        %v3198 = vrot.slane %v3196, 5
        %v3199 = vsel %vm221, %v3194, %v3198
        %v3201 = vshrl.u32 %v3047, 16
        %v3203 = vrot.slane %v3201, 4
        %v3204 = vshll.u32 %v3047, 16
        %v3206 = vrot.slane %v3204, 5
        %v3207 = vor.u32 %v3203, %v3206
        %v3208 = vrot.slane %v3207, 4
        %v3210 = vshll.u32 %v3048, 16
        %v3212 = vrot.slane %v3210, 5
        %v3213 = vsel %vm221, %v3208, %v3212
        %v3214 = vshrl.u32 %v3048, 16
        %v3216 = vrot.slane %v3214, 4
        %v3217 = vor.u32 %v3216, %v3212
        %v3218 = vrot.slane %v3217, 4
        %v3220 = vshll.u32 %v3049, 16
        %v3222 = vrot.slane %v3220, 5
        %v3223 = vsel %vm221, %v3218, %v3222
        %v3225 = vshrl.u32 %v3050, 16
        %v3227 = vrot.slane %v3225, 4
        %v3228 = vshll.u32 %v3050, 16
        %v3230 = vrot.slane %v3228, 5
        %v3231 = vor.u32 %v3227, %v3230
        %v3232 = vrot.slane %v3231, 4
        %v3234 = vshll.u32 %v3051, 16
        %v3236 = vrot.slane %v3234, 5
        %v3237 = vsel %vm221, %v3232, %v3236
        %v3238 = vshrl.u32 %v3051, 16
        %v3240 = vrot.slane %v3238, 4
        %v3241 = vor.u32 %v3240, %v3236
        %v3242 = vrot.slane %v3241, 4
        %v3244 = vshll.u32 %v3052, 16
        %v3246 = vrot.slane %v3244, 5
        %v3247 = vsel %vm221, %v3242, %v3246
        %v3249 = vshrl.u32 %v3053, 16
        %v3251 = vrot.slane %v3249, 4
        %v3252 = vshll.u32 %v3053, 16
        %v3254 = vrot.slane %v3252, 5
        %v3255 = vor.u32 %v3251, %v3254
        %v3256 = vrot.slane %v3255, 4
        %v3258 = vshll.u32 %v3054, 16
        %v3260 = vrot.slane %v3258, 5
        %v3261 = vsel %vm221, %v3256, %v3260
        %v3262 = vshrl.u32 %v3054, 16
        %v3264 = vrot.slane %v3262, 4
        %v3265 = vor.u32 %v3264, %v3260
        %v3266 = vrot.slane %v3265, 4
        %v3268 = vshll.u32 %v3055, 16
        %v3270 = vrot.slane %v3268, 5
        %v3271 = vsel %vm221, %v3266, %v3270
        %v3273 = vshrl.u32 %v3056, 16
        %v3275 = vrot.slane %v3273, 4
        %v3276 = vshll.u32 %v3056, 16
        %v3278 = vrot.slane %v3276, 5
        %v3279 = vor.u32 %v3275, %v3278
        %v3280 = vrot.slane %v3279, 4
        %v3282 = vshll.u32 %v3057, 16
        %v3284 = vrot.slane %v3282, 5
        %v3285 = vsel %vm221, %v3280, %v3284
        %v3286 = vshrl.u32 %v3057, 16
        %v3288 = vrot.slane %v3286, 4
        %v3289 = vor.u32 %v3288, %v3284
        %v3290 = vrot.slane %v3289, 4
        %v3292 = vshll.u32 %v3058, 16
        %v3294 = vrot.slane %v3292, 5
        %v3295 = vsel %vm221, %v3290, %v3294
        %v3297 = vshrl.u32 %v3059, 16
        %v3299 = vrot.slane %v3297, 4
        %v3300 = vshll.u32 %v3059, 16
        %v3302 = vrot.slane %v3300, 5
        %v3303 = vor.u32 %v3299, %v3302
        %v3304 = vrot.slane %v3303, 4
        %v3306 = vshll.u32 %v3060, 16
        %v3308 = vrot.slane %v3306, 5
        %v3309 = vsel %vm221, %v3304, %v3308
        %v3310 = vshrl.u32 %v3060, 16
        %v3312 = vrot.slane %v3310, 4
        %v3313 = vor.u32 %v3312, %v3308
        %v3314 = vrot.slane %v3313, 4
        %v3316 = vshll.u32 %v3061, 16
        %v3318 = vrot.slane %v3316, 5
        %v3319 = vsel %vm221, %v3314, %v3318
        %v3321 = vshrl.u32 %v3062, 16
        %v3323 = vrot.slane %v3321, 4
        %v3324 = vshll.u32 %v3062, 16
        %v3326 = vrot.slane %v3324, 5
        %v3327 = vor.u32 %v3323, %v3326
        %v3328 = vrot.slane %v3327, 4
        %v3330 = vshll.u32 %v3063, 16
        %v3332 = vrot.slane %v3330, 5
        %v3333 = vsel %vm221, %v3328, %v3332
        %v3334 = vshrl.u32 %v3063, 16
        %v3336 = vrot.slane %v3334, 4
        %v3337 = vor.u32 %v3336, %v3332
        %v3338 = vrot.slane %v3337, 4
        %v3340 = vshll.u32 %v3064, 16
        %v3342 = vrot.slane %v3340, 5
        %v3343 = vsel %vm221, %v3338, %v3342
        %v3345 = vshrl.u32 %v3065, 16
        %v3347 = vrot.slane %v3345, 4
        %v3348 = vshll.u32 %v3065, 16
        %v3350 = vrot.slane %v3348, 5
        %v3351 = vor.u32 %v3347, %v3350
        %v3352 = vrot.slane %v3351, 4
        %v3354 = vshll.u32 %v3066, 16
        %v3356 = vrot.slane %v3354, 5
        %v3357 = vsel %vm221, %v3352, %v3356
        %v3358 = vshrl.u32 %v3066, 16
        %v3360 = vrot.slane %v3358, 4
        %v3361 = vor.u32 %v3360, %v3356
        %v3362 = vrot.slane %v3361, 4
        %v3364 = vshll.u32 %v3067, 16
        %v3366 = vrot.slane %v3364, 5
        %v3367 = vsel %vm221, %v3362, %v3366
        %v3369 = vshrl.u32 %v3068, 16
        %v3371 = vrot.slane %v3369, 4
        %v3372 = vshll.u32 %v3068, 16
        %v3374 = vrot.slane %v3372, 5
        %v3375 = vor.u32 %v3371, %v3374
        %v3376 = vrot.slane %v3375, 4
        %v3378 = vshll.u32 %v3069, 16
        %v3380 = vrot.slane %v3378, 5
        %v3381 = vsel %vm221, %v3376, %v3380
        %v3382 = vshrl.u32 %v3069, 16
        %v3384 = vrot.slane %v3382, 4
        %v3385 = vor.u32 %v3384, %v3380
        %v3386 = vrot.slane %v3385, 4
        %v3388 = vshll.u32 %v3070, 16
        %v3390 = vrot.slane %v3388, 5
        %v3391 = vsel %vm221, %v3386, %v3390
        %v3393 = vshrl.u32 %v3071, 16
        %v3395 = vrot.slane %v3393, 4
        %v3396 = vshll.u32 %v3071, 16
        %v3398 = vrot.slane %v3396, 5
        %v3399 = vor.u32 %v3395, %v3398
        %v3400 = vrot.slane %v3399, 4
        %v3402 = vshll.u32 %v3072, 16
        %v3404 = vrot.slane %v3402, 5
        %v3405 = vsel %vm221, %v3400, %v3404
        %v3406 = vshrl.u32 %v3072, 16
        %v3408 = vrot.slane %v3406, 4
        %v3409 = vor.u32 %v3408, %v3404
        %v3410 = vrot.slane %v3409, 4
        %v3412 = vshll.u32 %v3073, 16
        %v3414 = vrot.slane %v3412, 5
        %v3415 = vsel %vm221, %v3410, %v3414
        %v3417 = vshrl.u32 %v3074, 16
        %v3419 = vrot.slane %v3417, 4
        %v3420 = vshll.u32 %v3074, 16
        %v3422 = vrot.slane %v3420, 5
        %v3423 = vor.u32 %v3419, %v3422
        %v3424 = vrot.slane %v3423, 4
        %v3426 = vshll.u32 %v3075, 16
        %v3428 = vrot.slane %v3426, 5
        %v3429 = vsel %vm221, %v3424, %v3428
        %v3430 = vshrl.u32 %v3075, 16
        %v3432 = vrot.slane %v3430, 4
        %v3433 = vor.u32 %v3432, %v3428
        %v3434 = vrot.slane %v3433, 4
        %v3436 = vshll.u32 %v3076, 16
        %v3438 = vrot.slane %v3436, 5
        %v3439 = vsel %vm221, %v3434, %v3438
        %v3441 = vshrl.u32 %v3077, 16
        %v3443 = vrot.slane %v3441, 4
        %v3444 = vshll.u32 %v3077, 16
        %v3446 = vrot.slane %v3444, 5
        %v3447 = vor.u32 %v3443, %v3446
        %v3448 = vrot.slane %v3447, 4
        %v3450 = vshll.u32 %v3078, 16
        %v3452 = vrot.slane %v3450, 5
        %v3453 = vsel %vm221, %v3448, %v3452
        %v3454 = vshrl.u32 %v3078, 16
        %v3456 = vrot.slane %v3454, 4
        %v3457 = vor.u32 %v3456, %v3452
        %v3458 = vrot.slane %v3457, 4
        %v3460 = vshll.u32 %v3079, 16
        %v3462 = vrot.slane %v3460, 5
        %v3463 = vsel %vm221, %v3458, %v3462
        %s3464 = scalar_lea.vmem %s1, 14
        %v3465 = vld [vmem:[%s3464] sm:$0x3]
        %v3466 = vunpack.c.l.b16 %v3093
        %v3467 = vunpack.c.l.b16 %v3103
        %v3468 = vunpack.c.l.b16 %v3117
        %v3469 = vunpack.c.l.b16 %v3127
        %v3470 = vunpack.c.l.b16 %v3141
        %v3471 = vunpack.c.l.b16 %v3151
        %v3472 = vunpack.c.l.b16 %v3165
        %v3473 = vunpack.c.l.b16 %v3175
        %v3474 = vunpack.c.l.b16 %v3189
        %v3475 = vunpack.c.l.b16 %v3199
        %v3476 = vunpack.c.l.b16 %v3213
        %v3477 = vunpack.c.l.b16 %v3223
        %v3478 = vunpack.c.l.b16 %v3237
        %v3479 = vunpack.c.l.b16 %v3247
        %v3480 = vunpack.c.l.b16 %v3261
        %v3481 = vunpack.c.l.b16 %v3271
        %v3482 = vunpack.c.l.b16 %v3285
        %v3483 = vunpack.c.l.b16 %v3295
        %v3484 = vunpack.c.l.b16 %v3309
        %v3485 = vunpack.c.l.b16 %v3319
        %v3486 = vunpack.c.l.b16 %v3333
        %v3487 = vunpack.c.l.b16 %v3343
        %v3488 = vunpack.c.l.b16 %v3357
        %v3489 = vunpack.c.l.b16 %v3367
        %v3490 = vunpack.c.l.b16 %v3381
        %v3491 = vunpack.c.l.b16 %v3391
        %v3492 = vunpack.c.l.b16 %v3405
        %v3493 = vunpack.c.l.b16 %v3415
        %v3494 = vunpack.c.l.b16 %v3429
        %v3495 = vunpack.c.l.b16 %v3439
        %v3496 = vunpack.c.l.b16 %v3453
        %v3497 = vunpack.c.l.b16 %v3463
        %v3498 = vpack.c.b16 %v3467, %v3466
        %v3499 = vpack.c.b16 %v3469, %v3468
        %v3500 = vpack.c.b16 %v3471, %v3470
        %v3501 = vpack.c.b16 %v3473, %v3472
        %v3502 = vpack.c.b16 %v3475, %v3474
        %v3503 = vpack.c.b16 %v3477, %v3476
        %v3504 = vpack.c.b16 %v3479, %v3478
        %v3505 = vpack.c.b16 %v3481, %v3480
        %v3506 = vpack.c.b16 %v3483, %v3482
        %v3507 = vpack.c.b16 %v3485, %v3484
        %v3508 = vpack.c.b16 %v3487, %v3486
        %v3509 = vpack.c.b16 %v3489, %v3488
        %v3510 = vpack.c.b16 %v3491, %v3490
        %v3511 = vpack.c.b16 %v3493, %v3492
        %v3512 = vpack.c.b16 %v3495, %v3494
        %v3513 = vpack.c.b16 %v3497, %v3496
        %v3515 = vsel %vm656, %v3498, 0
        %v3518 = vsel %vm656, %v3499, 0
        %v3521 = vsel %vm656, %v3500, 0
        %v3524 = vsel %vm656, %v3501, 0
        %v3527 = vsel %vm656, %v3502, 0
        %v3530 = vsel %vm656, %v3503, 0
        %v3533 = vsel %vm656, %v3504, 0
        %v3536 = vsel %vm656, %v3505, 0
        %v3539 = vsel %vm656, %v3506, 0
        %v3542 = vsel %vm656, %v3507, 0
        %v3545 = vsel %vm656, %v3508, 0
        %v3548 = vsel %vm656, %v3509, 0
        %v3551 = vsel %vm656, %v3510, 0
        %v3554 = vsel %vm656, %v3511, 0
        %v3557 = vsel %vm656, %v3512, 0
        %v3560 = vsel %vm656, %v3513, 0
        %v3563 = vand.u32 %v3465, %v708
        %3565 = vmatpush.bf16.msra.mxu0 0
        %3566 = vmatpush.bf16.msra.mxu0 0
        %3567 = vmatpush.bf16.msra.mxu0 0
        %3568 = vmatpush.bf16.msra.mxu0 0
        %3569 = vmatpush.bf16.msra.mxu0 0
        %3570 = vmatpush.bf16.msra.mxu0 0
        %3571 = vmatpush.bf16.msra.mxu0 0
        %3572 = vmatpush.bf16.msra.mxu0 %v3563
        %3573 = vmatmul.bf16.gmra.mxu0 %v3515
        %v3574 = vpop.f32.mrf.mxu0
        %v3575 = vadd.f32 0.0, %v3574
        %v3576 = vpop.f32.mrf.mxu0
        %v3577 = vadd.f32 0.0, %v3576
        %3578 = vmatmul.bf16.gmra.mxu0 %v3518
        %v3579 = vpop.f32.mrf.mxu0
        %v3580 = vadd.f32 0.0, %v3579
        %v3581 = vpop.f32.mrf.mxu0
        %v3582 = vadd.f32 0.0, %v3581
        %3583 = vmatmul.bf16.gmra.mxu0 %v3521
        %v3584 = vpop.f32.mrf.mxu0
        %v3585 = vadd.f32 0.0, %v3584
        %v3586 = vpop.f32.mrf.mxu0
        %v3587 = vadd.f32 0.0, %v3586
        %3588 = vmatmul.bf16.gmra.mxu0 %v3524
        %v3589 = vpop.f32.mrf.mxu0
        %v3590 = vadd.f32 0.0, %v3589
        %v3591 = vpop.f32.mrf.mxu0
        %v3592 = vadd.f32 0.0, %v3591
        %3593 = vmatmul.bf16.gmra.mxu0 %v3527
        %v3594 = vpop.f32.mrf.mxu0
        %v3595 = vadd.f32 0.0, %v3594
        %v3596 = vpop.f32.mrf.mxu0
        %v3597 = vadd.f32 0.0, %v3596
        %3598 = vmatmul.bf16.gmra.mxu0 %v3530
        %v3599 = vpop.f32.mrf.mxu0
        %v3600 = vadd.f32 0.0, %v3599
        %v3601 = vpop.f32.mrf.mxu0
        %v3602 = vadd.f32 0.0, %v3601
        %3603 = vmatmul.bf16.gmra.mxu0 %v3533
        %v3604 = vpop.f32.mrf.mxu0
        %v3605 = vadd.f32 0.0, %v3604
        %v3606 = vpop.f32.mrf.mxu0
        %v3607 = vadd.f32 0.0, %v3606
        %3608 = vmatmul.bf16.gmra.mxu0 %v3536
        %v3609 = vpop.f32.mrf.mxu0
        %v3610 = vadd.f32 0.0, %v3609
        %v3611 = vpop.f32.mrf.mxu0
        %v3612 = vadd.f32 0.0, %v3611
        %3613 = vmatmul.bf16.gmra.mxu0 %v3539
        %v3614 = vpop.f32.mrf.mxu0
        %v3615 = vadd.f32 0.0, %v3614
        %v3616 = vpop.f32.mrf.mxu0
        %v3617 = vadd.f32 0.0, %v3616
        %3618 = vmatmul.bf16.gmra.mxu0 %v3542
        %v3619 = vpop.f32.mrf.mxu0
        %v3620 = vadd.f32 0.0, %v3619
        %v3621 = vpop.f32.mrf.mxu0
        %v3622 = vadd.f32 0.0, %v3621
        %3623 = vmatmul.bf16.gmra.mxu0 %v3545
        %v3624 = vpop.f32.mrf.mxu0
        %v3625 = vadd.f32 0.0, %v3624
        %v3626 = vpop.f32.mrf.mxu0
        %v3627 = vadd.f32 0.0, %v3626
        %3628 = vmatmul.bf16.gmra.mxu0 %v3548
        %v3629 = vpop.f32.mrf.mxu0
        %v3630 = vadd.f32 0.0, %v3629
        %v3631 = vpop.f32.mrf.mxu0
        %v3632 = vadd.f32 0.0, %v3631
        %3633 = vmatmul.bf16.gmra.mxu0 %v3551
        %v3634 = vpop.f32.mrf.mxu0
        %v3635 = vadd.f32 0.0, %v3634
        %v3636 = vpop.f32.mrf.mxu0
        %v3637 = vadd.f32 0.0, %v3636
        %3638 = vmatmul.bf16.gmra.mxu0 %v3554
        %v3639 = vpop.f32.mrf.mxu0
        %v3640 = vadd.f32 0.0, %v3639
        %v3641 = vpop.f32.mrf.mxu0
        %v3642 = vadd.f32 0.0, %v3641
        %3643 = vmatmul.bf16.gmra.mxu0 %v3557
        %v3644 = vpop.f32.mrf.mxu0
        %v3645 = vadd.f32 0.0, %v3644
        %v3646 = vpop.f32.mrf.mxu0
        %v3647 = vadd.f32 0.0, %v3646
        %3648 = vmatmul.bf16.gmra.mxu0 %v3560
        %v3649 = vpop.f32.mrf.mxu0
        %v3650 = vadd.f32 0.0, %v3649
        %v3651 = vpop.f32.mrf.mxu0
        %v3652 = vadd.f32 0.0, %v3651
        %3653 = vdwg.mxu0
        %v3654 = vadd.f32 %v3000, %v3575
        %v3655 = vadd.f32 %v3001, %v3577
        %v3656 = vadd.f32 %v3002, %v3580
        %v3657 = vadd.f32 %v3003, %v3582
        %v3658 = vadd.f32 %v3004, %v3585
        %v3659 = vadd.f32 %v3005, %v3587
        %v3660 = vadd.f32 %v3006, %v3590
        %v3661 = vadd.f32 %v3007, %v3592
        %v3662 = vadd.f32 %v3008, %v3595
        %v3663 = vadd.f32 %v3009, %v3597
        %v3664 = vadd.f32 %v3010, %v3600
        %v3665 = vadd.f32 %v3011, %v3602
        %v3666 = vadd.f32 %v3012, %v3605
        %v3667 = vadd.f32 %v3013, %v3607
        %v3668 = vadd.f32 %v3014, %v3610
        %v3669 = vadd.f32 %v3015, %v3612
        %v3670 = vadd.f32 %v3016, %v3615
        %v3671 = vadd.f32 %v3017, %v3617
        %v3672 = vadd.f32 %v3018, %v3620
        %v3673 = vadd.f32 %v3019, %v3622
        %v3674 = vadd.f32 %v3020, %v3625
        %v3675 = vadd.f32 %v3021, %v3627
        %v3676 = vadd.f32 %v3022, %v3630
        %v3677 = vadd.f32 %v3023, %v3632
        %v3678 = vadd.f32 %v3024, %v3635
        %v3679 = vadd.f32 %v3025, %v3637
        %v3680 = vadd.f32 %v3026, %v3640
        %v3681 = vadd.f32 %v3027, %v3642
        %v3682 = vadd.f32 %v3028, %v3645
        %v3683 = vadd.f32 %v3029, %v3647
        %v3684 = vadd.f32 %v3030, %v3650
        %v3685 = vadd.f32 %v3031, %v3652
        %v3686 = vld [vmem:[%s2745] sm:$0xe]
        %v3687 = vld [vmem:[%s2745 + $0xc] sm:$0xe]
        %v3688 = vld [vmem:[%s2745 + $0x18] sm:$0xe]
        %v3689 = vld [vmem:[%s2745 + $0x24] sm:$0xe]
        %v3690 = vld [vmem:[%s2745 + $0x30] sm:$0xe]
        %v3691 = vld [vmem:[%s2745 + $0x3c] sm:$0xe]
        %v3692 = vld [vmem:[%s2745 + $0x48] sm:$0xe]
        %v3693 = vld [vmem:[%s2745 + $0x54] sm:$0xe]
        %v3694 = vld [vmem:[%s2745 + $0x60] sm:$0xe]
        %v3695 = vld [vmem:[%s2745 + $0x6c] sm:$0xe]
        %v3696 = vld [vmem:[%s2745 + $0x78] sm:$0xe]
        %v3697 = vld [vmem:[%s2745 + $0x84] sm:$0xe]
        %v3698 = vld [vmem:[%s2745 + $0x90] sm:$0xe]
        %v3699 = vld [vmem:[%s2745 + $0x9c] sm:$0xe]
        %v3700 = vld [vmem:[%s2745 + $0xa8] sm:$0xe]
        %v3701 = vld [vmem:[%s2745 + $0xb4] sm:$0xe]
        %v3750 = vrot.slane %v3686, 5
        %v3751 = vrot.slane %v3750, 4
        %v3752 = vrot.slane %v3033, 5
        %v3753 = vsel %vm1071, %v3751, %v3752
        %v3754 = vrot.slane %v3752, 4
        %v3755 = vrot.slane %v3034, 5
        %v3756 = vsel %vm1071, %v3754, %v3755
        %v3757 = vrot.slane %v3687, 5
        %v3758 = vrot.slane %v3757, 4
        %v3759 = vrot.slane %v3036, 5
        %v3760 = vsel %vm1071, %v3758, %v3759
        %v3761 = vrot.slane %v3759, 4
        %v3762 = vrot.slane %v3037, 5
        %v3763 = vsel %vm1071, %v3761, %v3762
        %v3764 = vrot.slane %v3688, 5
        %v3765 = vrot.slane %v3764, 4
        %v3766 = vrot.slane %v3039, 5
        %v3767 = vsel %vm1071, %v3765, %v3766
        %v3768 = vrot.slane %v3766, 4
        %v3769 = vrot.slane %v3040, 5
        %v3770 = vsel %vm1071, %v3768, %v3769
        %v3771 = vrot.slane %v3689, 5
        %v3772 = vrot.slane %v3771, 4
        %v3773 = vrot.slane %v3042, 5
        %v3774 = vsel %vm1071, %v3772, %v3773
        %v3775 = vrot.slane %v3773, 4
        %v3776 = vrot.slane %v3043, 5
        %v3777 = vsel %vm1071, %v3775, %v3776
        %v3778 = vrot.slane %v3690, 5
        %v3779 = vrot.slane %v3778, 4
        %v3780 = vrot.slane %v3045, 5
        %v3781 = vsel %vm1071, %v3779, %v3780
        %v3782 = vrot.slane %v3780, 4
        %v3783 = vrot.slane %v3046, 5
        %v3784 = vsel %vm1071, %v3782, %v3783
        %v3785 = vrot.slane %v3691, 5
        %v3786 = vrot.slane %v3785, 4
        %v3787 = vrot.slane %v3048, 5
        %v3788 = vsel %vm1071, %v3786, %v3787
        %v3789 = vrot.slane %v3787, 4
        %v3790 = vrot.slane %v3049, 5
        %v3791 = vsel %vm1071, %v3789, %v3790
        %v3792 = vrot.slane %v3692, 5
        %v3793 = vrot.slane %v3792, 4
        %v3794 = vrot.slane %v3051, 5
        %v3795 = vsel %vm1071, %v3793, %v3794
        %v3796 = vrot.slane %v3794, 4
        %v3797 = vrot.slane %v3052, 5
        %v3798 = vsel %vm1071, %v3796, %v3797
        %v3799 = vrot.slane %v3693, 5
        %v3800 = vrot.slane %v3799, 4
        %v3801 = vrot.slane %v3054, 5
        %v3802 = vsel %vm1071, %v3800, %v3801
        %v3803 = vrot.slane %v3801, 4
        %v3804 = vrot.slane %v3055, 5
        %v3805 = vsel %vm1071, %v3803, %v3804
        %v3806 = vrot.slane %v3694, 5
        %v3807 = vrot.slane %v3806, 4
        %v3808 = vrot.slane %v3057, 5
        %v3809 = vsel %vm1071, %v3807, %v3808
        %v3810 = vrot.slane %v3808, 4
        %v3811 = vrot.slane %v3058, 5
        %v3812 = vsel %vm1071, %v3810, %v3811
        %v3813 = vrot.slane %v3695, 5
        %v3814 = vrot.slane %v3813, 4
        %v3815 = vrot.slane %v3060, 5
        %v3816 = vsel %vm1071, %v3814, %v3815
        %v3817 = vrot.slane %v3815, 4
        %v3818 = vrot.slane %v3061, 5
        %v3819 = vsel %vm1071, %v3817, %v3818
        %v3820 = vrot.slane %v3696, 5
        %v3821 = vrot.slane %v3820, 4
        %v3822 = vrot.slane %v3063, 5
        %v3823 = vsel %vm1071, %v3821, %v3822
        %v3824 = vrot.slane %v3822, 4
        %v3825 = vrot.slane %v3064, 5
        %v3826 = vsel %vm1071, %v3824, %v3825
        %v3827 = vrot.slane %v3697, 5
        %v3828 = vrot.slane %v3827, 4
        %v3829 = vrot.slane %v3066, 5
        %v3830 = vsel %vm1071, %v3828, %v3829
        %v3831 = vrot.slane %v3829, 4
        %v3832 = vrot.slane %v3067, 5
        %v3833 = vsel %vm1071, %v3831, %v3832
        %v3834 = vrot.slane %v3698, 5
        %v3835 = vrot.slane %v3834, 4
        %v3836 = vrot.slane %v3069, 5
        %v3837 = vsel %vm1071, %v3835, %v3836
        %v3838 = vrot.slane %v3836, 4
        %v3839 = vrot.slane %v3070, 5
        %v3840 = vsel %vm1071, %v3838, %v3839
        %v3841 = vrot.slane %v3699, 5
        %v3842 = vrot.slane %v3841, 4
        %v3843 = vrot.slane %v3072, 5
        %v3844 = vsel %vm1071, %v3842, %v3843
        %v3845 = vrot.slane %v3843, 4
        %v3846 = vrot.slane %v3073, 5
        %v3847 = vsel %vm1071, %v3845, %v3846
        %v3848 = vrot.slane %v3700, 5
        %v3849 = vrot.slane %v3848, 4
        %v3850 = vrot.slane %v3075, 5
        %v3851 = vsel %vm1071, %v3849, %v3850
        %v3852 = vrot.slane %v3850, 4
        %v3853 = vrot.slane %v3076, 5
        %v3854 = vsel %vm1071, %v3852, %v3853
        %v3855 = vrot.slane %v3701, 5
        %v3856 = vrot.slane %v3855, 4
        %v3857 = vrot.slane %v3078, 5
        %v3858 = vsel %vm1071, %v3856, %v3857
        %v3859 = vrot.slane %v3857, 4
        %v3860 = vrot.slane %v3079, 5
        %v3861 = vsel %vm1071, %v3859, %v3860
        %s3862 = scalar_lea.vmem %s1, 16
        %v3863 = vld [vmem:[%s3862] sm:$0x3]
        %v3864 = vunpack.c.l.b16 %v3753
        %v3865 = vunpack.c.l.b16 %v3756
        %v3866 = vunpack.c.l.b16 %v3760
        %v3867 = vunpack.c.l.b16 %v3763
        %v3868 = vunpack.c.l.b16 %v3767
        %v3869 = vunpack.c.l.b16 %v3770
        %v3870 = vunpack.c.l.b16 %v3774
        %v3871 = vunpack.c.l.b16 %v3777
        %v3872 = vunpack.c.l.b16 %v3781
        %v3873 = vunpack.c.l.b16 %v3784
        %v3874 = vunpack.c.l.b16 %v3788
        %v3875 = vunpack.c.l.b16 %v3791
        %v3876 = vunpack.c.l.b16 %v3795
        %v3877 = vunpack.c.l.b16 %v3798
        %v3878 = vunpack.c.l.b16 %v3802
        %v3879 = vunpack.c.l.b16 %v3805
        %v3880 = vunpack.c.l.b16 %v3809
        %v3881 = vunpack.c.l.b16 %v3812
        %v3882 = vunpack.c.l.b16 %v3816
        %v3883 = vunpack.c.l.b16 %v3819
        %v3884 = vunpack.c.l.b16 %v3823
        %v3885 = vunpack.c.l.b16 %v3826
        %v3886 = vunpack.c.l.b16 %v3830
        %v3887 = vunpack.c.l.b16 %v3833
        %v3888 = vunpack.c.l.b16 %v3837
        %v3889 = vunpack.c.l.b16 %v3840
        %v3890 = vunpack.c.l.b16 %v3844
        %v3891 = vunpack.c.l.b16 %v3847
        %v3892 = vunpack.c.l.b16 %v3851
        %v3893 = vunpack.c.l.b16 %v3854
        %v3894 = vunpack.c.l.b16 %v3858
        %v3895 = vunpack.c.l.b16 %v3861
        %v3896 = vpack.c.b16 %v3865, %v3864
        %v3897 = vpack.c.b16 %v3867, %v3866
        %v3898 = vpack.c.b16 %v3869, %v3868
        %v3899 = vpack.c.b16 %v3871, %v3870
        %v3900 = vpack.c.b16 %v3873, %v3872
        %v3901 = vpack.c.b16 %v3875, %v3874
        %v3902 = vpack.c.b16 %v3877, %v3876
        %v3903 = vpack.c.b16 %v3879, %v3878
        %v3904 = vpack.c.b16 %v3881, %v3880
        %v3905 = vpack.c.b16 %v3883, %v3882
        %v3906 = vpack.c.b16 %v3885, %v3884
        %v3907 = vpack.c.b16 %v3887, %v3886
        %v3908 = vpack.c.b16 %v3889, %v3888
        %v3909 = vpack.c.b16 %v3891, %v3890
        %v3910 = vpack.c.b16 %v3893, %v3892
        %v3911 = vpack.c.b16 %v3895, %v3894
        %v3913 = vsel %vm656, %v3896, 0
        %v3916 = vsel %vm656, %v3897, 0
        %v3919 = vsel %vm656, %v3898, 0
        %v3922 = vsel %vm656, %v3899, 0
        %v3925 = vsel %vm656, %v3900, 0
        %v3928 = vsel %vm656, %v3901, 0
        %v3931 = vsel %vm656, %v3902, 0
        %v3934 = vsel %vm656, %v3903, 0
        %v3937 = vsel %vm656, %v3904, 0
        %v3940 = vsel %vm656, %v3905, 0
        %v3943 = vsel %vm656, %v3906, 0
        %v3946 = vsel %vm656, %v3907, 0
        %v3949 = vsel %vm656, %v3908, 0
        %v3952 = vsel %vm656, %v3909, 0
        %v3955 = vsel %vm656, %v3910, 0
        %v3958 = vsel %vm656, %v3911, 0
        %v3961 = vand.u32 %v3863, %v708
        %3963 = vmatpush.bf16.msra.mxu0 0
        %3964 = vmatpush.bf16.msra.mxu0 0
        %3965 = vmatpush.bf16.msra.mxu0 0
        %3966 = vmatpush.bf16.msra.mxu0 0
        %3967 = vmatpush.bf16.msra.mxu0 0
        %3968 = vmatpush.bf16.msra.mxu0 0
        %3969 = vmatpush.bf16.msra.mxu0 0
        %3970 = vmatpush.bf16.msra.mxu0 %v3961
        %3971 = vmatmul.bf16.gmra.mxu0 %v3913
        %v3972 = vpop.f32.mrf.mxu0
        %v3973 = vadd.f32 0.0, %v3972
        %v3974 = vpop.f32.mrf.mxu0
        %v3975 = vadd.f32 0.0, %v3974
        %3976 = vmatmul.bf16.gmra.mxu0 %v3916
        %v3977 = vpop.f32.mrf.mxu0
        %v3978 = vadd.f32 0.0, %v3977
        %v3979 = vpop.f32.mrf.mxu0
        %v3980 = vadd.f32 0.0, %v3979
        %3981 = vmatmul.bf16.gmra.mxu0 %v3919
        %v3982 = vpop.f32.mrf.mxu0
        %v3983 = vadd.f32 0.0, %v3982
        %v3984 = vpop.f32.mrf.mxu0
        %v3985 = vadd.f32 0.0, %v3984
        %3986 = vmatmul.bf16.gmra.mxu0 %v3922
        %v3987 = vpop.f32.mrf.mxu0
        %v3988 = vadd.f32 0.0, %v3987
        %v3989 = vpop.f32.mrf.mxu0
        %v3990 = vadd.f32 0.0, %v3989
        %3991 = vmatmul.bf16.gmra.mxu0 %v3925
        %v3992 = vpop.f32.mrf.mxu0
        %v3993 = vadd.f32 0.0, %v3992
        %v3994 = vpop.f32.mrf.mxu0
        %v3995 = vadd.f32 0.0, %v3994
        %3996 = vmatmul.bf16.gmra.mxu0 %v3928
        %v3997 = vpop.f32.mrf.mxu0
        %v3998 = vadd.f32 0.0, %v3997
        %v3999 = vpop.f32.mrf.mxu0
        %v4000 = vadd.f32 0.0, %v3999
        %4001 = vmatmul.bf16.gmra.mxu0 %v3931
        %v4002 = vpop.f32.mrf.mxu0
        %v4003 = vadd.f32 0.0, %v4002
        %v4004 = vpop.f32.mrf.mxu0
        %v4005 = vadd.f32 0.0, %v4004
        %4006 = vmatmul.bf16.gmra.mxu0 %v3934
        %v4007 = vpop.f32.mrf.mxu0
        %v4008 = vadd.f32 0.0, %v4007
        %v4009 = vpop.f32.mrf.mxu0
        %v4010 = vadd.f32 0.0, %v4009
        %4011 = vmatmul.bf16.gmra.mxu0 %v3937
        %v4012 = vpop.f32.mrf.mxu0
        %v4013 = vadd.f32 0.0, %v4012
        %v4014 = vpop.f32.mrf.mxu0
        %v4015 = vadd.f32 0.0, %v4014
        %4016 = vmatmul.bf16.gmra.mxu0 %v3940
        %v4017 = vpop.f32.mrf.mxu0
        %v4018 = vadd.f32 0.0, %v4017
        %v4019 = vpop.f32.mrf.mxu0
        %v4020 = vadd.f32 0.0, %v4019
        %4021 = vmatmul.bf16.gmra.mxu0 %v3943
        %v4022 = vpop.f32.mrf.mxu0
        %v4023 = vadd.f32 0.0, %v4022
        %v4024 = vpop.f32.mrf.mxu0
        %v4025 = vadd.f32 0.0, %v4024
        %4026 = vmatmul.bf16.gmra.mxu0 %v3946
        %v4027 = vpop.f32.mrf.mxu0
        %v4028 = vadd.f32 0.0, %v4027
        %v4029 = vpop.f32.mrf.mxu0
        %v4030 = vadd.f32 0.0, %v4029
        %4031 = vmatmul.bf16.gmra.mxu0 %v3949
        %v4032 = vpop.f32.mrf.mxu0
        %v4033 = vadd.f32 0.0, %v4032
        %v4034 = vpop.f32.mrf.mxu0
        %v4035 = vadd.f32 0.0, %v4034
        %4036 = vmatmul.bf16.gmra.mxu0 %v3952
        %v4037 = vpop.f32.mrf.mxu0
        %v4038 = vadd.f32 0.0, %v4037
        %v4039 = vpop.f32.mrf.mxu0
        %v4040 = vadd.f32 0.0, %v4039
        %4041 = vmatmul.bf16.gmra.mxu0 %v3955
        %v4042 = vpop.f32.mrf.mxu0
        %v4043 = vadd.f32 0.0, %v4042
        %v4044 = vpop.f32.mrf.mxu0
        %v4045 = vadd.f32 0.0, %v4044
        %4046 = vmatmul.bf16.gmra.mxu0 %v3958
        %v4047 = vpop.f32.mrf.mxu0
        %v4048 = vadd.f32 0.0, %v4047
        %v4049 = vpop.f32.mrf.mxu0
        %v4050 = vadd.f32 0.0, %v4049
        %4051 = vdwg.mxu0
        %v4052 = vadd.f32 %v3654, %v3973
        %v4053 = vadd.f32 %v3655, %v3975
        %v4054 = vadd.f32 %v3656, %v3978
        %v4055 = vadd.f32 %v3657, %v3980
        %v4056 = vadd.f32 %v3658, %v3983
        %v4057 = vadd.f32 %v3659, %v3985
        %v4058 = vadd.f32 %v3660, %v3988
        %v4059 = vadd.f32 %v3661, %v3990
        %v4060 = vadd.f32 %v3662, %v3993
        %v4061 = vadd.f32 %v3663, %v3995
        %v4062 = vadd.f32 %v3664, %v3998
        %v4063 = vadd.f32 %v3665, %v4000
        %v4064 = vadd.f32 %v3666, %v4003
        %v4065 = vadd.f32 %v3667, %v4005
        %v4066 = vadd.f32 %v3668, %v4008
        %v4067 = vadd.f32 %v3669, %v4010
        %v4068 = vadd.f32 %v3670, %v4013
        %v4069 = vadd.f32 %v3671, %v4015
        %v4070 = vadd.f32 %v3672, %v4018
        %v4071 = vadd.f32 %v3673, %v4020
        %v4072 = vadd.f32 %v3674, %v4023
        %v4073 = vadd.f32 %v3675, %v4025
        %v4074 = vadd.f32 %v3676, %v4028
        %v4075 = vadd.f32 %v3677, %v4030
        %v4076 = vadd.f32 %v3678, %v4033
        %v4077 = vadd.f32 %v3679, %v4035
        %v4078 = vadd.f32 %v3680, %v4038
        %v4079 = vadd.f32 %v3681, %v4040
        %v4080 = vadd.f32 %v3682, %v4043
        %v4081 = vadd.f32 %v3683, %v4045
        %v4082 = vadd.f32 %v3684, %v4048
        %v4083 = vadd.f32 %v3685, %v4050
        %v4084 = vld [vmem:[%s2] sm:$0x1]
        %v4086 = vperm.slane %v4084, 0
        %v4088 = vadd.f32 %v4052, %v4086
        %v4089 = vadd.f32 %v4053, %v4086
        %v4090 = vadd.f32 %v4054, %v4086
        %v4091 = vadd.f32 %v4055, %v4086
        %v4092 = vadd.f32 %v4056, %v4086
        %v4093 = vadd.f32 %v4057, %v4086
        %v4094 = vadd.f32 %v4058, %v4086
        %v4095 = vadd.f32 %v4059, %v4086
        %v4096 = vadd.f32 %v4060, %v4086
        %v4097 = vadd.f32 %v4061, %v4086
        %v4098 = vadd.f32 %v4062, %v4086
        %v4099 = vadd.f32 %v4063, %v4086
        %v4100 = vadd.f32 %v4064, %v4086
        %v4101 = vadd.f32 %v4065, %v4086
        %v4102 = vadd.f32 %v4066, %v4086
        %v4103 = vadd.f32 %v4067, %v4086
        %v4104 = vadd.f32 %v4068, %v4086
        %v4105 = vadd.f32 %v4069, %v4086
        %v4106 = vadd.f32 %v4070, %v4086
        %v4107 = vadd.f32 %v4071, %v4086
        %v4108 = vadd.f32 %v4072, %v4086
        %v4109 = vadd.f32 %v4073, %v4086
        %v4110 = vadd.f32 %v4074, %v4086
        %v4111 = vadd.f32 %v4075, %v4086
        %v4112 = vadd.f32 %v4076, %v4086
        %v4113 = vadd.f32 %v4077, %v4086
        %v4114 = vadd.f32 %v4078, %v4086
        %v4115 = vadd.f32 %v4079, %v4086
        %v4116 = vadd.f32 %v4080, %v4086
        %v4117 = vadd.f32 %v4081, %v4086
        %v4118 = vadd.f32 %v4082, %v4086
        %v4119 = vadd.f32 %v4083, %v4086
        %v4152 = vrot.slane %v4088, 2
        %v4153 = vrot.slane %v4088, 4
        %v4154 = vrot.slane %v4088, 6
        %v4155 = vrot.slane %v4089, 2
        %v4156 = vrot.slane %v4089, 4
        %v4157 = vrot.slane %v4089, 6
        %v4158 = vrot.slane %v4090, 2
        %v4159 = vrot.slane %v4090, 4
        %v4160 = vrot.slane %v4090, 6
        %v4161 = vrot.slane %v4091, 2
        %v4162 = vrot.slane %v4091, 4
        %v4163 = vrot.slane %v4091, 6
        %v4164 = vrot.slane %v4092, 2
        %v4165 = vrot.slane %v4092, 4
        %v4166 = vrot.slane %v4092, 6
        %v4167 = vrot.slane %v4093, 2
        %v4168 = vrot.slane %v4093, 4
        %v4169 = vrot.slane %v4093, 6
        %v4170 = vrot.slane %v4094, 2
        %v4171 = vrot.slane %v4094, 4
        %v4172 = vrot.slane %v4094, 6
        %v4173 = vrot.slane %v4095, 2
        %v4174 = vrot.slane %v4095, 4
        %v4175 = vrot.slane %v4095, 6
        %v4176 = vrot.slane %v4096, 2
        %v4177 = vrot.slane %v4096, 4
        %v4178 = vrot.slane %v4096, 6
        %v4179 = vrot.slane %v4097, 2
        %v4180 = vrot.slane %v4097, 4
        %v4181 = vrot.slane %v4097, 6
        %v4182 = vrot.slane %v4098, 2
        %v4183 = vrot.slane %v4098, 4
        %v4184 = vrot.slane %v4098, 6
        %v4185 = vrot.slane %v4099, 2
        %v4186 = vrot.slane %v4099, 4
        %v4187 = vrot.slane %v4099, 6
        %v4188 = vrot.slane %v4100, 2
        %v4189 = vrot.slane %v4100, 4
        %v4190 = vrot.slane %v4100, 6
        %v4191 = vrot.slane %v4101, 2
        %v4192 = vrot.slane %v4101, 4
        %v4193 = vrot.slane %v4101, 6
        %v4194 = vrot.slane %v4102, 2
        %v4195 = vrot.slane %v4102, 4
        %v4196 = vrot.slane %v4102, 6
        %v4197 = vrot.slane %v4103, 2
        %v4198 = vrot.slane %v4103, 4
        %v4199 = vrot.slane %v4103, 6
        %v4200 = vrot.slane %v4104, 2
        %v4201 = vrot.slane %v4104, 4
        %v4202 = vrot.slane %v4104, 6
        %v4203 = vrot.slane %v4105, 2
        %v4204 = vrot.slane %v4105, 4
        %v4205 = vrot.slane %v4105, 6
        %v4206 = vrot.slane %v4106, 2
        %v4207 = vrot.slane %v4106, 4
        %v4208 = vrot.slane %v4106, 6
        %v4209 = vrot.slane %v4107, 2
        %v4210 = vrot.slane %v4107, 4
        %v4211 = vrot.slane %v4107, 6
        %v4212 = vrot.slane %v4108, 2
        %v4213 = vrot.slane %v4108, 4
        %v4214 = vrot.slane %v4108, 6
        %v4215 = vrot.slane %v4109, 2
        %v4216 = vrot.slane %v4109, 4
        %v4217 = vrot.slane %v4109, 6
        %v4218 = vrot.slane %v4110, 2
        %v4219 = vrot.slane %v4110, 4
        %v4220 = vrot.slane %v4110, 6
        %v4221 = vrot.slane %v4111, 2
        %v4222 = vrot.slane %v4111, 4
        %v4223 = vrot.slane %v4111, 6
        %v4224 = vrot.slane %v4112, 2
        %v4225 = vrot.slane %v4112, 4
        %v4226 = vrot.slane %v4112, 6
        %v4227 = vrot.slane %v4113, 2
        %v4228 = vrot.slane %v4113, 4
        %v4229 = vrot.slane %v4113, 6
        %v4230 = vrot.slane %v4114, 2
        %v4231 = vrot.slane %v4114, 4
        %v4232 = vrot.slane %v4114, 6
        %v4233 = vrot.slane %v4115, 2
        %v4234 = vrot.slane %v4115, 4
        %v4235 = vrot.slane %v4115, 6
        %v4236 = vrot.slane %v4116, 2
        %v4237 = vrot.slane %v4116, 4
        %v4238 = vrot.slane %v4116, 6
        %v4239 = vrot.slane %v4117, 2
        %v4240 = vrot.slane %v4117, 4
        %v4241 = vrot.slane %v4117, 6
        %v4242 = vrot.slane %v4118, 2
        %v4243 = vrot.slane %v4118, 4
        %v4244 = vrot.slane %v4118, 6
        %v4245 = vrot.slane %v4119, 2
        %v4246 = vrot.slane %v4119, 4
        %v4247 = vrot.slane %v4119, 6
        %v4344 = vrot.slane %v4088, 7
        %v4345 = vrot.slane %v4344, 2
        %v4346 = vrot.slane %v4152, 7
        %v4347 = vrot.slane %v4346, 2
        %v4348 = vrot.slane %v4153, 7
        %v4349 = vrot.slane %v4348, 2
        %v4350 = vrot.slane %v4154, 7
        %v4351 = vrot.slane %v4350, 2
        %v4352 = vrot.slane %v4089, 7
        %v4353 = vrot.slane %v4352, 2
        %v4354 = vrot.slane %v4155, 7
        %v4355 = vrot.slane %v4354, 2
        %v4356 = vrot.slane %v4156, 7
        %v4357 = vrot.slane %v4356, 2
        %v4358 = vrot.slane %v4157, 7
        %v4359 = vrot.slane %v4358, 2
        %v4360 = vrot.slane %v4090, 7
        %v4361 = vrot.slane %v4360, 2
        %v4362 = vrot.slane %v4158, 7
        %v4363 = vrot.slane %v4362, 2
        %v4364 = vrot.slane %v4159, 7
        %v4365 = vrot.slane %v4364, 2
        %v4366 = vrot.slane %v4160, 7
        %v4367 = vrot.slane %v4366, 2
        %v4368 = vrot.slane %v4091, 7
        %v4369 = vrot.slane %v4368, 2
        %v4370 = vrot.slane %v4161, 7
        %v4371 = vrot.slane %v4370, 2
        %v4372 = vrot.slane %v4162, 7
        %v4373 = vrot.slane %v4372, 2
        %v4374 = vrot.slane %v4163, 7
        %v4375 = vrot.slane %v4374, 2
        %v4376 = vrot.slane %v4092, 7
        %v4377 = vrot.slane %v4376, 2
        %v4378 = vrot.slane %v4164, 7
        %v4379 = vrot.slane %v4378, 2
        %v4380 = vrot.slane %v4165, 7
        %v4381 = vrot.slane %v4380, 2
        %v4382 = vrot.slane %v4166, 7
        %v4383 = vrot.slane %v4382, 2
        %v4384 = vrot.slane %v4093, 7
        %v4385 = vrot.slane %v4384, 2
        %v4386 = vrot.slane %v4167, 7
        %v4387 = vrot.slane %v4386, 2
        %v4388 = vrot.slane %v4168, 7
        %v4389 = vrot.slane %v4388, 2
        %v4390 = vrot.slane %v4169, 7
        %v4391 = vrot.slane %v4390, 2
        %v4392 = vrot.slane %v4094, 7
        %v4393 = vrot.slane %v4392, 2
        %v4394 = vrot.slane %v4170, 7
        %v4395 = vrot.slane %v4394, 2
        %v4396 = vrot.slane %v4171, 7
        %v4397 = vrot.slane %v4396, 2
        %v4398 = vrot.slane %v4172, 7
        %v4399 = vrot.slane %v4398, 2
        %v4400 = vrot.slane %v4095, 7
        %v4401 = vrot.slane %v4400, 2
        %v4402 = vrot.slane %v4173, 7
        %v4403 = vrot.slane %v4402, 2
        %v4404 = vrot.slane %v4174, 7
        %v4405 = vrot.slane %v4404, 2
        %v4406 = vrot.slane %v4175, 7
        %v4407 = vrot.slane %v4406, 2
        %v4408 = vrot.slane %v4096, 7
        %v4409 = vrot.slane %v4408, 2
        %v4410 = vrot.slane %v4176, 7
        %v4411 = vrot.slane %v4410, 2
        %v4412 = vrot.slane %v4177, 7
        %v4413 = vrot.slane %v4412, 2
        %v4414 = vrot.slane %v4178, 7
        %v4415 = vrot.slane %v4414, 2
        %v4416 = vrot.slane %v4097, 7
        %v4417 = vrot.slane %v4416, 2
        %v4418 = vrot.slane %v4179, 7
        %v4419 = vrot.slane %v4418, 2
        %v4420 = vrot.slane %v4180, 7
        %v4421 = vrot.slane %v4420, 2
        %v4422 = vrot.slane %v4181, 7
        %v4423 = vrot.slane %v4422, 2
        %v4424 = vrot.slane %v4098, 7
        %v4425 = vrot.slane %v4424, 2
        %v4426 = vrot.slane %v4182, 7
        %v4427 = vrot.slane %v4426, 2
        %v4428 = vrot.slane %v4183, 7
        %v4429 = vrot.slane %v4428, 2
        %v4430 = vrot.slane %v4184, 7
        %v4431 = vrot.slane %v4430, 2
        %v4432 = vrot.slane %v4099, 7
        %v4433 = vrot.slane %v4432, 2
        %v4434 = vrot.slane %v4185, 7
        %v4435 = vrot.slane %v4434, 2
        %v4436 = vrot.slane %v4186, 7
        %v4437 = vrot.slane %v4436, 2
        %v4438 = vrot.slane %v4187, 7
        %v4439 = vrot.slane %v4438, 2
        %v4440 = vrot.slane %v4100, 7
        %v4441 = vrot.slane %v4440, 2
        %v4442 = vrot.slane %v4188, 7
        %v4443 = vrot.slane %v4442, 2
        %v4444 = vrot.slane %v4189, 7
        %v4445 = vrot.slane %v4444, 2
        %v4446 = vrot.slane %v4190, 7
        %v4447 = vrot.slane %v4446, 2
        %v4448 = vrot.slane %v4101, 7
        %v4449 = vrot.slane %v4448, 2
        %v4450 = vrot.slane %v4191, 7
        %v4451 = vrot.slane %v4450, 2
        %v4452 = vrot.slane %v4192, 7
        %v4453 = vrot.slane %v4452, 2
        %v4454 = vrot.slane %v4193, 7
        %v4455 = vrot.slane %v4454, 2
        %v4456 = vrot.slane %v4102, 7
        %v4457 = vrot.slane %v4456, 2
        %v4458 = vrot.slane %v4194, 7
        %v4459 = vrot.slane %v4458, 2
        %v4460 = vrot.slane %v4195, 7
        %v4461 = vrot.slane %v4460, 2
        %v4462 = vrot.slane %v4196, 7
        %v4463 = vrot.slane %v4462, 2
        %v4464 = vrot.slane %v4103, 7
        %v4465 = vrot.slane %v4464, 2
        %v4466 = vrot.slane %v4197, 7
        %v4467 = vrot.slane %v4466, 2
        %v4468 = vrot.slane %v4198, 7
        %v4469 = vrot.slane %v4468, 2
        %v4470 = vrot.slane %v4199, 7
        %v4471 = vrot.slane %v4470, 2
        %v4472 = vrot.slane %v4104, 7
        %v4473 = vrot.slane %v4472, 2
        %v4474 = vrot.slane %v4200, 7
        %v4475 = vrot.slane %v4474, 2
        %v4476 = vrot.slane %v4201, 7
        %v4477 = vrot.slane %v4476, 2
        %v4478 = vrot.slane %v4202, 7
        %v4479 = vrot.slane %v4478, 2
        %v4480 = vrot.slane %v4105, 7
        %v4481 = vrot.slane %v4480, 2
        %v4482 = vrot.slane %v4203, 7
        %v4483 = vrot.slane %v4482, 2
        %v4484 = vrot.slane %v4204, 7
        %v4485 = vrot.slane %v4484, 2
        %v4486 = vrot.slane %v4205, 7
        %v4487 = vrot.slane %v4486, 2
        %v4488 = vrot.slane %v4106, 7
        %v4489 = vrot.slane %v4488, 2
        %v4490 = vrot.slane %v4206, 7
        %v4491 = vrot.slane %v4490, 2
        %v4492 = vrot.slane %v4207, 7
        %v4493 = vrot.slane %v4492, 2
        %v4494 = vrot.slane %v4208, 7
        %v4495 = vrot.slane %v4494, 2
        %v4496 = vrot.slane %v4107, 7
        %v4497 = vrot.slane %v4496, 2
        %v4498 = vrot.slane %v4209, 7
        %v4499 = vrot.slane %v4498, 2
        %v4500 = vrot.slane %v4210, 7
        %v4501 = vrot.slane %v4500, 2
        %v4502 = vrot.slane %v4211, 7
        %v4503 = vrot.slane %v4502, 2
        %v4504 = vrot.slane %v4108, 7
        %v4505 = vrot.slane %v4504, 2
        %v4506 = vrot.slane %v4212, 7
        %v4507 = vrot.slane %v4506, 2
        %v4508 = vrot.slane %v4213, 7
        %v4509 = vrot.slane %v4508, 2
        %v4510 = vrot.slane %v4214, 7
        %v4511 = vrot.slane %v4510, 2
        %v4512 = vrot.slane %v4109, 7
        %v4513 = vrot.slane %v4512, 2
        %v4514 = vrot.slane %v4215, 7
        %v4515 = vrot.slane %v4514, 2
        %v4516 = vrot.slane %v4216, 7
        %v4517 = vrot.slane %v4516, 2
        %v4518 = vrot.slane %v4217, 7
        %v4519 = vrot.slane %v4518, 2
        %v4520 = vrot.slane %v4110, 7
        %v4521 = vrot.slane %v4520, 2
        %v4522 = vrot.slane %v4218, 7
        %v4523 = vrot.slane %v4522, 2
        %v4524 = vrot.slane %v4219, 7
        %v4525 = vrot.slane %v4524, 2
        %v4526 = vrot.slane %v4220, 7
        %v4527 = vrot.slane %v4526, 2
        %v4528 = vrot.slane %v4111, 7
        %v4529 = vrot.slane %v4528, 2
        %v4530 = vrot.slane %v4221, 7
        %v4531 = vrot.slane %v4530, 2
        %v4532 = vrot.slane %v4222, 7
        %v4533 = vrot.slane %v4532, 2
        %v4534 = vrot.slane %v4223, 7
        %v4535 = vrot.slane %v4534, 2
        %v4536 = vrot.slane %v4112, 7
        %v4537 = vrot.slane %v4536, 2
        %v4538 = vrot.slane %v4224, 7
        %v4539 = vrot.slane %v4538, 2
        %v4540 = vrot.slane %v4225, 7
        %v4541 = vrot.slane %v4540, 2
        %v4542 = vrot.slane %v4226, 7
        %v4543 = vrot.slane %v4542, 2
        %v4544 = vrot.slane %v4113, 7
        %v4545 = vrot.slane %v4544, 2
        %v4546 = vrot.slane %v4227, 7
        %v4547 = vrot.slane %v4546, 2
        %v4548 = vrot.slane %v4228, 7
        %v4549 = vrot.slane %v4548, 2
        %v4550 = vrot.slane %v4229, 7
        %v4551 = vrot.slane %v4550, 2
        %v4552 = vrot.slane %v4114, 7
        %v4553 = vrot.slane %v4552, 2
        %v4554 = vrot.slane %v4230, 7
        %v4555 = vrot.slane %v4554, 2
        %v4556 = vrot.slane %v4231, 7
        %v4557 = vrot.slane %v4556, 2
        %v4558 = vrot.slane %v4232, 7
        %v4559 = vrot.slane %v4558, 2
        %v4560 = vrot.slane %v4115, 7
        %v4561 = vrot.slane %v4560, 2
        %v4562 = vrot.slane %v4233, 7
        %v4563 = vrot.slane %v4562, 2
        %v4564 = vrot.slane %v4234, 7
        %v4565 = vrot.slane %v4564, 2
        %v4566 = vrot.slane %v4235, 7
        %v4567 = vrot.slane %v4566, 2
        %v4568 = vrot.slane %v4116, 7
        %v4569 = vrot.slane %v4568, 2
        %v4570 = vrot.slane %v4236, 7
        %v4571 = vrot.slane %v4570, 2
        %v4572 = vrot.slane %v4237, 7
        %v4573 = vrot.slane %v4572, 2
        %v4574 = vrot.slane %v4238, 7
        %v4575 = vrot.slane %v4574, 2
        %v4576 = vrot.slane %v4117, 7
        %v4577 = vrot.slane %v4576, 2
        %v4578 = vrot.slane %v4239, 7
        %v4579 = vrot.slane %v4578, 2
        %v4580 = vrot.slane %v4240, 7
        %v4581 = vrot.slane %v4580, 2
        %v4582 = vrot.slane %v4241, 7
        %v4583 = vrot.slane %v4582, 2
        %v4584 = vrot.slane %v4118, 7
        %v4585 = vrot.slane %v4584, 2
        %v4586 = vrot.slane %v4242, 7
        %v4587 = vrot.slane %v4586, 2
        %v4588 = vrot.slane %v4243, 7
        %v4589 = vrot.slane %v4588, 2
        %v4590 = vrot.slane %v4244, 7
        %v4591 = vrot.slane %v4590, 2
        %v4592 = vrot.slane %v4119, 7
        %v4593 = vrot.slane %v4592, 2
        %v4594 = vrot.slane %v4245, 7
        %v4595 = vrot.slane %v4594, 2
        %v4596 = vrot.slane %v4246, 7
        %v4597 = vrot.slane %v4596, 2
        %v4598 = vrot.slane %v4247, 7
        %v4599 = vrot.slane %v4598, 2
        %v4728 = vmax.f32 %v4088, %v4345
        %v4729 = vmax.f32 %v4152, %v4347
        %v4730 = vmax.f32 %v4153, %v4349
        %v4731 = vmax.f32 %v4154, %v4351
        %v4732 = vmax.f32 %v4089, %v4353
        %v4733 = vmax.f32 %v4155, %v4355
        %v4734 = vmax.f32 %v4156, %v4357
        %v4735 = vmax.f32 %v4157, %v4359
        %v4736 = vmax.f32 %v4090, %v4361
        %v4737 = vmax.f32 %v4158, %v4363
        %v4738 = vmax.f32 %v4159, %v4365
        %v4739 = vmax.f32 %v4160, %v4367
        %v4740 = vmax.f32 %v4091, %v4369
        %v4741 = vmax.f32 %v4161, %v4371
        %v4742 = vmax.f32 %v4162, %v4373
        %v4743 = vmax.f32 %v4163, %v4375
        %v4744 = vmax.f32 %v4092, %v4377
        %v4745 = vmax.f32 %v4164, %v4379
        %v4746 = vmax.f32 %v4165, %v4381
        %v4747 = vmax.f32 %v4166, %v4383
        %v4748 = vmax.f32 %v4093, %v4385
        %v4749 = vmax.f32 %v4167, %v4387
        %v4750 = vmax.f32 %v4168, %v4389
        %v4751 = vmax.f32 %v4169, %v4391
        %v4752 = vmax.f32 %v4094, %v4393
        %v4753 = vmax.f32 %v4170, %v4395
        %v4754 = vmax.f32 %v4171, %v4397
        %v4755 = vmax.f32 %v4172, %v4399
        %v4756 = vmax.f32 %v4095, %v4401
        %v4757 = vmax.f32 %v4173, %v4403
        %v4758 = vmax.f32 %v4174, %v4405
        %v4759 = vmax.f32 %v4175, %v4407
        %v4760 = vmax.f32 %v4096, %v4409
        %v4761 = vmax.f32 %v4176, %v4411
        %v4762 = vmax.f32 %v4177, %v4413
        %v4763 = vmax.f32 %v4178, %v4415
        %v4764 = vmax.f32 %v4097, %v4417
        %v4765 = vmax.f32 %v4179, %v4419
        %v4766 = vmax.f32 %v4180, %v4421
        %v4767 = vmax.f32 %v4181, %v4423
        %v4768 = vmax.f32 %v4098, %v4425
        %v4769 = vmax.f32 %v4182, %v4427
        %v4770 = vmax.f32 %v4183, %v4429
        %v4771 = vmax.f32 %v4184, %v4431
        %v4772 = vmax.f32 %v4099, %v4433
        %v4773 = vmax.f32 %v4185, %v4435
        %v4774 = vmax.f32 %v4186, %v4437
        %v4775 = vmax.f32 %v4187, %v4439
        %v4776 = vmax.f32 %v4100, %v4441
        %v4777 = vmax.f32 %v4188, %v4443
        %v4778 = vmax.f32 %v4189, %v4445
        %v4779 = vmax.f32 %v4190, %v4447
        %v4780 = vmax.f32 %v4101, %v4449
        %v4781 = vmax.f32 %v4191, %v4451
        %v4782 = vmax.f32 %v4192, %v4453
        %v4783 = vmax.f32 %v4193, %v4455
        %v4784 = vmax.f32 %v4102, %v4457
        %v4785 = vmax.f32 %v4194, %v4459
        %v4786 = vmax.f32 %v4195, %v4461
        %v4787 = vmax.f32 %v4196, %v4463
        %v4788 = vmax.f32 %v4103, %v4465
        %v4789 = vmax.f32 %v4197, %v4467
        %v4790 = vmax.f32 %v4198, %v4469
        %v4791 = vmax.f32 %v4199, %v4471
        %v4792 = vmax.f32 %v4104, %v4473
        %v4793 = vmax.f32 %v4200, %v4475
        %v4794 = vmax.f32 %v4201, %v4477
        %v4795 = vmax.f32 %v4202, %v4479
        %v4796 = vmax.f32 %v4105, %v4481
        %v4797 = vmax.f32 %v4203, %v4483
        %v4798 = vmax.f32 %v4204, %v4485
        %v4799 = vmax.f32 %v4205, %v4487
        %v4800 = vmax.f32 %v4106, %v4489
        %v4801 = vmax.f32 %v4206, %v4491
        %v4802 = vmax.f32 %v4207, %v4493
        %v4803 = vmax.f32 %v4208, %v4495
        %v4804 = vmax.f32 %v4107, %v4497
        %v4805 = vmax.f32 %v4209, %v4499
        %v4806 = vmax.f32 %v4210, %v4501
        %v4807 = vmax.f32 %v4211, %v4503
        %v4808 = vmax.f32 %v4108, %v4505
        %v4809 = vmax.f32 %v4212, %v4507
        %v4810 = vmax.f32 %v4213, %v4509
        %v4811 = vmax.f32 %v4214, %v4511
        %v4812 = vmax.f32 %v4109, %v4513
        %v4813 = vmax.f32 %v4215, %v4515
        %v4814 = vmax.f32 %v4216, %v4517
        %v4815 = vmax.f32 %v4217, %v4519
        %v4816 = vmax.f32 %v4110, %v4521
        %v4817 = vmax.f32 %v4218, %v4523
        %v4818 = vmax.f32 %v4219, %v4525
        %v4819 = vmax.f32 %v4220, %v4527
        %v4820 = vmax.f32 %v4111, %v4529
        %v4821 = vmax.f32 %v4221, %v4531
        %v4822 = vmax.f32 %v4222, %v4533
        %v4823 = vmax.f32 %v4223, %v4535
        %v4824 = vmax.f32 %v4112, %v4537
        %v4825 = vmax.f32 %v4224, %v4539
        %v4826 = vmax.f32 %v4225, %v4541
        %v4827 = vmax.f32 %v4226, %v4543
        %v4828 = vmax.f32 %v4113, %v4545
        %v4829 = vmax.f32 %v4227, %v4547
        %v4830 = vmax.f32 %v4228, %v4549
        %v4831 = vmax.f32 %v4229, %v4551
        %v4832 = vmax.f32 %v4114, %v4553
        %v4833 = vmax.f32 %v4230, %v4555
        %v4834 = vmax.f32 %v4231, %v4557
        %v4835 = vmax.f32 %v4232, %v4559
        %v4836 = vmax.f32 %v4115, %v4561
        %v4837 = vmax.f32 %v4233, %v4563
        %v4838 = vmax.f32 %v4234, %v4565
        %v4839 = vmax.f32 %v4235, %v4567
        %v4840 = vmax.f32 %v4116, %v4569
        %v4841 = vmax.f32 %v4236, %v4571
        %v4842 = vmax.f32 %v4237, %v4573
        %v4843 = vmax.f32 %v4238, %v4575
        %v4844 = vmax.f32 %v4117, %v4577
        %v4845 = vmax.f32 %v4239, %v4579
        %v4846 = vmax.f32 %v4240, %v4581
        %v4847 = vmax.f32 %v4241, %v4583
        %v4848 = vmax.f32 %v4118, %v4585
        %v4849 = vmax.f32 %v4242, %v4587
        %v4850 = vmax.f32 %v4243, %v4589
        %v4851 = vmax.f32 %v4244, %v4591
        %v4852 = vmax.f32 %v4119, %v4593
        %v4853 = vmax.f32 %v4245, %v4595
        %v4854 = vmax.f32 %v4246, %v4597
        %v4855 = vmax.f32 %v4247, %v4599
        %v4856 = vmax.f32 %v4728, %v4736
        %v4857 = vmax.f32 %v4729, %v4737
        %v4858 = vmax.f32 %v4730, %v4738
        %v4859 = vmax.f32 %v4731, %v4739
        %v4860 = vmax.f32 %v4732, %v4740
        %v4861 = vmax.f32 %v4733, %v4741
        %v4862 = vmax.f32 %v4734, %v4742
        %v4863 = vmax.f32 %v4735, %v4743
        %v4864 = vmax.f32 %v4744, %v4752
        %v4865 = vmax.f32 %v4745, %v4753
        %v4866 = vmax.f32 %v4746, %v4754
        %v4867 = vmax.f32 %v4747, %v4755
        %v4868 = vmax.f32 %v4748, %v4756
        %v4869 = vmax.f32 %v4749, %v4757
        %v4870 = vmax.f32 %v4750, %v4758
        %v4871 = vmax.f32 %v4751, %v4759
        %v4872 = vmax.f32 %v4760, %v4768
        %v4873 = vmax.f32 %v4761, %v4769
        %v4874 = vmax.f32 %v4762, %v4770
        %v4875 = vmax.f32 %v4763, %v4771
        %v4876 = vmax.f32 %v4764, %v4772
        %v4877 = vmax.f32 %v4765, %v4773
        %v4878 = vmax.f32 %v4766, %v4774
        %v4879 = vmax.f32 %v4767, %v4775
        %v4880 = vmax.f32 %v4776, %v4784
        %v4881 = vmax.f32 %v4777, %v4785
        %v4882 = vmax.f32 %v4778, %v4786
        %v4883 = vmax.f32 %v4779, %v4787
        %v4884 = vmax.f32 %v4780, %v4788
        %v4885 = vmax.f32 %v4781, %v4789
        %v4886 = vmax.f32 %v4782, %v4790
        %v4887 = vmax.f32 %v4783, %v4791
        %v4888 = vmax.f32 %v4792, %v4800
        %v4889 = vmax.f32 %v4793, %v4801
        %v4890 = vmax.f32 %v4794, %v4802
        %v4891 = vmax.f32 %v4795, %v4803
        %v4892 = vmax.f32 %v4796, %v4804
        %v4893 = vmax.f32 %v4797, %v4805
        %v4894 = vmax.f32 %v4798, %v4806
        %v4895 = vmax.f32 %v4799, %v4807
        %v4896 = vmax.f32 %v4808, %v4816
        %v4897 = vmax.f32 %v4809, %v4817
        %v4898 = vmax.f32 %v4810, %v4818
        %v4899 = vmax.f32 %v4811, %v4819
        %v4900 = vmax.f32 %v4812, %v4820
        %v4901 = vmax.f32 %v4813, %v4821
        %v4902 = vmax.f32 %v4814, %v4822
        %v4903 = vmax.f32 %v4815, %v4823
        %v4904 = vmax.f32 %v4824, %v4832
        %v4905 = vmax.f32 %v4825, %v4833
        %v4906 = vmax.f32 %v4826, %v4834
        %v4907 = vmax.f32 %v4827, %v4835
        %v4908 = vmax.f32 %v4828, %v4836
        %v4909 = vmax.f32 %v4829, %v4837
        %v4910 = vmax.f32 %v4830, %v4838
        %v4911 = vmax.f32 %v4831, %v4839
        %v4912 = vmax.f32 %v4840, %v4848
        %v4913 = vmax.f32 %v4841, %v4849
        %v4914 = vmax.f32 %v4842, %v4850
        %v4915 = vmax.f32 %v4843, %v4851
        %v4916 = vmax.f32 %v4844, %v4852
        %v4917 = vmax.f32 %v4845, %v4853
        %v4918 = vmax.f32 %v4846, %v4854
        %v4919 = vmax.f32 %v4847, %v4855
        %v4920 = vmax.f32 %v4856, 0.0
        %v4921 = vmax.f32 %v4857, 0.0
        %v4922 = vmax.f32 %v4858, 0.0
        %v4923 = vmax.f32 %v4859, 0.0
        %v4924 = vmax.f32 %v4860, 0.0
        %v4925 = vmax.f32 %v4861, 0.0
        %v4926 = vmax.f32 %v4862, 0.0
        %v4927 = vmax.f32 %v4863, 0.0
        %v4928 = vmax.f32 %v4864, 0.0
        %v4929 = vmax.f32 %v4865, 0.0
        %v4930 = vmax.f32 %v4866, 0.0
        %v4931 = vmax.f32 %v4867, 0.0
        %v4932 = vmax.f32 %v4868, 0.0
        %v4933 = vmax.f32 %v4869, 0.0
        %v4934 = vmax.f32 %v4870, 0.0
        %v4935 = vmax.f32 %v4871, 0.0
        %v4936 = vmax.f32 %v4872, 0.0
        %v4937 = vmax.f32 %v4873, 0.0
        %v4938 = vmax.f32 %v4874, 0.0
        %v4939 = vmax.f32 %v4875, 0.0
        %v4940 = vmax.f32 %v4876, 0.0
        %v4941 = vmax.f32 %v4877, 0.0
        %v4942 = vmax.f32 %v4878, 0.0
        %v4943 = vmax.f32 %v4879, 0.0
        %v4944 = vmax.f32 %v4880, 0.0
        %v4945 = vmax.f32 %v4881, 0.0
        %v4946 = vmax.f32 %v4882, 0.0
        %v4947 = vmax.f32 %v4883, 0.0
        %v4948 = vmax.f32 %v4884, 0.0
        %v4949 = vmax.f32 %v4885, 0.0
        %v4950 = vmax.f32 %v4886, 0.0
        %v4951 = vmax.f32 %v4887, 0.0
        %v4952 = vmax.f32 %v4888, 0.0
        %v4953 = vmax.f32 %v4889, 0.0
        %v4954 = vmax.f32 %v4890, 0.0
        %v4955 = vmax.f32 %v4891, 0.0
        %v4956 = vmax.f32 %v4892, 0.0
        %v4957 = vmax.f32 %v4893, 0.0
        %v4958 = vmax.f32 %v4894, 0.0
        %v4959 = vmax.f32 %v4895, 0.0
        %v4960 = vmax.f32 %v4896, 0.0
        %v4961 = vmax.f32 %v4897, 0.0
        %v4962 = vmax.f32 %v4898, 0.0
        %v4963 = vmax.f32 %v4899, 0.0
        %v4964 = vmax.f32 %v4900, 0.0
        %v4965 = vmax.f32 %v4901, 0.0
        %v4966 = vmax.f32 %v4902, 0.0
        %v4967 = vmax.f32 %v4903, 0.0
        %v4968 = vmax.f32 %v4904, 0.0
        %v4969 = vmax.f32 %v4905, 0.0
        %v4970 = vmax.f32 %v4906, 0.0
        %v4971 = vmax.f32 %v4907, 0.0
        %v4972 = vmax.f32 %v4908, 0.0
        %v4973 = vmax.f32 %v4909, 0.0
        %v4974 = vmax.f32 %v4910, 0.0
        %v4975 = vmax.f32 %v4911, 0.0
        %v4976 = vmax.f32 %v4912, 0.0
        %v4977 = vmax.f32 %v4913, 0.0
        %v4978 = vmax.f32 %v4914, 0.0
        %v4979 = vmax.f32 %v4915, 0.0
        %v4980 = vmax.f32 %v4916, 0.0
        %v4981 = vmax.f32 %v4917, 0.0
        %v4982 = vmax.f32 %v4918, 0.0
        %v4983 = vmax.f32 %v4919, 0.0
        %v4984 = vpack.c.bf16 %v4920, %v4920
        %v4985 = vpack.c.bf16 %v4921, %v4921
        %v4986 = vpack.c.bf16 %v4922, %v4922
        %v4987 = vpack.c.bf16 %v4923, %v4923
        %v4988 = vpack.c.bf16 %v4924, %v4924
        %v4989 = vpack.c.bf16 %v4925, %v4925
        %v4990 = vpack.c.bf16 %v4926, %v4926
        %v4991 = vpack.c.bf16 %v4927, %v4927
        %v4992 = vpack.c.bf16 %v4928, %v4928
        %v4993 = vpack.c.bf16 %v4929, %v4929
        %v4994 = vpack.c.bf16 %v4930, %v4930
        %v4995 = vpack.c.bf16 %v4931, %v4931
        %v4996 = vpack.c.bf16 %v4932, %v4932
        %v4997 = vpack.c.bf16 %v4933, %v4933
        %v4998 = vpack.c.bf16 %v4934, %v4934
        %v4999 = vpack.c.bf16 %v4935, %v4935
        %v5000 = vpack.c.bf16 %v4936, %v4936
        %v5001 = vpack.c.bf16 %v4937, %v4937
        %v5002 = vpack.c.bf16 %v4938, %v4938
        %v5003 = vpack.c.bf16 %v4939, %v4939
        %v5004 = vpack.c.bf16 %v4940, %v4940
        %v5005 = vpack.c.bf16 %v4941, %v4941
        %v5006 = vpack.c.bf16 %v4942, %v4942
        %v5007 = vpack.c.bf16 %v4943, %v4943
        %v5008 = vpack.c.bf16 %v4944, %v4944
        %v5009 = vpack.c.bf16 %v4945, %v4945
        %v5010 = vpack.c.bf16 %v4946, %v4946
        %v5011 = vpack.c.bf16 %v4947, %v4947
        %v5012 = vpack.c.bf16 %v4948, %v4948
        %v5013 = vpack.c.bf16 %v4949, %v4949
        %v5014 = vpack.c.bf16 %v4950, %v4950
        %v5015 = vpack.c.bf16 %v4951, %v4951
        %v5016 = vpack.c.bf16 %v4952, %v4952
        %v5017 = vpack.c.bf16 %v4953, %v4953
        %v5018 = vpack.c.bf16 %v4954, %v4954
        %v5019 = vpack.c.bf16 %v4955, %v4955
        %v5020 = vpack.c.bf16 %v4956, %v4956
        %v5021 = vpack.c.bf16 %v4957, %v4957
        %v5022 = vpack.c.bf16 %v4958, %v4958
        %v5023 = vpack.c.bf16 %v4959, %v4959
        %v5024 = vpack.c.bf16 %v4960, %v4960
        %v5025 = vpack.c.bf16 %v4961, %v4961
        %v5026 = vpack.c.bf16 %v4962, %v4962
        %v5027 = vpack.c.bf16 %v4963, %v4963
        %v5028 = vpack.c.bf16 %v4964, %v4964
        %v5029 = vpack.c.bf16 %v4965, %v4965
        %v5030 = vpack.c.bf16 %v4966, %v4966
        %v5031 = vpack.c.bf16 %v4967, %v4967
        %v5032 = vpack.c.bf16 %v4968, %v4968
        %v5033 = vpack.c.bf16 %v4969, %v4969
        %v5034 = vpack.c.bf16 %v4970, %v4970
        %v5035 = vpack.c.bf16 %v4971, %v4971
        %v5036 = vpack.c.bf16 %v4972, %v4972
        %v5037 = vpack.c.bf16 %v4973, %v4973
        %v5038 = vpack.c.bf16 %v4974, %v4974
        %v5039 = vpack.c.bf16 %v4975, %v4975
        %v5040 = vpack.c.bf16 %v4976, %v4976
        %v5041 = vpack.c.bf16 %v4977, %v4977
        %v5042 = vpack.c.bf16 %v4978, %v4978
        %v5043 = vpack.c.bf16 %v4979, %v4979
        %v5044 = vpack.c.bf16 %v4980, %v4980
        %v5045 = vpack.c.bf16 %v4981, %v4981
        %v5046 = vpack.c.bf16 %v4982, %v4982
        %v5047 = vpack.c.bf16 %v4983, %v4983
        %v5112 = vunpack.c.l.b16 %v4984
        %v5113 = vunpack.c.l.b16 %v4985
        %v5114 = vunpack.c.l.b16 %v4986
        %v5115 = vunpack.c.l.b16 %v4987
        %v5116 = vunpack.c.l.b16 %v4988
        %v5117 = vunpack.c.l.b16 %v4989
        %v5118 = vunpack.c.l.b16 %v4990
        %v5119 = vunpack.c.l.b16 %v4991
        %v5120 = vunpack.c.l.b16 %v4992
        %v5121 = vunpack.c.l.b16 %v4993
        %v5122 = vunpack.c.l.b16 %v4994
        %v5123 = vunpack.c.l.b16 %v4995
        %v5124 = vunpack.c.l.b16 %v4996
        %v5125 = vunpack.c.l.b16 %v4997
        %v5126 = vunpack.c.l.b16 %v4998
        %v5127 = vunpack.c.l.b16 %v4999
        %v5128 = vunpack.c.l.b16 %v5000
        %v5129 = vunpack.c.l.b16 %v5001
        %v5130 = vunpack.c.l.b16 %v5002
        %v5131 = vunpack.c.l.b16 %v5003
        %v5132 = vunpack.c.l.b16 %v5004
        %v5133 = vunpack.c.l.b16 %v5005
        %v5134 = vunpack.c.l.b16 %v5006
        %v5135 = vunpack.c.l.b16 %v5007
        %v5136 = vunpack.c.l.b16 %v5008
        %v5137 = vunpack.c.l.b16 %v5009
        %v5138 = vunpack.c.l.b16 %v5010
        %v5139 = vunpack.c.l.b16 %v5011
        %v5140 = vunpack.c.l.b16 %v5012
        %v5141 = vunpack.c.l.b16 %v5013
        %v5142 = vunpack.c.l.b16 %v5014
        %v5143 = vunpack.c.l.b16 %v5015
        %v5144 = vunpack.c.l.b16 %v5016
        %v5145 = vunpack.c.l.b16 %v5017
        %v5146 = vunpack.c.l.b16 %v5018
        %v5147 = vunpack.c.l.b16 %v5019
        %v5148 = vunpack.c.l.b16 %v5020
        %v5149 = vunpack.c.l.b16 %v5021
        %v5150 = vunpack.c.l.b16 %v5022
        %v5151 = vunpack.c.l.b16 %v5023
        %v5152 = vunpack.c.l.b16 %v5024
        %v5153 = vunpack.c.l.b16 %v5025
        %v5154 = vunpack.c.l.b16 %v5026
        %v5155 = vunpack.c.l.b16 %v5027
        %v5156 = vunpack.c.l.b16 %v5028
        %v5157 = vunpack.c.l.b16 %v5029
        %v5158 = vunpack.c.l.b16 %v5030
        %v5159 = vunpack.c.l.b16 %v5031
        %v5160 = vunpack.c.l.b16 %v5032
        %v5161 = vunpack.c.l.b16 %v5033
        %v5162 = vunpack.c.l.b16 %v5034
        %v5163 = vunpack.c.l.b16 %v5035
        %v5164 = vunpack.c.l.b16 %v5036
        %v5165 = vunpack.c.l.b16 %v5037
        %v5166 = vunpack.c.l.b16 %v5038
        %v5167 = vunpack.c.l.b16 %v5039
        %v5168 = vunpack.c.l.b16 %v5040
        %v5169 = vunpack.c.l.b16 %v5041
        %v5170 = vunpack.c.l.b16 %v5042
        %v5171 = vunpack.c.l.b16 %v5043
        %v5172 = vunpack.c.l.b16 %v5044
        %v5173 = vunpack.c.l.b16 %v5045
        %v5174 = vunpack.c.l.b16 %v5046
        %v5175 = vunpack.c.l.b16 %v5047
        %v5176 = vrot.slane %v5113, 7
        %vm5177 = vcmask 1041409
        %v5178 = vsel %vm5177, %v5176, %v5112
        %v5179 = vrot.slane %v5114, 6
        %vm5180 = vcmask 1042434
        %v5181 = vsel %vm5180, %v5179, %v5178
        %v5182 = vrot.slane %v5115, 5
        %vm5183 = vcmask 1043459
        %v5184 = vsel %vm5183, %v5182, %v5181
        %v5185 = vrot.slane %v5116, 4
        %vm5186 = vcmask 1044484
        %v5187 = vsel %vm5186, %v5185, %v5184
        %v5188 = vrot.slane %v5117, 3
        %vm5189 = vcmask 1045509
        %v5190 = vsel %vm5189, %v5188, %v5187
        %v5191 = vrot.slane %v5118, 2
        %vm5192 = vcmask 1046534
        %v5193 = vsel %vm5192, %v5191, %v5190
        %v5194 = vrot.slane %v5119, 1
        %vm5195 = vcmask 1047559
        %v5196 = vsel %vm5195, %v5194, %v5193
        %v5197 = vrot.slane %v5121, 7
        %v5198 = vsel %vm5177, %v5197, %v5120
        %v5199 = vrot.slane %v5122, 6
        %v5200 = vsel %vm5180, %v5199, %v5198
        %v5201 = vrot.slane %v5123, 5
        %v5202 = vsel %vm5183, %v5201, %v5200
        %v5203 = vrot.slane %v5124, 4
        %v5204 = vsel %vm5186, %v5203, %v5202
        %v5205 = vrot.slane %v5125, 3
        %v5206 = vsel %vm5189, %v5205, %v5204
        %v5207 = vrot.slane %v5126, 2
        %v5208 = vsel %vm5192, %v5207, %v5206
        %v5209 = vrot.slane %v5127, 1
        %v5210 = vsel %vm5195, %v5209, %v5208
        %v5211 = vrot.slane %v5129, 7
        %v5212 = vsel %vm5177, %v5211, %v5128
        %v5213 = vrot.slane %v5130, 6
        %v5214 = vsel %vm5180, %v5213, %v5212
        %v5215 = vrot.slane %v5131, 5
        %v5216 = vsel %vm5183, %v5215, %v5214
        %v5217 = vrot.slane %v5132, 4
        %v5218 = vsel %vm5186, %v5217, %v5216
        %v5219 = vrot.slane %v5133, 3
        %v5220 = vsel %vm5189, %v5219, %v5218
        %v5221 = vrot.slane %v5134, 2
        %v5222 = vsel %vm5192, %v5221, %v5220
        %v5223 = vrot.slane %v5135, 1
        %v5224 = vsel %vm5195, %v5223, %v5222
        %v5225 = vrot.slane %v5137, 7
        %v5226 = vsel %vm5177, %v5225, %v5136
        %v5227 = vrot.slane %v5138, 6
        %v5228 = vsel %vm5180, %v5227, %v5226
        %v5229 = vrot.slane %v5139, 5
        %v5230 = vsel %vm5183, %v5229, %v5228
        %v5231 = vrot.slane %v5140, 4
        %v5232 = vsel %vm5186, %v5231, %v5230
        %v5233 = vrot.slane %v5141, 3
        %v5234 = vsel %vm5189, %v5233, %v5232
        %v5235 = vrot.slane %v5142, 2
        %v5236 = vsel %vm5192, %v5235, %v5234
        %v5237 = vrot.slane %v5143, 1
        %v5238 = vsel %vm5195, %v5237, %v5236
        %v5239 = vrot.slane %v5145, 7
        %v5240 = vsel %vm5177, %v5239, %v5144
        %v5241 = vrot.slane %v5146, 6
        %v5242 = vsel %vm5180, %v5241, %v5240
        %v5243 = vrot.slane %v5147, 5
        %v5244 = vsel %vm5183, %v5243, %v5242
        %v5245 = vrot.slane %v5148, 4
        %v5246 = vsel %vm5186, %v5245, %v5244
        %v5247 = vrot.slane %v5149, 3
        %v5248 = vsel %vm5189, %v5247, %v5246
        %v5249 = vrot.slane %v5150, 2
        %v5250 = vsel %vm5192, %v5249, %v5248
        %v5251 = vrot.slane %v5151, 1
        %v5252 = vsel %vm5195, %v5251, %v5250
        %v5253 = vrot.slane %v5153, 7
        %v5254 = vsel %vm5177, %v5253, %v5152
        %v5255 = vrot.slane %v5154, 6
        %v5256 = vsel %vm5180, %v5255, %v5254
        %v5257 = vrot.slane %v5155, 5
        %v5258 = vsel %vm5183, %v5257, %v5256
        %v5259 = vrot.slane %v5156, 4
        %v5260 = vsel %vm5186, %v5259, %v5258
        %v5261 = vrot.slane %v5157, 3
        %v5262 = vsel %vm5189, %v5261, %v5260
        %v5263 = vrot.slane %v5158, 2
        %v5264 = vsel %vm5192, %v5263, %v5262
        %v5265 = vrot.slane %v5159, 1
        %v5266 = vsel %vm5195, %v5265, %v5264
        %v5267 = vrot.slane %v5161, 7
        %v5268 = vsel %vm5177, %v5267, %v5160
        %v5269 = vrot.slane %v5162, 6
        %v5270 = vsel %vm5180, %v5269, %v5268
        %v5271 = vrot.slane %v5163, 5
        %v5272 = vsel %vm5183, %v5271, %v5270
        %v5273 = vrot.slane %v5164, 4
        %v5274 = vsel %vm5186, %v5273, %v5272
        %v5275 = vrot.slane %v5165, 3
        %v5276 = vsel %vm5189, %v5275, %v5274
        %v5277 = vrot.slane %v5166, 2
        %v5278 = vsel %vm5192, %v5277, %v5276
        %v5279 = vrot.slane %v5167, 1
        %v5280 = vsel %vm5195, %v5279, %v5278
        %v5281 = vrot.slane %v5169, 7
        %v5282 = vsel %vm5177, %v5281, %v5168
        %v5283 = vrot.slane %v5170, 6
        %v5284 = vsel %vm5180, %v5283, %v5282
        %v5285 = vrot.slane %v5171, 5
        %v5286 = vsel %vm5183, %v5285, %v5284
        %v5287 = vrot.slane %v5172, 4
        %v5288 = vsel %vm5186, %v5287, %v5286
        %v5289 = vrot.slane %v5173, 3
        %v5290 = vsel %vm5189, %v5289, %v5288
        %v5291 = vrot.slane %v5174, 2
        %v5292 = vsel %vm5192, %v5291, %v5290
        %v5293 = vrot.slane %v5175, 1
        %v5294 = vsel %vm5195, %v5293, %v5292
        %v5295 = vpack.c.b16 %v5196, %v5196
        %v5296 = vpack.c.b16 %v5210, %v5210
        %v5297 = vpack.c.b16 %v5224, %v5224
        %v5298 = vpack.c.b16 %v5238, %v5238
        %v5299 = vpack.c.b16 %v5252, %v5252
        %v5300 = vpack.c.b16 %v5266, %v5266
        %v5301 = vpack.c.b16 %v5280, %v5280
        %v5302 = vpack.c.b16 %v5294, %v5294
        %vm5311 = vcmask 519168
        %5312 = vst.msk [vmem:[%s163] sm:$0xf] %vm5311, %v5295
        %5313 = vst.msk [vmem:[%s163 + $0x4] sm:$0xf] %vm5311, %v5296
        %5314 = vst.msk [vmem:[%s163 + $0x8] sm:$0xf] %vm5311, %v5297
        %5315 = vst.msk [vmem:[%s163 + $0xc] sm:$0xf] %vm5311, %v5298
        %5316 = vst.msk [vmem:[%s163 + $0x10] sm:$0xf] %vm5311, %v5299
        %5317 = vst.msk [vmem:[%s163 + $0x14] sm:$0xf] %vm5311, %v5300
        %5318 = vst.msk [vmem:[%s163 + $0x18] sm:$0xf] %vm5311, %v5301
        %5319 = vst.msk [vmem:[%s163 + $0x1c] sm:$0xf] %vm5311, %v5302
        %s5320 = sand.u32 %s93, 1
        %s5321 = scalar_lea.sflag [#allocation3], %s5320
        %s5322 = sand.u32 %s93, 1
        %s5323 = smul.addr %s5322, 32
        %s5324 = scalar_lea.vmem [#allocation2], %s5323
        // Predicated region
        $region33: #{tpu_custom_call.1} parent=31 // pred_check
          %p5325 = pneg %p103
        $region34: #{tpu_custom_call.1} parent=31 // pred_check_branch
          %5327 = sbr.rel (%p5325) target = $region36
        $region35: #{tpu_custom_call.1} parent=31 // pred_region
          %5329 = vsyncadd %s5321, 0
          %s5330 = smul.addr %s17, 8
          %s5331 = smul.addr %s5330, 4
          %s5332 = scalar_lea.hbm %s3, %s5331
          %s5333 = sshll.u32 %s5324, 4
          %s5334 = int_to_ptr.vmem [resolvable:$true] %s5333
          %s5335 = sshll.u32 %s5332, 4
          %s5336 = int_to_ptr.hbm [resolvable:$true] %s5335
          %5341 = dma.vmem_to_hbm [thread:$0]  %s5334, 512, %s5336, %s5321, 64, 64, 4
        $region36: #{tpu_custom_call.1} parent=31 // pred_fallthru
          _
      $region32: #{tpu_custom_call.1} parent=5 // pred_fallthru
        _
      %p5342 = scmp.le.s32.totalorder 2, %s12
      // Predicated region
      $region37: #{tpu_custom_call.1} parent=5 // pred_check
        %p5343 = pneg %p5342
      $region38: #{tpu_custom_call.1} parent=5 // pred_check_branch
        %5345 = sbr.rel (%p5343) target = $region40
      $region39: #{tpu_custom_call.1} parent=5 // pred_region
        %s5346 = ssub.s32 %s12, 2
        // Predicated region
        $region41: #{tpu_custom_call.1} parent=39 // pred_check
          %p5347 = pneg %p109
        $region42: #{tpu_custom_call.1} parent=39 // pred_check_branch
          %5349 = sbr.rel (%p5347) target = $region44
        $region43: #{tpu_custom_call.1} parent=39 // pred_region
          %s5350 = sand.u32 %s94, 1
          %s5351 = scalar_lea.sflag [#allocation3], %s5350
          %s5352 = sand.u32 %s94, 1
          %s5353 = smul.addr %s5352, 32
          %s5354 = scalar_lea.vmem [#allocation2], %s5353
          %5356 = dma.done %s5351, 512
        $region44: #{tpu_custom_call.1} parent=39 // pred_fallthru
          _
      $region40: #{tpu_custom_call.1} parent=5 // pred_fallthru
        _
    $region6: #{tpu_custom_call.1} parent=1 // loop_footer
      %s16 = sadd.s32 1, %s12
    $region7: #{tpu_custom_call.1} parent=1 // loop_footer_branch
      %11 = sbr.rel target = $region3
    $region8: #{tpu_custom_call.1} parent=1 // loop_exit
      _
    %5357 = vsyncpa [#allocation3], 1
    %s5358 = scalar_lea.sflag [#allocation3], 1
    %5359 = vsyncpa %s5358, 1

</llo_original>
